<compile_context>
chip_gen: v7x
topology: tpu7x:2x2x1
jax: 0.10.0
libtpu: 0.0.40
codegen_flags: <defaults>
</compile_context>

<pallas_src>
import math
from functools import partial

import jax
import jax.numpy as jnp
from jax.experimental import pallas as pl
from jax.experimental.pallas import tpu as pltpu


# ----------------------------- configuration ------------------------------

class Config:
    vocab_size = 64
    hidden = 32
    n_layers = 4
    n_heads = 4
    head_dim = 8          # hidden // n_heads
    intermediate = 64
    rms_eps = 1e-6
    rope_theta = 10000.0
    early_exit_idx = 1


CFG = Config()

_C2 = (((1,), (1,)), ((), ()))          # (M,K) . (N,K) -> (M,N)   contract last dims


# ------------------------------- helpers ----------------------------------

def _round_up(x, m):
    return ((x + m - 1) // m) * m


def _pad_rows(x2, rows):
    if x2.shape[0] == rows:
        return x2
    return jnp.pad(x2, ((0, rows - x2.shape[0]), (0, 0)))


# ----------------------------- Pallas kernels -----------------------------

def _norm_matmul_kernel(x_ref, nw_ref, w_ref, o_ref, *, eps):
    """out = RMSNorm(x; nw) @ w.T  (no transpose: contract last dims directly)."""
    x = x_ref[...].astype(jnp.float32)                               # (tm, K)
    var = jnp.mean(x * x, axis=-1, keepdims=True)
    xn = x * jax.lax.rsqrt(var + eps) * nw_ref[...]                  # (tm, K)
    o_ref[...] = jax.lax.dot_general(
        xn, w_ref[...], _C2, preferred_element_type=jnp.float32
    ).astype(o_ref.dtype)


def fused_norm_matmul(x, norm_w, w, eps, tm=256, tn=512):
    """y = RMSNorm(x) @ w.T with x (..., K), w (N, K).  Row- and N-tiled."""
    lead, K = x.shape[:-1], x.shape[-1]
    N = w.shape[0]
    x2 = x.reshape(-1, K)
    M = x2.shape[0]
    tm_ = min(tm, _round_up(M, 8))
    tn_ = min(tn, _round_up(N, 8))
    Mp, Np = _round_up(M, tm_), _round_up(N, tn_)
    x2 = _pad_rows(x2, Mp)
    wp = _pad_rows(w, Np)
    out = pl.pallas_call(
        partial(_norm_matmul_kernel, eps=eps),
        out_shape=jax.ShapeDtypeStruct((Mp, Np), jnp.float32),
        grid=(Mp // tm_, Np // tn_),
        in_specs=[
            pl.BlockSpec((tm_, K), lambda i, j: (i, 0)),
            pl.BlockSpec((1, K), lambda i, j: (0, 0)),
            pl.BlockSpec((tn_, K), lambda i, j: (j, 0)),
        ],
        out_specs=pl.BlockSpec((tm_, tn_), lambda i, j: (i, j)),
        compiler_params=pltpu.CompilerParams(
            dimension_semantics=("parallel", "parallel")),
    )(x2, norm_w.reshape(1, K), wp)
    return out[:M, :N].reshape(*lead, N)


def _matmul_residual_kernel(x_ref, w_ref, res_ref, o_ref):
    """out = res + x @ w.T   (attention output projection + residual)."""
    o_ref[...] = (
        res_ref[...].astype(jnp.float32)
        + jax.lax.dot_general(x_ref[...].astype(jnp.float32), w_ref[...], _C2,
                              preferred_element_type=jnp.float32)
    ).astype(o_ref.dtype)


def matmul_residual(x, w, res, tm=256):
    lead, K = x.shape[:-1], x.shape[-1]
    N = w.shape[0]
    x2 = x.reshape(-1, K)
    r2 = res.reshape(-1, N)
    M = x2.shape[0]
    tm_ = min(tm, _round_up(M, 8))
    Mp = _round_up(M, tm_)
    x2, r2 = _pad_rows(x2, Mp), _pad_rows(r2, Mp)
    out = pl.pallas_call(
        _matmul_residual_kernel,
        out_shape=jax.ShapeDtypeStruct((Mp, N), jnp.float32),
        grid=(Mp // tm_,),
        in_specs=[
            pl.BlockSpec((tm_, K), lambda i: (i, 0)),
            pl.BlockSpec((N, K), lambda i: (0, 0)),
            pl.BlockSpec((tm_, N), lambda i: (i, 0)),
        ],
        out_specs=pl.BlockSpec((tm_, N), lambda i: (i, 0)),
        compiler_params=pltpu.CompilerParams(dimension_semantics=("parallel",)),
    )(x2, w, r2)
    return out[:M].reshape(*lead, N)


def _mlp_kernel(x_ref, nw_ref, wg_ref, wu_ref, wd_ref, o_ref, *, eps):
    """Whole MLP block: out = x + SiLU(norm(x)@Wg.T) * (norm(x)@Wu.T) @ Wd.T."""
    x = x_ref[...].astype(jnp.float32)                               # (tm, D)
    var = jnp.mean(x * x, axis=-1, keepdims=True)
    xn = x * jax.lax.rsqrt(var + eps) * nw_ref[...]
    g = jax.lax.dot_general(xn, wg_ref[...], _C2, preferred_element_type=jnp.float32)
    u = jax.lax.dot_general(xn, wu_ref[...], _C2, preferred_element_type=jnp.float32)
    h = g * jax.nn.sigmoid(g) * u                                    # SiLU-gate (stays in VMEM)
    o_ref[...] = (x + jax.lax.dot_general(h, wd_ref[...], _C2,
                                          preferred_element_type=jnp.float32)
                  ).astype(o_ref.dtype)


def fused_mlp(x, norm_w, w_gate, w_up, w_down, eps, tm=256):
    lead, D = x.shape[:-1], x.shape[-1]
    inter = w_gate.shape[0]
    x2 = x.reshape(-1, D)
    M = x2.shape[0]
    tm_ = min(tm, _round_up(M, 8))
    Mp = _round_up(M, tm_)
    x2 = _pad_rows(x2, Mp)
    out = pl.pallas_call(
        partial(_mlp_kernel, eps=eps),
        out_shape=jax.ShapeDtypeStruct((Mp, D), jnp.float32),
        grid=(Mp // tm_,),
        in_specs=[
            pl.BlockSpec((tm_, D), lambda i: (i, 0)),
            pl.BlockSpec((1, D), lambda i: (0, 0)),
            pl.BlockSpec((inter, D), lambda i: (0, 0)),
            pl.BlockSpec((inter, D), lambda i: (0, 0)),
            pl.BlockSpec((D, inter), lambda i: (0, 0)),
        ],
        out_specs=pl.BlockSpec((tm_, D), lambda i: (i, 0)),
        compiler_params=pltpu.CompilerParams(dimension_semantics=("parallel",)),
    )(x2, norm_w.reshape(1, D), w_gate, w_up, w_down)
    return out[:M].reshape(*lead, D)


def _attn_kernel(qkv_ref, cos_ref, sin_ref, rot_ref, o_ref, *,
                 scale, n_heads, head_dim, hidden):
    """RoPE + causal softmax attention for all batches/heads in one grid step.

    qkv: (B, T, 3D).  rotate_half is applied via a signed-permutation matmul so no
    in-kernel concatenation/transposes are needed; heads are static slices of the
    lane dimension (no wrapper-side (B,H,T,Dh) transposes).
    """
    cos = cos_ref[...][None]                                         # (1, T, Dh)
    sin = sin_ref[...][None]
    rot = rot_ref[...]                                               # (Dh, Dh)
    B, T, _ = qkv_ref.shape
    D, Dh = hidden, head_dim

    row = jax.lax.broadcasted_iota(jnp.int32, (T, T), 0)
    col = jax.lax.broadcasted_iota(jnp.int32, (T, T), 1)
    causal = (col <= row)[None]                                      # (1, T, T)
    neg = jnp.finfo(jnp.float32).min                                 # dtype-aware mask value

    rope_dims = (((2,), (0,)), ((), ()))                             # (B,T,Dh).(Dh,Dh)
    qk_dims = (((2,), (2,)), ((0,), (0,)))                           # batched q.k^T
    pv_dims = (((2,), (1,)), ((0,), (0,)))                           # batched p.v

    for h in range(n_heads):
        lo = h * Dh
        q = qkv_ref[:, :, lo:lo + Dh].astype(jnp.float32)
        k = qkv_ref[:, :, D + lo:D + lo + Dh].astype(jnp.float32)
        v = qkv_ref[:, :, 2 * D + lo:2 * D + lo + Dh].astype(jnp.float32)

        q = q * cos + jax.lax.dot_general(q, rot, rope_dims,
                                          preferred_element_type=jnp.float32) * sin
        k = k * cos + jax.lax.dot_general(k, rot, rope_dims,
                                          preferred_element_type=jnp.float32) * sin

        s = jax.lax.dot_general(q, k, qk_dims,
                                preferred_element_type=jnp.float32) * scale
        s = jnp.where(causal, s, neg)
        m = jnp.max(s, axis=-1, keepdims=True)
        p = jnp.exp(s - m)
        denom = jnp.sum(p, axis=-1, keepdims=True)
        p = p * pl.reciprocal(denom, approx=True)                    # EUP, not VPU divide

        out_h = jax.lax.dot_general(p, v, pv_dims,
                                    preferred_element_type=jnp.float32)
        o_ref[:, :, lo:lo + Dh] = out_h.astype(o_ref.dtype)


def causal_attention(qkv, cos, sin, rot, cfg):
    # TODO(synk): switch to a flash-style streaming kernel (online softmax, K/V along
    # an 'arbitrary' axis) for long sequences; dense (T,T) scores fit VMEM at T=8.
    B, T, threeD = qkv.shape
    D, Dh = cfg.hidden, cfg.head_dim
    scale = 1.0 / math.sqrt(Dh)
    return pl.pallas_call(
        partial(_attn_kernel, scale=scale, n_heads=cfg.n_heads,
                head_dim=Dh, hidden=D),
        out_shape=jax.ShapeDtypeStruct((B, T, D), jnp.float32),
        grid=(1,),
        in_specs=[
            pl.BlockSpec((B, T, threeD), lambda i: (0, 0, 0)),
            pl.BlockSpec((T, Dh), lambda i: (0, 0)),
            pl.BlockSpec((T, Dh), lambda i: (0, 0)),
            pl.BlockSpec((Dh, Dh), lambda i: (0, 0)),
        ],
        out_specs=pl.BlockSpec((B, T, D), lambda i: (0, 0, 0)),
        compiler_params=pltpu.CompilerParams(dimension_semantics=("arbitrary",)),
    )(qkv, cos, sin, rot)


# --------------------------- model (JAX glue) ------------------------------

def rope_tables(T, head_dim, theta):
    inv_freq = 1.0 / (theta ** (jnp.arange(0, head_dim, 2, dtype=jnp.float32) / head_dim))
    pos = jnp.arange(T, dtype=jnp.float32)
    angles = pos[:, None] * inv_freq[None, :]                        # (T, Dh/2)
    emb = jnp.concatenate([angles, angles], axis=-1)                 # (T, Dh)
    half = head_dim // 2
    # rotate_half(x) == x @ rot, with rot the signed half-swap permutation.
    rot = jnp.zeros((head_dim, head_dim), jnp.float32)
    rot = rot.at[jnp.arange(half) + half, jnp.arange(half)].set(-1.0)
    rot = rot.at[jnp.arange(half), jnp.arange(half) + half].set(1.0)
    return jnp.cos(emb), jnp.sin(emb), rot


def decoder_layer(x, lp, cos, sin, rot, cfg):
    # RMSNorm + fused QKV projection (one kernel, one read of the activation)
    qkv = fused_norm_matmul(x, lp["input_norm"], lp["w_qkv"], cfg.rms_eps)   # (B, T, 3D)
    # RoPE + causal attention for all heads (one kernel, no wrapper transposes)
    attn = causal_attention(qkv, cos, sin, rot, cfg)                         # (B, T, D)
    # output projection fused with the residual add
    x = matmul_residual(attn, lp["wo"], x)
    # whole MLP block (norm + gate/up + SiLU-gate + down + residual) in one kernel
    x = fused_mlp(x, lp["post_norm"], lp["w_gate"], lp["w_up"], lp["w_down"], cfg.rms_eps)
    return x


def init_params(key, cfg):
    def dense(k, shape, scale=0.02):
        return scale * jax.random.normal(k, shape, dtype=jnp.float32)

    keys = jax.random.split(key, 3 + cfg.n_layers)
    params = {
        "embed": dense(keys[0], (cfg.vocab_size, cfg.hidden)),
        "final_norm": jnp.ones((cfg.hidden,), jnp.float32),
        "og_lm_head": dense(keys[1], (cfg.vocab_size, cfg.hidden)),
        "new_lm_head": dense(keys[2], (cfg.vocab_size, cfg.hidden)),  # random init (lm_head_random_init=True)
        "layers": [],
    }
    D = cfg.hidden
    for li in range(cfg.n_layers):
        lk = jax.random.split(keys[3 + li], 7)
        wq = dense(lk[0], (cfg.n_heads * cfg.head_dim, D))
        wk = dense(lk[1], (cfg.n_heads * cfg.head_dim, D))
        wv = dense(lk[2], (cfg.n_heads * cfg.head_dim, D))
        params["layers"].append({
            "input_norm": jnp.ones((D,), jnp.float32),
            "post_norm": jnp.ones((D,), jnp.float32),
            "w_qkv": jnp.concatenate([wq, wk, wv], axis=0),           # fused (3D, D) QKV weight
            "wo": dense(lk[3], (D, cfg.n_heads * cfg.head_dim)),
            "w_gate": dense(lk[4], (cfg.intermediate, D)),
            "w_up": dense(lk[5], (cfg.intermediate, D)),
            "w_down": dense(lk[6], (D, cfg.intermediate)),
        })
    return params


def truncated_llama_forward(params, input_ids, labels=None, loss_type=None,
                            keep_og_logits=False, cfg=CFG):
    B, T = input_ids.shape
    x = params["embed"][input_ids]                                    # embedding gather (XLA glue)
    cos, sin, rot = rope_tables(T, cfg.head_dim, cfg.rope_theta)

    early_exit_activations = None                                     # emulates the forward hook
    for idx, lp in enumerate(params["layers"]):
        x = decoder_layer(x, lp, cos, sin, rot, cfg)
        if idx == cfg.early_exit_idx:
            early_exit_activations = x
    assert early_exit_activations is not None

    # early-exit path: shared final RMSNorm fused with the new lm_head projection
    logits = fused_norm_matmul(early_exit_activations, params["final_norm"],
                               params["new_lm_head"], cfg.rms_eps)

    def og_logits_fn():
        # og path: LlamaModel's final norm fused with the original lm_head projection
        return fused_norm_matmul(x, params["final_norm"],
                                 params["og_lm_head"], cfg.rms_eps)

    loss = None
    og_lm_logits = None
    if loss_type == "cross_entropy":
        assert labels is not None
        V = logits.shape[-1]
        lflat = labels.reshape(-1)
        logp = jax.nn.log_softmax(logits.reshape(-1, V), axis=-1)
        valid = lflat != -100                                         # F.cross_entropy ignore_index=-100
        safe = jnp.where(valid, lflat, 0)
        nll = -jnp.take_along_axis(logp, safe[:, None], axis=-1)[:, 0]
        loss = jnp.sum(jnp.where(valid, nll, 0.0)) / jnp.maximum(jnp.sum(valid), 1)
    elif loss_type == "kl_divergence":
        og_lm_logits = og_logits_fn()
        og_lp = jax.nn.log_softmax(og_lm_logits, axis=-1)
        new_lp = jax.nn.log_softmax(logits, axis=-1)
        # nn.KLDivLoss(log_target=True, reduction='batchmean') on the *unflattened*
        # (B, T, V) tensors (as in the reference): sum / input.size(0) == sum / B.
        loss = jnp.sum(jnp.exp(og_lp) * (og_lp - new_lp)) / logits.shape[0]
    if keep_og_logits and og_lm_logits is None:
        og_lm_logits = og_logits_fn()

    return {
        "loss": loss,
        "logits": logits,
        "og_lm_logits": og_lm_logits if keep_og_logits else None,
    }


# ---------------------------------- main -----------------------------------

if __name__ == "__main__":
    key = jax.random.PRNGKey(0)
    pkey, dkey, lkey = jax.random.split(key, 3)

    params = init_params(pkey, CFG)

    B, T = 2, 8
    input_ids = jax.random.randint(dkey, (B, T), 0, CFG.vocab_size, dtype=jnp.int32)
    labels = jax.random.randint(lkey, (B, T), 0, CFG.vocab_size, dtype=jnp.int32)

    fwd_kl = jax.jit(partial(truncated_llama_forward, loss_type="kl_divergence",
                             keep_og_logits=True))
    fwd_ce = jax.jit(partial(truncated_llama_forward, loss_type="cross_entropy"))

    out_kl = fwd_kl(params, input_ids)
    out_ce = fwd_ce(params, input_ids, labels=labels)

    jax.block_until_ready(out_kl["logits"])
    jax.block_until_ready(out_kl["og_lm_logits"])
    jax.block_until_ready(out_kl["loss"])
    jax.block_until_ready(out_ce["loss"])

    assert out_kl["logits"].shape == (B, T, CFG.vocab_size)
    assert out_kl["og_lm_logits"].shape == (B, T, CFG.vocab_size)
    assert bool(jnp.isfinite(out_kl["loss"])) and bool(jnp.isfinite(out_ce["loss"]))

    print("KERNEL_OK")
</pallas_src>

<mosaic_0001>
module attributes {stable_mosaic.version = 11 : i64} {
  func.func @_norm_matmul_kernel(%arg0: i32, %arg1: i32, %arg2: memref<16x32xf32, #tpu.memory_space<vmem>>, %arg3: memref<1x32xf32, #tpu.memory_space<vmem>>, %arg4: memref<96x32xf32, #tpu.memory_space<vmem>>, %arg5: memref<16x96xf32, #tpu.memory_space<vmem>>) attributes {dimension_semantics = [#tpu.dimension_semantics<parallel>, #tpu.dimension_semantics<parallel>], iteration_bounds = array<i64: 1, 1>, scalar_prefetch = 0 : i64, scratch_operands = 0 : i64, tpu.core_type = #tpu.core_type<tc>, window_params = [{transform_indices = @transform_0, window_bounds = array<i64: 16, 32>}, {pipeline_mode = #tpu.pipeline_mode<synchronous>, transform_indices = @transform_1, window_bounds = array<i64: 1, 32>}, {transform_indices = @transform_2, window_bounds = array<i64: 96, 32>}, {transform_indices = @transform_3, window_bounds = array<i64: 16, 96>}]} {
    %c0 = arith.constant 0 : index
    %c0_0 = arith.constant 0 : index
    %0 = vector.load %arg2[%c0, %c0_0] : memref<16x32xf32, #tpu.memory_space<vmem>>, vector<16x32xf32>
    %1 = arith.mulf %0, %0 : vector<16x32xf32>
    %cst = arith.constant dense<0.000000e+00> : vector<16xf32>
    %2 = vector.multi_reduction <add>, %1, %cst [1] : vector<16x32xf32> to vector<16xf32>
    %3 = vector.shape_cast %2 : vector<16xf32> to vector<16x1xf32>
    %cst_1 = arith.constant 3.200000e+01 : f32
    %4 = vector.broadcast %cst_1 : f32 to vector<16x1xf32>
    %5 = arith.divf %3, %4 : vector<16x1xf32>
    %cst_2 = arith.constant 9.99999997E-7 : f32
    %6 = vector.broadcast %cst_2 : f32 to vector<16x1xf32>
    %7 = arith.addf %5, %6 : vector<16x1xf32>
    %8 = math.rsqrt %7 : vector<16x1xf32>
    %9 = vector.broadcast %8 : vector<16x1xf32> to vector<16x32xf32>
    %10 = arith.mulf %0, %9 : vector<16x32xf32>
    %c0_3 = arith.constant 0 : index
    %c0_4 = arith.constant 0 : index
    %11 = vector.load %arg3[%c0_3, %c0_4] : memref<1x32xf32, #tpu.memory_space<vmem>>, vector<1x32xf32>
    %12 = vector.broadcast %11 : vector<1x32xf32> to vector<16x32xf32>
    %13 = arith.mulf %10, %12 : vector<16x32xf32>
    %c0_5 = arith.constant 0 : index
    %c0_6 = arith.constant 0 : index
    %14 = vector.load %arg4[%c0_5, %c0_6] : memref<96x32xf32, #tpu.memory_space<vmem>>, vector<96x32xf32>
    %cst_7 = arith.constant dense<0.000000e+00> : vector<16x96xf32>
    %15 = tpu.matmul %13, %14, %cst_7 {dimension_numbers = #tpu.dot_dimension_numbers<[1], [1], [0], [0], [0, 0, 1, 0], [], []>} : vector<16x32xf32>, vector<96x32xf32>, vector<16x96xf32> -> vector<16x96xf32>
    %c0_8 = arith.constant 0 : index
    %c0_9 = arith.constant 0 : index
    %16 = vector.load %arg5[%c0_8, %c0_9] : memref<16x96xf32, #tpu.memory_space<vmem>>, vector<16x96xf32>
    tpu.vector_store %arg5[%c0_8, %c0_9], %15 {strides = array<i32>} : memref<16x96xf32, #tpu.memory_space<vmem>>, vector<16x96xf32>,
    return
  }
  func.func @transform_0(%arg0: i32, %arg1: i32) -> (i32, i32) {
    %c0_i32 = arith.constant 0 : i32
    %c0_i32_0 = arith.constant 0 : i32
    return %arg0, %c0_i32 : i32, i32
  }
  func.func @transform_1(%arg0: i32, %arg1: i32) -> (i32, i32) {
    %c0_i32 = arith.constant 0 : i32
    %c0_i32_0 = arith.constant 0 : i32
    %c0_i32_1 = arith.constant 0 : i32
    return %c0_i32, %c0_i32_0 : i32, i32
  }
  func.func @transform_2(%arg0: i32, %arg1: i32) -> (i32, i32) {
    %c0_i32 = arith.constant 0 : i32
    %c0_i32_0 = arith.constant 0 : i32
    return %arg1, %c0_i32 : i32, i32
  }
  func.func @transform_3(%arg0: i32, %arg1: i32) -> (i32, i32) {
    %c0_i32 = arith.constant 0 : i32
    return %arg0, %arg1 : i32, i32
  }
}

module attributes {stable_mosaic.version = 11 : i64} {
  func.func @_matmul_residual_kernel(%arg0: i32, %arg1: memref<16x32xf32, #tpu.memory_space<vmem>>, %arg2: memref<32x32xf32, #tpu.memory_space<vmem>>, %arg3: memref<16x32xf32, #tpu.memory_space<vmem>>, %arg4: memref<16x32xf32, #tpu.memory_space<vmem>>) attributes {dimension_semantics = [#tpu.dimension_semantics<parallel>], iteration_bounds = array<i64: 1>, scalar_prefetch = 0 : i64, scratch_operands = 0 : i64, tpu.core_type = #tpu.core_type<tc>, window_params = [{transform_indices = @transform_0, window_bounds = array<i64: 16, 32>}, {pipeline_mode = #tpu.pipeline_mode<synchronous>, transform_indices = @transform_1, window_bounds = array<i64: 32, 32>}, {transform_indices = @transform_2, window_bounds = array<i64: 16, 32>}, {transform_indices = @transform_3, window_bounds = array<i64: 16, 32>}]} {
    %c0 = arith.constant 0 : index
    %c0_0 = arith.constant 0 : index
    %0 = vector.load %arg3[%c0, %c0_0] : memref<16x32xf32, #tpu.memory_space<vmem>>, vector<16x32xf32>
    %c0_1 = arith.constant 0 : index
    %c0_2 = arith.constant 0 : index
    %1 = vector.load %arg1[%c0_1, %c0_2] : memref<16x32xf32, #tpu.memory_space<vmem>>, vector<16x32xf32>
    %c0_3 = arith.constant 0 : index
    %c0_4 = arith.constant 0 : index
    %2 = vector.load %arg2[%c0_3, %c0_4] : memref<32x32xf32, #tpu.memory_space<vmem>>, vector<32x32xf32>
    %cst = arith.constant dense<0.000000e+00> : vector<16x32xf32>
    %3 = tpu.matmul %1, %2, %cst {dimension_numbers = #tpu.dot_dimension_numbers<[1], [1], [0], [0], [0, 0, 1, 0], [], []>} : vector<16x32xf32>, vector<32x32xf32>, vector<16x32xf32> -> vector<16x32xf32>
    %4 = arith.addf %0, %3 : vector<16x32xf32>
    %c0_5 = arith.constant 0 : index
    %c0_6 = arith.constant 0 : index
    %5 = vector.load %arg4[%c0_5, %c0_6] : memref<16x32xf32, #tpu.memory_space<vmem>>, vector<16x32xf32>
    tpu.vector_store %arg4[%c0_5, %c0_6], %4 {strides = array<i32>} : memref<16x32xf32, #tpu.memory_space<vmem>>, vector<16x32xf32>,
    return
  }
  func.func @transform_0(%arg0: i32) -> (i32, i32) {
    %c0_i32 = arith.constant 0 : i32
    %c0_i32_0 = arith.constant 0 : i32
    return %arg0, %c0_i32 : i32, i32
  }
  func.func @transform_1(%arg0: i32) -> (i32, i32) {
    %c0_i32 = arith.constant 0 : i32
    %c0_i32_0 = arith.constant 0 : i32
    %c0_i32_1 = arith.constant 0 : i32
    return %c0_i32, %c0_i32_0 : i32, i32
  }
  func.func @transform_2(%arg0: i32) -> (i32, i32) {
    %c0_i32 = arith.constant 0 : i32
    %c0_i32_0 = arith.constant 0 : i32
    return %arg0, %c0_i32 : i32, i32
  }
  func.func @transform_3(%arg0: i32) -> (i32, i32) {
    %c0_i32 = arith.constant 0 : i32
    %c0_i32_0 = arith.constant 0 : i32
    return %arg0, %c0_i32 : i32, i32
  }
}

module attributes {stable_mosaic.version = 11 : i64} {
  func.func @_attn_kernel(%arg0: i32, %arg1: memref<2x8x96xf32, #tpu.memory_space<vmem>>, %arg2: memref<8x8xf32, #tpu.memory_space<vmem>>, %arg3: memref<8x8xf32, #tpu.memory_space<vmem>>, %arg4: memref<8x8xf32, #tpu.memory_space<vmem>>, %arg5: memref<2x8x32xf32, #tpu.memory_space<vmem>>) attributes {dimension_semantics = [#tpu.dimension_semantics<arbitrary>], iteration_bounds = array<i64: 1>, scalar_prefetch = 0 : i64, scratch_operands = 0 : i64, tpu.core_type = #tpu.core_type<tc>, window_params = [{pipeline_mode = #tpu.pipeline_mode<synchronous>, transform_indices = @transform_0, window_bounds = array<i64: 2, 8, 96>}, {pipeline_mode = #tpu.pipeline_mode<synchronous>, transform_indices = @transform_1, window_bounds = array<i64: 8, 8>}, {pipeline_mode = #tpu.pipeline_mode<synchronous>, transform_indices = @transform_2, window_bounds = array<i64: 8, 8>}, {pipeline_mode = #tpu.pipeline_mode<synchronous>, transform_indices = @transform_3, window_bounds = array<i64: 8, 8>}, {pipeline_mode = #tpu.pipeline_mode<synchronous>, transform_indices = @transform_4, window_bounds = array<i64: 2, 8, 32>}]} {
    %c0 = arith.constant 0 : index
    %c0_0 = arith.constant 0 : index
    %0 = vector.load %arg2[%c0, %c0_0] : memref<8x8xf32, #tpu.memory_space<vmem>>, vector<8x8xf32>
    %1 = vector.shape_cast %0 : vector<8x8xf32> to vector<1x8x8xf32>
    %c0_1 = arith.constant 0 : index
    %c0_2 = arith.constant 0 : index
    %2 = vector.load %arg3[%c0_1, %c0_2] : memref<8x8xf32, #tpu.memory_space<vmem>>, vector<8x8xf32>
    %3 = vector.shape_cast %2 : vector<8x8xf32> to vector<1x8x8xf32>
    %c0_3 = arith.constant 0 : index
    %c0_4 = arith.constant 0 : index
    %4 = vector.load %arg4[%c0_3, %c0_4] : memref<8x8xf32, #tpu.memory_space<vmem>>, vector<8x8xf32>
    %5 = tpu.iota {dimensions = array<i32: 0>} : vector<8x8xi32>
    %6 = tpu.iota {dimensions = array<i32: 1>} : vector<8x8xi32>
    %7 = arith.cmpi sle, %6, %5 : vector<8x8xi32>
    %8 = vector.shape_cast %7 : vector<8x8xi1> to vector<1x8x8xi1>
    %c0_5 = arith.constant 0 : index
    %c0_6 = arith.constant 0 : index
    %c0_7 = arith.constant 0 : index
    %9 = vector.load %arg1[%c0_5, %c0_6, %c0_7] : memref<2x8x96xf32, #tpu.memory_space<vmem>>, vector<2x8x8xf32>
    %c0_8 = arith.constant 0 : index
    %c0_9 = arith.constant 0 : index
    %c32 = arith.constant 32 : index
    %10 = vector.load %arg1[%c0_8, %c0_9, %c32] : memref<2x8x96xf32, #tpu.memory_space<vmem>>, vector<2x8x8xf32>
    %c0_10 = arith.constant 0 : index
    %c0_11 = arith.constant 0 : index
    %c64 = arith.constant 64 : index
    %11 = vector.load %arg1[%c0_10, %c0_11, %c64] : memref<2x8x96xf32, #tpu.memory_space<vmem>>, vector<2x8x8xf32>
    %12 = vector.broadcast %1 : vector<1x8x8xf32> to vector<2x8x8xf32>
    %13 = arith.mulf %9, %12 : vector<2x8x8xf32>
    %cst = arith.constant dense<0.000000e+00> : vector<2x8x8xf32>
    %14 = tpu.matmul %9, %4, %cst {dimension_numbers = #tpu.dot_dimension_numbers<[2], [0], [0, 1], [1], [0, 0, 0, 1, 1, 1], [], []>} : vector<2x8x8xf32>, vector<8x8xf32>, vector<2x8x8xf32> -> vector<2x8x8xf32>
    %15 = vector.broadcast %3 : vector<1x8x8xf32> to vector<2x8x8xf32>
    %16 = arith.mulf %14, %15 : vector<2x8x8xf32>
    %17 = arith.addf %13, %16 : vector<2x8x8xf32>
    %18 = vector.broadcast %1 : vector<1x8x8xf32> to vector<2x8x8xf32>
    %19 = arith.mulf %10, %18 : vector<2x8x8xf32>
    %cst_12 = arith.constant dense<0.000000e+00> : vector<2x8x8xf32>
    %20 = tpu.matmul %10, %4, %cst_12 {dimension_numbers = #tpu.dot_dimension_numbers<[2], [0], [0, 1], [1], [0, 0, 0, 1, 1, 1], [], []>} : vector<2x8x8xf32>, vector<8x8xf32>, vector<2x8x8xf32> -> vector<2x8x8xf32>
    %21 = vector.broadcast %3 : vector<1x8x8xf32> to vector<2x8x8xf32>
    %22 = arith.mulf %20, %21 : vector<2x8x8xf32>
    %23 = arith.addf %19, %22 : vector<2x8x8xf32>
    %cst_13 = arith.constant dense<0.000000e+00> : vector<2x8x8xf32>
    %24 = tpu.matmul %17, %23, %cst_13 {dimension_numbers = #tpu.dot_dimension_numbers<[2], [2], [1], [1], [0, 0, 0, 1, 1, 1], [0], [0]>} : vector<2x8x8xf32>, vector<2x8x8xf32>, vector<2x8x8xf32> -> vector<2x8x8xf32>
    %cst_14 = arith.constant 0.353553385 : f32
    %25 = vector.broadcast %cst_14 : f32 to vector<2x8x8xf32>
    %26 = arith.mulf %24, %25 : vector<2x8x8xf32>
    %cst_15 = arith.constant -3.40282347E+38 : f32
    %27 = vector.shape_cast %8 : vector<1x8x8xi1> to vector<1x8x8xi1>
    %28 = vector.broadcast %27 : vector<1x8x8xi1> to vector<2x8x8xi1>
    %29 = vector.broadcast %cst_15 : f32 to vector<2x8x8xf32>
    %30 = arith.select %28, %26, %29 : vector<2x8x8xi1>, vector<2x8x8xf32>
    %cst_16 = arith.constant dense<0xFF800000> : vector<2x8xf32>
    %31 = vector.multi_reduction <maximumf>, %30, %cst_16 [2] : vector<2x8x8xf32> to vector<2x8xf32>
    %32 = vector.shape_cast %31 : vector<2x8xf32> to vector<2x8x1xf32>
    %33 = vector.broadcast %32 : vector<2x8x1xf32> to vector<2x8x8xf32>
    %34 = arith.subf %30, %33 : vector<2x8x8xf32>
    %35 = math.exp %34 : vector<2x8x8xf32>
    %cst_17 = arith.constant dense<0.000000e+00> : vector<2x8xf32>
    %36 = vector.multi_reduction <add>, %35, %cst_17 [2] : vector<2x8x8xf32> to vector<2x8xf32>
    %37 = vector.shape_cast %36 : vector<2x8xf32> to vector<2x8x1xf32>
    %38 = tpu.reciprocal %37 {approx = true} : vector<2x8x1xf32> -> vector<2x8x1xf32>
    %39 = vector.broadcast %38 : vector<2x8x1xf32> to vector<2x8x8xf32>
    %40 = arith.mulf %35, %39 : vector<2x8x8xf32>
    %cst_18 = arith.constant dense<0.000000e+00> : vector<2x8x8xf32>
    %41 = tpu.matmul %40, %11, %cst_18 {dimension_numbers = #tpu.dot_dimension_numbers<[2], [1], [1], [2], [0, 0, 0, 1, 1, 2], [0], [0]>} : vector<2x8x8xf32>, vector<2x8x8xf32>, vector<2x8x8xf32> -> vector<2x8x8xf32>
    %c0_19 = arith.constant 0 : index
    %c0_20 = arith.constant 0 : index
    %c0_21 = arith.constant 0 : index
    %42 = vector.load %arg5[%c0_19, %c0_20, %c0_21] : memref<2x8x32xf32, #tpu.memory_space<vmem>>, vector<2x8x8xf32>
    tpu.vector_store %arg5[%c0_19, %c0_20, %c0_21], %41 {strides = array<i32>} : memref<2x8x32xf32, #tpu.memory_space<vmem>>, vector<2x8x8xf32>,
    %c0_22 = arith.constant 0 : index
    %c0_23 = arith.constant 0 : index
    %c8 = arith.constant 8 : index
    %43 = vector.load %arg1[%c0_22, %c0_23, %c8] : memref<2x8x96xf32, #tpu.memory_space<vmem>>, vector<2x8x8xf32>
    %c0_24 = arith.constant 0 : index
    %c0_25 = arith.constant 0 : index
    %c40 = arith.constant 40 : index
    %44 = vector.load %arg1[%c0_24, %c0_25, %c40] : memref<2x8x96xf32, #tpu.memory_space<vmem>>, vector<2x8x8xf32>
    %c0_26 = arith.constant 0 : index
    %c0_27 = arith.constant 0 : index
    %c72 = arith.constant 72 : index
    %45 = vector.load %arg1[%c0_26, %c0_27, %c72] : memref<2x8x96xf32, #tpu.memory_space<vmem>>, vector<2x8x8xf32>
    %46 = vector.broadcast %1 : vector<1x8x8xf32> to vector<2x8x8xf32>
    %47 = arith.mulf %43, %46 : vector<2x8x8xf32>
    %cst_28 = arith.constant dense<0.000000e+00> : vector<2x8x8xf32>
    %48 = tpu.matmul %43, %4, %cst_28 {dimension_numbers = #tpu.dot_dimension_numbers<[2], [0], [0, 1], [1], [0, 0, 0, 1, 1, 1], [], []>} : vector<2x8x8xf32>, vector<8x8xf32>, vector<2x8x8xf32> -> vector<2x8x8xf32>
    %49 = vector.broadcast %3 : vector<1x8x8xf32> to vector<2x8x8xf32>
    %50 = arith.mulf %48, %49 : vector<2x8x8xf32>
    %51 = arith.addf %47, %50 : vector<2x8x8xf32>
    %52 = vector.broadcast %1 : vector<1x8x8xf32> to vector<2x8x8xf32>
    %53 = arith.mulf %44, %52 : vector<2x8x8xf32>
    %cst_29 = arith.constant dense<0.000000e+00> : vector<2x8x8xf32>
    %54 = tpu.matmul %44, %4, %cst_29 {dimension_numbers = #tpu.dot_dimension_numbers<[2], [0], [0, 1], [1], [0, 0, 0, 1, 1, 1], [], []>} : vector<2x8x8xf32>, vector<8x8xf32>, vector<2x8x8xf32> -> vector<2x8x8xf32>
    %55 = vector.broadcast %3 : vector<1x8x8xf32> to vector<2x8x8xf32>
    %56 = arith.mulf %54, %55 : vector<2x8x8xf32>
    %57 = arith.addf %53, %56 : vector<2x8x8xf32>
    %cst_30 = arith.constant dense<0.000000e+00> : vector<2x8x8xf32>
    %58 = tpu.matmul %51, %57, %cst_30 {dimension_numbers = #tpu.dot_dimension_numbers<[2], [2], [1], [1], [0, 0, 0, 1, 1, 1], [0], [0]>} : vector<2x8x8xf32>, vector<2x8x8xf32>, vector<2x8x8xf32> -> vector<2x8x8xf32>
    %cst_31 = arith.constant 0.353553385 : f32
    %59 = vector.broadcast %cst_31 : f32 to vector<2x8x8xf32>
    %60 = arith.mulf %58, %59 : vector<2x8x8xf32>
    %cst_32 = arith.constant -3.40282347E+38 : f32
    %61 = vector.shape_cast %8 : vector<1x8x8xi1> to vector<1x8x8xi1>
    %62 = vector.broadcast %61 : vector<1x8x8xi1> to vector<2x8x8xi1>
    %63 = vector.broadcast %cst_32 : f32 to vector<2x8x8xf32>
    %64 = arith.select %62, %60, %63 : vector<2x8x8xi1>, vector<2x8x8xf32>
    %cst_33 = arith.constant dense<0xFF800000> : vector<2x8xf32>
    %65 = vector.multi_reduction <maximumf>, %64, %cst_33 [2] : vector<2x8x8xf32> to vector<2x8xf32>
    %66 = vector.shape_cast %65 : vector<2x8xf32> to vector<2x8x1xf32>
    %67 = vector.broadcast %66 : vector<2x8x1xf32> to vector<2x8x8xf32>
    %68 = arith.subf %64, %67 : vector<2x8x8xf32>
    %69 = math.exp %68 : vector<2x8x8xf32>
    %cst_34 = arith.constant dense<0.000000e+00> : vector<2x8xf32>
    %70 = vector.multi_reduction <add>, %69, %cst_34 [2] : vector<2x8x8xf32> to vector<2x8xf32>
    %71 = vector.shape_cast %70 : vector<2x8xf32> to vector<2x8x1xf32>
    %72 = tpu.reciprocal %71 {approx = true} : vector<2x8x1xf32> -> vector<2x8x1xf32>
    %73 = vector.broadcast %72 : vector<2x8x1xf32> to vector<2x8x8xf32>
    %74 = arith.mulf %69, %73 : vector<2x8x8xf32>
    %cst_35 = arith.constant dense<0.000000e+00> : vector<2x8x8xf32>
    %75 = tpu.matmul %74, %45, %cst_35 {dimension_numbers = #tpu.dot_dimension_numbers<[2], [1], [1], [2], [0, 0, 0, 1, 1, 2], [0], [0]>} : vector<2x8x8xf32>, vector<2x8x8xf32>, vector<2x8x8xf32> -> vector<2x8x8xf32>
    %c0_36 = arith.constant 0 : index
    %c0_37 = arith.constant 0 : index
    %c8_38 = arith.constant 8 : index
    %76 = vector.load %arg5[%c0_36, %c0_37, %c8_38] : memref<2x8x32xf32, #tpu.memory_space<vmem>>, vector<2x8x8xf32>
    tpu.vector_store %arg5[%c0_36, %c0_37, %c8_38], %75 {strides = array<i32>} : memref<2x8x32xf32, #tpu.memory_space<vmem>>, vector<2x8x8xf32>,
    %c0_39 = arith.constant 0 : index
    %c0_40 = arith.constant 0 : index
    %c16 = arith.constant 16 : index
    %77 = vector.load %arg1[%c0_39, %c0_40, %c16] : memref<2x8x96xf32, #tpu.memory_space<vmem>>, vector<2x8x8xf32>
    %c0_41 = arith.constant 0 : index
    %c0_42 = arith.constant 0 : index
    %c48 = arith.constant 48 : index
    %78 = vector.load %arg1[%c0_41, %c0_42, %c48] : memref<2x8x96xf32, #tpu.memory_space<vmem>>, vector<2x8x8xf32>
    %c0_43 = arith.constant 0 : index
    %c0_44 = arith.constant 0 : index
    %c80 = arith.constant 80 : index
    %79 = vector.load %arg1[%c0_43, %c0_44, %c80] : memref<2x8x96xf32, #tpu.memory_space<vmem>>, vector<2x8x8xf32>
    %80 = vector.broadcast %1 : vector<1x8x8xf32> to vector<2x8x8xf32>
    %81 = arith.mulf %77, %80 : vector<2x8x8xf32>
    %cst_45 = arith.constant dense<0.000000e+00> : vector<2x8x8xf32>
    %82 = tpu.matmul %77, %4, %cst_45 {dimension_numbers = #tpu.dot_dimension_numbers<[2], [0], [0, 1], [1], [0, 0, 0, 1, 1, 1], [], []>} : vector<2x8x8xf32>, vector<8x8xf32>, vector<2x8x8xf32> -> vector<2x8x8xf32>
    %83 = vector.broadcast %3 : vector<1x8x8xf32> to vector<2x8x8xf32>
    %84 = arith.mulf %82, %83 : vector<2x8x8xf32>
    %85 = arith.addf %81, %84 : vector<2x8x8xf32>
    %86 = vector.broadcast %1 : vector<1x8x8xf32> to vector<2x8x8xf32>
    %87 = arith.mulf %78, %86 : vector<2x8x8xf32>
    %cst_46 = arith.constant dense<0.000000e+00> : vector<2x8x8xf32>
    %88 = tpu.matmul %78, %4, %cst_46 {dimension_numbers = #tpu.dot_dimension_numbers<[2], [0], [0, 1], [1], [0, 0, 0, 1, 1, 1], [], []>} : vector<2x8x8xf32>, vector<8x8xf32>, vector<2x8x8xf32> -> vector<2x8x8xf32>
    %89 = vector.broadcast %3 : vector<1x8x8xf32> to vector<2x8x8xf32>
    %90 = arith.mulf %88, %89 : vector<2x8x8xf32>
    %91 = arith.addf %87, %90 : vector<2x8x8xf32>
    %cst_47 = arith.constant dense<0.000000e+00> : vector<2x8x8xf32>
    %92 = tpu.matmul %85, %91, %cst_47 {dimension_numbers = #tpu.dot_dimension_numbers<[2], [2], [1], [1], [0, 0, 0, 1, 1, 1], [0], [0]>} : vector<2x8x8xf32>, vector<2x8x8xf32>, vector<2x8x8xf32> -> vector<2x8x8xf32>
    %cst_48 = arith.constant 0.353553385 : f32
    %93 = vector.broadcast %cst_48 : f32 to vector<2x8x8xf32>
    %94 = arith.mulf %92, %93 : vector<2x8x8xf32>
    %cst_49 = arith.constant -3.40282347E+38 : f32
    %95 = vector.shape_cast %8 : vector<1x8x8xi1> to vector<1x8x8xi1>
    %96 = vector.broadcast %95 : vector<1x8x8xi1> to vector<2x8x8xi1>
    %97 = vector.broadcast %cst_49 : f32 to vector<2x8x8xf32>
    %98 = arith.select %96, %94, %97 : vector<2x8x8xi1>, vector<2x8x8xf32>
    %cst_50 = arith.constant dense<0xFF800000> : vector<2x8xf32>
    %99 = vector.multi_reduction <maximumf>, %98, %cst_50 [2] : vector<2x8x8xf32> to vector<2x8xf32>
    %100 = vector.shape_cast %99 : vector<2x8xf32> to vector<2x8x1xf32>
    %101 = vector.broadcast %100 : vector<2x8x1xf32> to vector<2x8x8xf32>
    %102 = arith.subf %98, %101 : vector<2x8x8xf32>
    %103 = math.exp %102 : vector<2x8x8xf32>
    %cst_51 = arith.constant dense<0.000000e+00> : vector<2x8xf32>
    %104 = vector.multi_reduction <add>, %103, %cst_51 [2] : vector<2x8x8xf32> to vector<2x8xf32>
    %105 = vector.shape_cast %104 : vector<2x8xf32> to vector<2x8x1xf32>
    %106 = tpu.reciprocal %105 {approx = true} : vector<2x8x1xf32> -> vector<2x8x1xf32>
    %107 = vector.broadcast %106 : vector<2x8x1xf32> to vector<2x8x8xf32>
    %108 = arith.mulf %103, %107 : vector<2x8x8xf32>
    %cst_52 = arith.constant dense<0.000000e+00> : vector<2x8x8xf32>
    %109 = tpu.matmul %108, %79, %cst_52 {dimension_numbers = #tpu.dot_dimension_numbers<[2], [1], [1], [2], [0, 0, 0, 1, 1, 2], [0], [0]>} : vector<2x8x8xf32>, vector<2x8x8xf32>, vector<2x8x8xf32> -> vector<2x8x8xf32>
    %c0_53 = arith.constant 0 : index
    %c0_54 = arith.constant 0 : index
    %c16_55 = arith.constant 16 : index
    %110 = vector.load %arg5[%c0_53, %c0_54, %c16_55] : memref<2x8x32xf32, #tpu.memory_space<vmem>>, vector<2x8x8xf32>
    tpu.vector_store %arg5[%c0_53, %c0_54, %c16_55], %109 {strides = array<i32>} : memref<2x8x32xf32, #tpu.memory_space<vmem>>, vector<2x8x8xf32>,
    %c0_56 = arith.constant 0 : index
    %c0_57 = arith.constant 0 : index
    %c24 = arith.constant 24 : index
    %111 = vector.load %arg1[%c0_56, %c0_57, %c24] : memref<2x8x96xf32, #tpu.memory_space<vmem>>, vector<2x8x8xf32>
    %c0_58 = arith.constant 0 : index
    %c0_59 = arith.constant 0 : index
    %c56 = arith.constant 56 : index
    %112 = vector.load %arg1[%c0_58, %c0_59, %c56] : memref<2x8x96xf32, #tpu.memory_space<vmem>>, vector<2x8x8xf32>
    %c0_60 = arith.constant 0 : index
    %c0_61 = arith.constant 0 : index
    %c88 = arith.constant 88 : index
    %113 = vector.load %arg1[%c0_60, %c0_61, %c88] : memref<2x8x96xf32, #tpu.memory_space<vmem>>, vector<2x8x8xf32>
    %114 = vector.broadcast %1 : vector<1x8x8xf32> to vector<2x8x8xf32>
    %115 = arith.mulf %111, %114 : vector<2x8x8xf32>
    %cst_62 = arith.constant dense<0.000000e+00> : vector<2x8x8xf32>
    %116 = tpu.matmul %111, %4, %cst_62 {dimension_numbers = #tpu.dot_dimension_numbers<[2], [0], [0, 1], [1], [0, 0, 0, 1, 1, 1], [], []>} : vector<2x8x8xf32>, vector<8x8xf32>, vector<2x8x8xf32> -> vector<2x8x8xf32>
    %117 = vector.broadcast %3 : vector<1x8x8xf32> to vector<2x8x8xf32>
    %118 = arith.mulf %116, %117 : vector<2x8x8xf32>
    %119 = arith.addf %115, %118 : vector<2x8x8xf32>
    %120 = vector.broadcast %1 : vector<1x8x8xf32> to vector<2x8x8xf32>
    %121 = arith.mulf %112, %120 : vector<2x8x8xf32>
    %cst_63 = arith.constant dense<0.000000e+00> : vector<2x8x8xf32>
    %122 = tpu.matmul %112, %4, %cst_63 {dimension_numbers = #tpu.dot_dimension_numbers<[2], [0], [0, 1], [1], [0, 0, 0, 1, 1, 1], [], []>} : vector<2x8x8xf32>, vector<8x8xf32>, vector<2x8x8xf32> -> vector<2x8x8xf32>
    %123 = vector.broadcast %3 : vector<1x8x8xf32> to vector<2x8x8xf32>
    %124 = arith.mulf %122, %123 : vector<2x8x8xf32>
    %125 = arith.addf %121, %124 : vector<2x8x8xf32>
    %cst_64 = arith.constant dense<0.000000e+00> : vector<2x8x8xf32>
    %126 = tpu.matmul %119, %125, %cst_64 {dimension_numbers = #tpu.dot_dimension_numbers<[2], [2], [1], [1], [0, 0, 0, 1, 1, 1], [0], [0]>} : vector<2x8x8xf32>, vector<2x8x8xf32>, vector<2x8x8xf32> -> vector<2x8x8xf32>
    %cst_65 = arith.constant 0.353553385 : f32
    %127 = vector.broadcast %cst_65 : f32 to vector<2x8x8xf32>
    %128 = arith.mulf %126, %127 : vector<2x8x8xf32>
    %cst_66 = arith.constant -3.40282347E+38 : f32
    %129 = vector.shape_cast %8 : vector<1x8x8xi1> to vector<1x8x8xi1>
    %130 = vector.broadcast %129 : vector<1x8x8xi1> to vector<2x8x8xi1>
    %131 = vector.broadcast %cst_66 : f32 to vector<2x8x8xf32>
    %132 = arith.select %130, %128, %131 : vector<2x8x8xi1>, vector<2x8x8xf32>
    %cst_67 = arith.constant dense<0xFF800000> : vector<2x8xf32>
    %133 = vector.multi_reduction <maximumf>, %132, %cst_67 [2] : vector<2x8x8xf32> to vector<2x8xf32>
    %134 = vector.shape_cast %133 : vector<2x8xf32> to vector<2x8x1xf32>
    %135 = vector.broadcast %134 : vector<2x8x1xf32> to vector<2x8x8xf32>
    %136 = arith.subf %132, %135 : vector<2x8x8xf32>
    %137 = math.exp %136 : vector<2x8x8xf32>
    %cst_68 = arith.constant dense<0.000000e+00> : vector<2x8xf32>
    %138 = vector.multi_reduction <add>, %137, %cst_68 [2] : vector<2x8x8xf32> to vector<2x8xf32>
    %139 = vector.shape_cast %138 : vector<2x8xf32> to vector<2x8x1xf32>
    %140 = tpu.reciprocal %139 {approx = true} : vector<2x8x1xf32> -> vector<2x8x1xf32>
    %141 = vector.broadcast %140 : vector<2x8x1xf32> to vector<2x8x8xf32>
    %142 = arith.mulf %137, %141 : vector<2x8x8xf32>
    %cst_69 = arith.constant dense<0.000000e+00> : vector<2x8x8xf32>
    %143 = tpu.matmul %142, %113, %cst_69 {dimension_numbers = #tpu.dot_dimension_numbers<[2], [1], [1], [2], [0, 0, 0, 1, 1, 2], [0], [0]>} : vector<2x8x8xf32>, vector<2x8x8xf32>, vector<2x8x8xf32> -> vector<2x8x8xf32>
    %c0_70 = arith.constant 0 : index
    %c0_71 = arith.constant 0 : index
    %c24_72 = arith.constant 24 : index
    %144 = vector.load %arg5[%c0_70, %c0_71, %c24_72] : memref<2x8x32xf32, #tpu.memory_space<vmem>>, vector<2x8x8xf32>
    tpu.vector_store %arg5[%c0_70, %c0_71, %c24_72], %143 {strides = array<i32>} : memref<2x8x32xf32, #tpu.memory_space<vmem>>, vector<2x8x8xf32>,
    return
  }
  func.func @transform_0(%arg0: i32) -> (i32, i32, i32) {
    %c0_i32 = arith.constant 0 : i32
    %c0_i32_0 = arith.constant 0 : i32
    %c0_i32_1 = arith.constant 0 : i32
    %c0_i32_2 = arith.constant 0 : i32
    return %c0_i32, %c0_i32_0, %c0_i32_1 : i32, i32, i32
  }
  func.func @transform_1(%arg0: i32) -> (i32, i32) {
    %c0_i32 = arith.constant 0 : i32
    %c0_i32_0 = arith.constant 0 : i32
    %c0_i32_1 = arith.constant 0 : i32
    return %c0_i32, %c0_i32_0 : i32, i32
  }
  func.func @transform_2(%arg0: i32) -> (i32, i32) {
    %c0_i32 = arith.constant 0 : i32
    %c0_i32_0 = arith.constant 0 : i32
    %c0_i32_1 = arith.constant 0 : i32
    return %c0_i32, %c0_i32_0 : i32, i32
  }
  func.func @transform_3(%arg0: i32) -> (i32, i32) {
    %c0_i32 = arith.constant 0 : i32
    %c0_i32_0 = arith.constant 0 : i32
    %c0_i32_1 = arith.constant 0 : i32
    return %c0_i32, %c0_i32_0 : i32, i32
  }
  func.func @transform_4(%arg0: i32) -> (i32, i32, i32) {
    %c0_i32 = arith.constant 0 : i32
    %c0_i32_0 = arith.constant 0 : i32
    %c0_i32_1 = arith.constant 0 : i32
    %c0_i32_2 = arith.constant 0 : i32
    return %c0_i32, %c0_i32_0, %c0_i32_1 : i32, i32, i32
  }
}

module attributes {stable_mosaic.version = 11 : i64} {
  func.func @_mlp_kernel(%arg0: i32, %arg1: memref<16x32xf32, #tpu.memory_space<vmem>>, %arg2: memref<1x32xf32, #tpu.memory_space<vmem>>, %arg3: memref<64x32xf32, #tpu.memory_space<vmem>>, %arg4: memref<64x32xf32, #tpu.memory_space<vmem>>, %arg5: memref<32x64xf32, #tpu.memory_space<vmem>>, %arg6: memref<16x32xf32, #tpu.memory_space<vmem>>) attributes {dimension_semantics = [#tpu.dimension_semantics<parallel>], iteration_bounds = array<i64: 1>, scalar_prefetch = 0 : i64, scratch_operands = 0 : i64, tpu.core_type = #tpu.core_type<tc>, window_params = [{transform_indices = @transform_0, window_bounds = array<i64: 16, 32>}, {pipeline_mode = #tpu.pipeline_mode<synchronous>, transform_indices = @transform_1, window_bounds = array<i64: 1, 32>}, {pipeline_mode = #tpu.pipeline_mode<synchronous>, transform_indices = @transform_2, window_bounds = array<i64: 64, 32>}, {pipeline_mode = #tpu.pipeline_mode<synchronous>, transform_indices = @transform_3, window_bounds = array<i64: 64, 32>}, {pipeline_mode = #tpu.pipeline_mode<synchronous>, transform_indices = @transform_4, window_bounds = array<i64: 32, 64>}, {transform_indices = @transform_5, window_bounds = array<i64: 16, 32>}]} {
    %c0 = arith.constant 0 : index
    %c0_0 = arith.constant 0 : index
    %0 = vector.load %arg1[%c0, %c0_0] : memref<16x32xf32, #tpu.memory_space<vmem>>, vector<16x32xf32>
    %1 = arith.mulf %0, %0 : vector<16x32xf32>
    %cst = arith.constant dense<0.000000e+00> : vector<16xf32>
    %2 = vector.multi_reduction <add>, %1, %cst [1] : vector<16x32xf32> to vector<16xf32>
    %3 = vector.shape_cast %2 : vector<16xf32> to vector<16x1xf32>
    %cst_1 = arith.constant 3.200000e+01 : f32
    %4 = vector.broadcast %cst_1 : f32 to vector<16x1xf32>
    %5 = arith.divf %3, %4 : vector<16x1xf32>
    %cst_2 = arith.constant 9.99999997E-7 : f32
    %6 = vector.broadcast %cst_2 : f32 to vector<16x1xf32>
    %7 = arith.addf %5, %6 : vector<16x1xf32>
    %8 = math.rsqrt %7 : vector<16x1xf32>
    %9 = vector.broadcast %8 : vector<16x1xf32> to vector<16x32xf32>
    %10 = arith.mulf %0, %9 : vector<16x32xf32>
    %c0_3 = arith.constant 0 : index
    %c0_4 = arith.constant 0 : index
    %11 = vector.load %arg2[%c0_3, %c0_4] : memref<1x32xf32, #tpu.memory_space<vmem>>, vector<1x32xf32>
    %12 = vector.broadcast %11 : vector<1x32xf32> to vector<16x32xf32>
    %13 = arith.mulf %10, %12 : vector<16x32xf32>
    %c0_5 = arith.constant 0 : index
    %c0_6 = arith.constant 0 : index
    %14 = vector.load %arg3[%c0_5, %c0_6] : memref<64x32xf32, #tpu.memory_space<vmem>>, vector<64x32xf32>
    %cst_7 = arith.constant dense<0.000000e+00> : vector<16x64xf32>
    %15 = tpu.matmul %13, %14, %cst_7 {dimension_numbers = #tpu.dot_dimension_numbers<[1], [1], [0], [0], [0, 0, 1, 0], [], []>} : vector<16x32xf32>, vector<64x32xf32>, vector<16x64xf32> -> vector<16x64xf32>
    %c0_8 = arith.constant 0 : index
    %c0_9 = arith.constant 0 : index
    %16 = vector.load %arg4[%c0_8, %c0_9] : memref<64x32xf32, #tpu.memory_space<vmem>>, vector<64x32xf32>
    %cst_10 = arith.constant dense<0.000000e+00> : vector<16x64xf32>
    %17 = tpu.matmul %13, %16, %cst_10 {dimension_numbers = #tpu.dot_dimension_numbers<[1], [1], [0], [0], [0, 0, 1, 0], [], []>} : vector<16x32xf32>, vector<64x32xf32>, vector<16x64xf32> -> vector<16x64xf32>
    %18 = arith.negf %15 : vector<16x64xf32>
    %19 = math.exp %18 : vector<16x64xf32>
    %cst_11 = arith.constant 1.000000e+00 : f32
    %20 = vector.broadcast %cst_11 : f32 to vector<16x64xf32>
    %21 = arith.addf %20, %19 : vector<16x64xf32>
    %22 = arith.divf %20, %21 : vector<16x64xf32>
    %23 = arith.mulf %15, %22 : vector<16x64xf32>
    %24 = arith.mulf %23, %17 : vector<16x64xf32>
    %c0_12 = arith.constant 0 : index
    %c0_13 = arith.constant 0 : index
    %25 = vector.load %arg5[%c0_12, %c0_13] : memref<32x64xf32, #tpu.memory_space<vmem>>, vector<32x64xf32>
    %cst_14 = arith.constant dense<0.000000e+00> : vector<16x32xf32>
    %26 = tpu.matmul %24, %25, %cst_14 {dimension_numbers = #tpu.dot_dimension_numbers<[1], [1], [0], [0], [0, 0, 1, 0], [], []>} : vector<16x64xf32>, vector<32x64xf32>, vector<16x32xf32> -> vector<16x32xf32>
    %27 = arith.addf %0, %26 : vector<16x32xf32>
    %c0_15 = arith.constant 0 : index
    %c0_16 = arith.constant 0 : index
    %28 = vector.load %arg6[%c0_15, %c0_16] : memref<16x32xf32, #tpu.memory_space<vmem>>, vector<16x32xf32>
    tpu.vector_store %arg6[%c0_15, %c0_16], %27 {strides = array<i32>} : memref<16x32xf32, #tpu.memory_space<vmem>>, vector<16x32xf32>,
    return
  }
  func.func @transform_0(%arg0: i32) -> (i32, i32) {
    %c0_i32 = arith.constant 0 : i32
    %c0_i32_0 = arith.constant 0 : i32
    return %arg0, %c0_i32 : i32, i32
  }
  func.func @transform_1(%arg0: i32) -> (i32, i32) {
    %c0_i32 = arith.constant 0 : i32
    %c0_i32_0 = arith.constant 0 : i32
    %c0_i32_1 = arith.constant 0 : i32
    return %c0_i32, %c0_i32_0 : i32, i32
  }
  func.func @transform_2(%arg0: i32) -> (i32, i32) {
    %c0_i32 = arith.constant 0 : i32
    %c0_i32_0 = arith.constant 0 : i32
    %c0_i32_1 = arith.constant 0 : i32
    return %c0_i32, %c0_i32_0 : i32, i32
  }
  func.func @transform_3(%arg0: i32) -> (i32, i32) {
    %c0_i32 = arith.constant 0 : i32
    %c0_i32_0 = arith.constant 0 : i32
    %c0_i32_1 = arith.constant 0 : i32
    return %c0_i32, %c0_i32_0 : i32, i32
  }
  func.func @transform_4(%arg0: i32) -> (i32, i32) {
    %c0_i32 = arith.constant 0 : i32
    %c0_i32_0 = arith.constant 0 : i32
    %c0_i32_1 = arith.constant 0 : i32
    return %c0_i32, %c0_i32_0 : i32, i32
  }
  func.func @transform_5(%arg0: i32) -> (i32, i32) {
    %c0_i32 = arith.constant 0 : i32
    %c0_i32_0 = arith.constant 0 : i32
    return %arg0, %c0_i32 : i32, i32
  }
}

module attributes {stable_mosaic.version = 11 : i64} {
  func.func @_norm_matmul_kernel(%arg0: i32, %arg1: i32, %arg2: memref<16x32xf32, #tpu.memory_space<vmem>>, %arg3: memref<1x32xf32, #tpu.memory_space<vmem>>, %arg4: memref<64x32xf32, #tpu.memory_space<vmem>>, %arg5: memref<16x64xf32, #tpu.memory_space<vmem>>) attributes {dimension_semantics = [#tpu.dimension_semantics<parallel>, #tpu.dimension_semantics<parallel>], iteration_bounds = array<i64: 1, 1>, scalar_prefetch = 0 : i64, scratch_operands = 0 : i64, tpu.core_type = #tpu.core_type<tc>, window_params = [{transform_indices = @transform_0, window_bounds = array<i64: 16, 32>}, {pipeline_mode = #tpu.pipeline_mode<synchronous>, transform_indices = @transform_1, window_bounds = array<i64: 1, 32>}, {transform_indices = @transform_2, window_bounds = array<i64: 64, 32>}, {transform_indices = @transform_3, window_bounds = array<i64: 16, 64>}]} {
    %c0 = arith.constant 0 : index
    %c0_0 = arith.constant 0 : index
    %0 = vector.load %arg2[%c0, %c0_0] : memref<16x32xf32, #tpu.memory_space<vmem>>, vector<16x32xf32>
    %1 = arith.mulf %0, %0 : vector<16x32xf32>
    %cst = arith.constant dense<0.000000e+00> : vector<16xf32>
    %2 = vector.multi_reduction <add>, %1, %cst [1] : vector<16x32xf32> to vector<16xf32>
    %3 = vector.shape_cast %2 : vector<16xf32> to vector<16x1xf32>
    %cst_1 = arith.constant 3.200000e+01 : f32
    %4 = vector.broadcast %cst_1 : f32 to vector<16x1xf32>
    %5 = arith.divf %3, %4 : vector<16x1xf32>
    %cst_2 = arith.constant 9.99999997E-7 : f32
    %6 = vector.broadcast %cst_2 : f32 to vector<16x1xf32>
    %7 = arith.addf %5, %6 : vector<16x1xf32>
    %8 = math.rsqrt %7 : vector<16x1xf32>
    %9 = vector.broadcast %8 : vector<16x1xf32> to vector<16x32xf32>
    %10 = arith.mulf %0, %9 : vector<16x32xf32>
    %c0_3 = arith.constant 0 : index
    %c0_4 = arith.constant 0 : index
    %11 = vector.load %arg3[%c0_3, %c0_4] : memref<1x32xf32, #tpu.memory_space<vmem>>, vector<1x32xf32>
    %12 = vector.broadcast %11 : vector<1x32xf32> to vector<16x32xf32>
    %13 = arith.mulf %10, %12 : vector<16x32xf32>
    %c0_5 = arith.constant 0 : index
    %c0_6 = arith.constant 0 : index
    %14 = vector.load %arg4[%c0_5, %c0_6] : memref<64x32xf32, #tpu.memory_space<vmem>>, vector<64x32xf32>
    %cst_7 = arith.constant dense<0.000000e+00> : vector<16x64xf32>
    %15 = tpu.matmul %13, %14, %cst_7 {dimension_numbers = #tpu.dot_dimension_numbers<[1], [1], [0], [0], [0, 0, 1, 0], [], []>} : vector<16x32xf32>, vector<64x32xf32>, vector<16x64xf32> -> vector<16x64xf32>
    %c0_8 = arith.constant 0 : index
    %c0_9 = arith.constant 0 : index
    %16 = vector.load %arg5[%c0_8, %c0_9] : memref<16x64xf32, #tpu.memory_space<vmem>>, vector<16x64xf32>
    tpu.vector_store %arg5[%c0_8, %c0_9], %15 {strides = array<i32>} : memref<16x64xf32, #tpu.memory_space<vmem>>, vector<16x64xf32>,
    return
  }
  func.func @transform_0(%arg0: i32, %arg1: i32) -> (i32, i32) {
    %c0_i32 = arith.constant 0 : i32
    %c0_i32_0 = arith.constant 0 : i32
    return %arg0, %c0_i32 : i32, i32
  }
  func.func @transform_1(%arg0: i32, %arg1: i32) -> (i32, i32) {
    %c0_i32 = arith.constant 0 : i32
    %c0_i32_0 = arith.constant 0 : i32
    %c0_i32_1 = arith.constant 0 : i32
    return %c0_i32, %c0_i32_0 : i32, i32
  }
  func.func @transform_2(%arg0: i32, %arg1: i32) -> (i32, i32) {
    %c0_i32 = arith.constant 0 : i32
    %c0_i32_0 = arith.constant 0 : i32
    return %arg1, %c0_i32 : i32, i32
  }
  func.func @transform_3(%arg0: i32, %arg1: i32) -> (i32, i32) {
    %c0_i32 = arith.constant 0 : i32
    return %arg0, %arg1 : i32, i32
  }
}

</mosaic_0001>

<llo_original>
// kernel: truncated_llama_forward.18
$region0: #{truncated_llama_forward.18}
  #allocation0 [shape = 'u32[]', space=smem, size = 0x4, offset = 0x4, fixed_abs, tag = 'smem constant byte address 0x4 - core index']
  #allocation1 [shape = 'u32[144,128]{1,0:T(1,128)}', space=vmem, size = 0x12000, scoped, tag = 'internal scratch']
  %s0 = inlined_call_operand.vmem [shape: f32[16,32], index: 0, kind: input, shape index: {}]
  %s1 = inlined_call_operand.vmem [shape: f32[1,32], index: 1, kind: input, shape index: {}]
  %s2 = inlined_call_operand.vmem [shape: f32[96,32], index: 2, kind: input, shape index: {}]
  %s3 = inlined_call_operand.vmem [shape: f32[16,96], index: 3, kind: output, shape index: {}]
  %s4 = sld [smem:[#allocation0]]
  $region22: #{truncated_llama_forward.18} parent=0
    _
  %s6 = ssub.s32 1, %s4
  %s7 = scalar_select 0, %s6, %s4
  // Predicated region
  $region2: #{truncated_llama_forward.18} parent=0 // pred_check
    _
  $region3: #{truncated_llama_forward.18} parent=0 // pred_check_branch
    %9 = sbr.rel (0) target = $region5
  $region4: #{truncated_llama_forward.18} parent=0 // pred_region
    _
  $region5: #{truncated_llama_forward.18} parent=0 // pred_fallthru
    _
  // Predicated region
  $region6: #{truncated_llama_forward.18} parent=0 // pred_check
    _
  $region7: #{truncated_llama_forward.18} parent=0 // pred_check_branch
    %11 = sbr.rel (0) target = $region9
  $region8: #{truncated_llama_forward.18} parent=0 // pred_region
    _
  $region9: #{truncated_llama_forward.18} parent=0 // pred_fallthru
    _
  // Predicated region
  $region10: #{truncated_llama_forward.18} parent=0 // pred_check
    _
  $region11: #{truncated_llama_forward.18} parent=0 // pred_check_branch
    %13 = sbr.rel (0) target = $region13
  $region12: #{truncated_llama_forward.18} parent=0 // pred_region
    _
  $region13: #{truncated_llama_forward.18} parent=0 // pred_fallthru
    _
  %v14 = vld [vmem:[%s0] sm:$0xff]
  %v15 = vld [vmem:[%s0 + $0x8] sm:$0xff]
  %v16 = vmul.f32 %v14, %v14
  %v17 = vmul.f32 %v15, %v15
  %vm18 = vcmask 261120
  %v19 = vsel %vm18, %v16, 0.0
  %20 = vadd.xlane.f32.xlu0 %v19
  %v21 = vpop.xlane.xlu0 %20
  %v22 = vsel %vm18, %v17, 0.0
  %23 = vadd.xlane.f32.xlu0 %v22
  %v24 = vpop.xlane.xlu0 %23
  %v25 = vrcp.pop 32.0
  %v26 = vmul.f32 %v21, %v25
  %v27 = vmul.f32 %v24, %v25
  %v28 = vadd.f32 %v26, 1e-06
  %v29 = vadd.f32 %v27, 1e-06
  %v30 = vrsqrt.pop %v28
  %v31 = vrsqrt.pop %v29
  %v32 = vmul.f32 %v14, %v30
  %v33 = vmul.f32 %v15, %v31
  %v34 = vld [vmem:[%s1] sm:$0x1]
  %v36 = vlaneseq
  %v37 = vshrl.u32 %v36, 7
  %v38 = vsub.s32 0, %v37
  %v39 = vrot.slane %v34, %v38
  %v41 = vmul.f32 %v32, %v39
  %v42 = vmul.f32 %v33, %v39
  %v43 = vld [vmem:[%s2] sm:$0xff]
  %v44 = vld [vmem:[%s2 + $0x8] sm:$0xff]
  %v45 = vld [vmem:[%s2 + $0x10] sm:$0xff]
  %v46 = vld [vmem:[%s2 + $0x18] sm:$0xff]
  %v47 = vld [vmem:[%s2 + $0x20] sm:$0xff]
  %v48 = vld [vmem:[%s2 + $0x28] sm:$0xff]
  %v49 = vld [vmem:[%s2 + $0x30] sm:$0xff]
  %v50 = vld [vmem:[%s2 + $0x38] sm:$0xff]
  %v51 = vld [vmem:[%s2 + $0x40] sm:$0xff]
  %v52 = vld [vmem:[%s2 + $0x48] sm:$0xff]
  %v53 = vld [vmem:[%s2 + $0x50] sm:$0xff]
  %v54 = vld [vmem:[%s2 + $0x58] sm:$0xff]
  %v56 = vsel %vm18, %v41, 0
  %v59 = vsel %vm18, %v42, 0
  %v62 = vsel %vm18, %v43, 0
  %v65 = vsel %vm18, %v44, 0
  %v68 = vsel %vm18, %v45, 0
  %v71 = vsel %vm18, %v46, 0
  %v74 = vsel %vm18, %v47, 0
  %v77 = vsel %vm18, %v48, 0
  %v80 = vsel %vm18, %v49, 0
  %v83 = vsel %vm18, %v50, 0
  %v86 = vsel %vm18, %v51, 0
  %v89 = vsel %vm18, %v52, 0
  %v92 = vsel %vm18, %v53, 0
  %v95 = vsel %vm18, %v54, 0
  %97 = vmatprep.subr.mxu0 0.0
  %98 = vmatpush1.xpose.msra.mxu0 %v62
  %99 = vmatprep.subr.mxu0 0.0
  %100 = vmatpush1.xpose.msra.mxu0 %v65
  %101 = vmatprep.subr.mxu0 0.0
  %102 = vmatpush1.xpose.msra.mxu0 %v68
  %103 = vmatprep.subr.mxu0 0.0
  %104 = vmatpush1.xpose.msra.mxu0 %v71
  %105 = vmatprep.subr.mxu0 0.0
  %106 = vmatpush1.xpose.msra.mxu0 %v74
  %107 = vmatprep.subr.mxu0 0.0
  %108 = vmatpush1.xpose.msra.mxu0 %v77
  %109 = vmatprep.subr.mxu0 0.0
  %110 = vmatpush1.xpose.msra.mxu0 %v80
  %111 = vmatprep.subr.mxu0 0.0
  %112 = vmatpush1.xpose.msra.mxu0 %v83
  %113 = vmatprep.subr.mxu0 0.0
  %114 = vmatpush1.xpose.msra.mxu0 %v86
  %115 = vmatprep.subr.mxu0 0.0
  %116 = vmatpush1.xpose.msra.mxu0 %v89
  %117 = vmatprep.subr.mxu0 0.0
  %118 = vmatpush1.xpose.msra.mxu0 %v92
  %119 = vmatprep.subr.mxu0 0.0
  %120 = vmatpush1.xpose.msra.mxu0 %v95
  %121 = vmatprep.subr.mxu0 0.0
  %122 = vmatpush1.xpose.msra.mxu0 0.0
  %123 = vmatprep.subr.mxu0 0.0
  %124 = vmatpush1.xpose.msra.mxu0 0.0
  %125 = vmatprep.subr.mxu0 0.0
  %126 = vmatpush1.xpose.msra.mxu0 0.0
  %127 = vmatprep.subr.mxu0 0.0
  %128 = vmatpush1.xpose.msra.mxu0 0.0
  %129 = vmatprep.subr.mxu0 0.0
  %130 = vmatpush1.xpose.msra.mxu0 0.0
  %131 = vmatprep.subr.mxu0 0.0
  %132 = vmatpush1.xpose.msra.mxu0 0.0
  %133 = vmatprep.subr.mxu0 0.0
  %134 = vmatpush1.xpose.msra.mxu0 0.0
  %135 = vmatprep.subr.mxu0 0.0
  %136 = vmatpush1.xpose.msra.mxu0 0.0
  %137 = vmatprep.subr.mxu0 0.0
  %138 = vmatpush1.xpose.msra.mxu0 0.0
  %139 = vmatprep.subr.mxu0 0.0
  %140 = vmatpush1.xpose.msra.mxu0 0.0
  %141 = vmatprep.subr.mxu0 0.0
  %142 = vmatpush1.xpose.msra.mxu0 0.0
  %143 = vmatprep.subr.mxu0 0.0
  %144 = vmatpush1.xpose.msra.mxu0 0.0
  %145 = vmatprep.subr.mxu0 0.0
  %146 = vmatpush1.xpose.msra.mxu0 0.0
  %147 = vmatprep.subr.mxu0 0.0
  %148 = vmatpush1.xpose.msra.mxu0 0.0
  %149 = vmatprep.subr.mxu0 0.0
  %150 = vmatpush1.xpose.msra.mxu0 0.0
  %151 = vmatprep.subr.mxu0 0.0
  %152 = vmatpush1.xpose.msra.mxu0 0.0
  %153 = vmatprep.subr.mxu0 0.0
  %154 = vmatpush1.xpose.msra.mxu0 0.0
  %155 = vmatprep.subr.mxu0 0.0
  %156 = vmatpush1.xpose.msra.mxu0 0.0
  %157 = vmatprep.subr.mxu0 0.0
  %158 = vmatpush1.xpose.msra.mxu0 0.0
  %159 = vmatprep.subr.mxu0 0.0
  %160 = vmatpush1.xpose.msra.mxu0 0.0
  %161 = vmatprep.mubr.f32.mxu0 0.0
  %162 = vmatmul.mubr.f32.gmra.mrb[0].mxu0 %v56
  %v163 = vpop.f32.mrb[0].mxu0
  %v164 = vadd.f32 0.0, %v163
  %v165 = vpop.f32.mrb[0].mxu0
  %166 = vmatprep.mubr.f32.mxu0 0.0
  %167 = vmatmul.mubr.f32.gmra.mrb[0].mxu0 %v59
  %v168 = vpop.f32.mrb[0].mxu0
  %v169 = vadd.f32 0.0, %v168
  %v170 = vpop.f32.mrb[0].mxu0
  %171 = vdwg.mxu0
  %vm172 = vcmask 785408
  %173 = vst.msk [vmem:[%s3] sm:$0xff] %vm172, %v164
  %174 = vst.msk [vmem:[%s3 + $0x8] sm:$0xff] %vm172, %v169
  // Predicated region
  $region14: #{truncated_llama_forward.18} parent=0 // pred_check
    _
  $region15: #{truncated_llama_forward.18} parent=0 // pred_check_branch
    %176 = sbr.rel (0) target = $region17
  $region16: #{truncated_llama_forward.18} parent=0 // pred_region
    _
  $region17: #{truncated_llama_forward.18} parent=0 // pred_fallthru
    _
  // Predicated region
  $region18: #{truncated_llama_forward.18} parent=0 // pred_check
    _
  $region19: #{truncated_llama_forward.18} parent=0 // pred_check_branch
    %178 = sbr.rel (0) target = $region21
  $region20: #{truncated_llama_forward.18} parent=0 // pred_region
    _
  $region21: #{truncated_llama_forward.18} parent=0 // pred_fallthru
    _

// kernel: truncated_llama_forward.20
$region0: #{truncated_llama_forward.20}
  #allocation0 [shape = 'u32[]', space=smem, size = 0x4, offset = 0x4, fixed_abs, tag = 'smem constant byte address 0x4 - core index']
  #allocation1 [shape = 'u32[144,128]{1,0:T(1,128)}', space=vmem, size = 0x12000, scoped, tag = 'internal scratch']
  %s0 = inlined_call_operand.vmem [shape: f32[16,32], index: 0, kind: input, shape index: {}]
  %s1 = inlined_call_operand.vmem [shape: f32[32,32], index: 1, kind: input, shape index: {}]
  %s2 = inlined_call_operand.vmem [shape: f32[16,32], index: 2, kind: input, shape index: {}]
  %s3 = inlined_call_operand.vmem [shape: f32[16,32], index: 3, kind: output, shape index: {}]
  %s4 = sld [smem:[#allocation0]]
  $region22: #{truncated_llama_forward.20} parent=0
    _
  %s6 = ssub.s32 1, %s4
  %s7 = scalar_select 0, %s6, %s4
  // Predicated region
  $region2: #{truncated_llama_forward.20} parent=0 // pred_check
    _
  $region3: #{truncated_llama_forward.20} parent=0 // pred_check_branch
    %9 = sbr.rel (0) target = $region5
  $region4: #{truncated_llama_forward.20} parent=0 // pred_region
    _
  $region5: #{truncated_llama_forward.20} parent=0 // pred_fallthru
    _
  // Predicated region
  $region6: #{truncated_llama_forward.20} parent=0 // pred_check
    _
  $region7: #{truncated_llama_forward.20} parent=0 // pred_check_branch
    %11 = sbr.rel (0) target = $region9
  $region8: #{truncated_llama_forward.20} parent=0 // pred_region
    _
  $region9: #{truncated_llama_forward.20} parent=0 // pred_fallthru
    _
  // Predicated region
  $region10: #{truncated_llama_forward.20} parent=0 // pred_check
    _
  $region11: #{truncated_llama_forward.20} parent=0 // pred_check_branch
    %13 = sbr.rel (0) target = $region13
  $region12: #{truncated_llama_forward.20} parent=0 // pred_region
    _
  $region13: #{truncated_llama_forward.20} parent=0 // pred_fallthru
    _
  %v14 = vld [vmem:[%s2] sm:$0xff]
  %v15 = vld [vmem:[%s2 + $0x8] sm:$0xff]
  %v16 = vld [vmem:[%s0] sm:$0xff]
  %v17 = vld [vmem:[%s0 + $0x8] sm:$0xff]
  %v18 = vld [vmem:[%s1] sm:$0xff]
  %v19 = vld [vmem:[%s1 + $0x8] sm:$0xff]
  %v20 = vld [vmem:[%s1 + $0x10] sm:$0xff]
  %v21 = vld [vmem:[%s1 + $0x18] sm:$0xff]
  %vm22 = vcmask 261120
  %v24 = vsel %vm22, %v16, 0
  %v27 = vsel %vm22, %v17, 0
  %v30 = vsel %vm22, %v18, 0
  %v33 = vsel %vm22, %v19, 0
  %v36 = vsel %vm22, %v20, 0
  %v39 = vsel %vm22, %v21, 0
  %41 = vmatprep.subr.mxu0 0.0
  %42 = vmatpush1.xpose.msra.mxu0 %v30
  %43 = vmatprep.subr.mxu0 0.0
  %44 = vmatpush1.xpose.msra.mxu0 %v33
  %45 = vmatprep.subr.mxu0 0.0
  %46 = vmatpush1.xpose.msra.mxu0 %v36
  %47 = vmatprep.subr.mxu0 0.0
  %48 = vmatpush1.xpose.msra.mxu0 %v39
  %49 = vmatprep.subr.mxu0 0.0
  %50 = vmatpush1.xpose.msra.mxu0 0.0
  %51 = vmatprep.subr.mxu0 0.0
  %52 = vmatpush1.xpose.msra.mxu0 0.0
  %53 = vmatprep.subr.mxu0 0.0
  %54 = vmatpush1.xpose.msra.mxu0 0.0
  %55 = vmatprep.subr.mxu0 0.0
  %56 = vmatpush1.xpose.msra.mxu0 0.0
  %57 = vmatprep.subr.mxu0 0.0
  %58 = vmatpush1.xpose.msra.mxu0 0.0
  %59 = vmatprep.subr.mxu0 0.0
  %60 = vmatpush1.xpose.msra.mxu0 0.0
  %61 = vmatprep.subr.mxu0 0.0
  %62 = vmatpush1.xpose.msra.mxu0 0.0
  %63 = vmatprep.subr.mxu0 0.0
  %64 = vmatpush1.xpose.msra.mxu0 0.0
  %65 = vmatprep.subr.mxu0 0.0
  %66 = vmatpush1.xpose.msra.mxu0 0.0
  %67 = vmatprep.subr.mxu0 0.0
  %68 = vmatpush1.xpose.msra.mxu0 0.0
  %69 = vmatprep.subr.mxu0 0.0
  %70 = vmatpush1.xpose.msra.mxu0 0.0
  %71 = vmatprep.subr.mxu0 0.0
  %72 = vmatpush1.xpose.msra.mxu0 0.0
  %73 = vmatprep.subr.mxu0 0.0
  %74 = vmatpush1.xpose.msra.mxu0 0.0
  %75 = vmatprep.subr.mxu0 0.0
  %76 = vmatpush1.xpose.msra.mxu0 0.0
  %77 = vmatprep.subr.mxu0 0.0
  %78 = vmatpush1.xpose.msra.mxu0 0.0
  %79 = vmatprep.subr.mxu0 0.0
  %80 = vmatpush1.xpose.msra.mxu0 0.0
  %81 = vmatprep.subr.mxu0 0.0
  %82 = vmatpush1.xpose.msra.mxu0 0.0
  %83 = vmatprep.subr.mxu0 0.0
  %84 = vmatpush1.xpose.msra.mxu0 0.0
  %85 = vmatprep.subr.mxu0 0.0
  %86 = vmatpush1.xpose.msra.mxu0 0.0
  %87 = vmatprep.subr.mxu0 0.0
  %88 = vmatpush1.xpose.msra.mxu0 0.0
  %89 = vmatprep.subr.mxu0 0.0
  %90 = vmatpush1.xpose.msra.mxu0 0.0
  %91 = vmatprep.subr.mxu0 0.0
  %92 = vmatpush1.xpose.msra.mxu0 0.0
  %93 = vmatprep.subr.mxu0 0.0
  %94 = vmatpush1.xpose.msra.mxu0 0.0
  %95 = vmatprep.subr.mxu0 0.0
  %96 = vmatpush1.xpose.msra.mxu0 0.0
  %97 = vmatprep.subr.mxu0 0.0
  %98 = vmatpush1.xpose.msra.mxu0 0.0
  %99 = vmatprep.subr.mxu0 0.0
  %100 = vmatpush1.xpose.msra.mxu0 0.0
  %101 = vmatprep.subr.mxu0 0.0
  %102 = vmatpush1.xpose.msra.mxu0 0.0
  %103 = vmatprep.subr.mxu0 0.0
  %104 = vmatpush1.xpose.msra.mxu0 0.0
  %105 = vmatprep.mubr.f32.mxu0 0.0
  %106 = vmatmul.mubr.f32.gmra.mrb[0].mxu0 %v24
  %v107 = vpop.f32.mrb[0].mxu0
  %v108 = vadd.f32 0.0, %v107
  %v109 = vpop.f32.mrb[0].mxu0
  %110 = vmatprep.mubr.f32.mxu0 0.0
  %111 = vmatmul.mubr.f32.gmra.mrb[0].mxu0 %v27
  %v112 = vpop.f32.mrb[0].mxu0
  %v113 = vadd.f32 0.0, %v112
  %v114 = vpop.f32.mrb[0].mxu0
  %115 = vdwg.mxu0
  %v116 = vadd.f32 %v14, %v108
  %v117 = vadd.f32 %v15, %v113
  %118 = vst.msk [vmem:[%s3] sm:$0xff] %vm22, %v116
  %119 = vst.msk [vmem:[%s3 + $0x8] sm:$0xff] %vm22, %v117
  // Predicated region
  $region14: #{truncated_llama_forward.20} parent=0 // pred_check
    _
  $region15: #{truncated_llama_forward.20} parent=0 // pred_check_branch
    %121 = sbr.rel (0) target = $region17
  $region16: #{truncated_llama_forward.20} parent=0 // pred_region
    _
  $region17: #{truncated_llama_forward.20} parent=0 // pred_fallthru
    _
  // Predicated region
  $region18: #{truncated_llama_forward.20} parent=0 // pred_check
    _
  $region19: #{truncated_llama_forward.20} parent=0 // pred_check_branch
    %123 = sbr.rel (0) target = $region21
  $region20: #{truncated_llama_forward.20} parent=0 // pred_region
    _
  $region21: #{truncated_llama_forward.20} parent=0 // pred_fallthru
    _

// kernel: truncated_llama_forward.21
$region0: #{truncated_llama_forward.21}
  #allocation0 [shape = 'u32[]', space=smem, size = 0x4, offset = 0x4, fixed_abs, tag = 'smem constant byte address 0x4 - core index']
  #allocation1 [shape = 'u32[144,128]{1,0:T(1,128)}', space=vmem, size = 0x12000, scoped, tag = 'internal scratch']
  %s0 = inlined_call_operand.vmem [shape: f32[16,32], index: 0, kind: input, shape index: {}]
  %s1 = inlined_call_operand.vmem [shape: f32[1,32], index: 1, kind: input, shape index: {}]
  %s2 = inlined_call_operand.vmem [shape: f32[64,32], index: 2, kind: input, shape index: {}]
  %s3 = inlined_call_operand.vmem [shape: f32[64,32], index: 3, kind: input, shape index: {}]
  %s4 = inlined_call_operand.vmem [shape: f32[32,64], index: 4, kind: input, shape index: {}]
  %s5 = inlined_call_operand.vmem [shape: f32[16,32], index: 5, kind: output, shape index: {}]
  %s6 = sld [smem:[#allocation0]]
  $region30: #{truncated_llama_forward.21} parent=0
    _
  %s8 = ssub.s32 1, %s6
  %s9 = scalar_select 0, %s8, %s6
  // Predicated region
  $region2: #{truncated_llama_forward.21} parent=0 // pred_check
    _
  $region3: #{truncated_llama_forward.21} parent=0 // pred_check_branch
    %11 = sbr.rel (0) target = $region5
  $region4: #{truncated_llama_forward.21} parent=0 // pred_region
    _
  $region5: #{truncated_llama_forward.21} parent=0 // pred_fallthru
    _
  // Predicated region
  $region6: #{truncated_llama_forward.21} parent=0 // pred_check
    _
  $region7: #{truncated_llama_forward.21} parent=0 // pred_check_branch
    %13 = sbr.rel (0) target = $region9
  $region8: #{truncated_llama_forward.21} parent=0 // pred_region
    _
  $region9: #{truncated_llama_forward.21} parent=0 // pred_fallthru
    _
  // Predicated region
  $region10: #{truncated_llama_forward.21} parent=0 // pred_check
    _
  $region11: #{truncated_llama_forward.21} parent=0 // pred_check_branch
    %15 = sbr.rel (0) target = $region13
  $region12: #{truncated_llama_forward.21} parent=0 // pred_region
    _
  $region13: #{truncated_llama_forward.21} parent=0 // pred_fallthru
    _
  // Predicated region
  $region14: #{truncated_llama_forward.21} parent=0 // pred_check
    _
  $region15: #{truncated_llama_forward.21} parent=0 // pred_check_branch
    %17 = sbr.rel (0) target = $region17
  $region16: #{truncated_llama_forward.21} parent=0 // pred_region
    _
  $region17: #{truncated_llama_forward.21} parent=0 // pred_fallthru
    _
  // Predicated region
  $region18: #{truncated_llama_forward.21} parent=0 // pred_check
    _
  $region19: #{truncated_llama_forward.21} parent=0 // pred_check_branch
    %19 = sbr.rel (0) target = $region21
  $region20: #{truncated_llama_forward.21} parent=0 // pred_region
    _
  $region21: #{truncated_llama_forward.21} parent=0 // pred_fallthru
    _
  %v20 = vld [vmem:[%s0] sm:$0xff]
  %v21 = vld [vmem:[%s0 + $0x8] sm:$0xff]
  %v22 = vmul.f32 %v20, %v20
  %v23 = vmul.f32 %v21, %v21
  %vm24 = vcmask 261120
  %v25 = vsel %vm24, %v22, 0.0
  %26 = vadd.xlane.f32.xlu0 %v25
  %v27 = vpop.xlane.xlu0 %26
  %v28 = vsel %vm24, %v23, 0.0
  %29 = vadd.xlane.f32.xlu0 %v28
  %v30 = vpop.xlane.xlu0 %29
  %v31 = vrcp.pop 32.0
  %v32 = vmul.f32 %v27, %v31
  %v33 = vmul.f32 %v30, %v31
  %v34 = vadd.f32 %v32, 1e-06
  %v35 = vadd.f32 %v33, 1e-06
  %v36 = vrsqrt.pop %v34
  %v37 = vrsqrt.pop %v35
  %v38 = vmul.f32 %v20, %v36
  %v39 = vmul.f32 %v21, %v37
  %v40 = vld [vmem:[%s1] sm:$0x1]
  %v42 = vlaneseq
  %v43 = vshrl.u32 %v42, 7
  %v44 = vsub.s32 0, %v43
  %v45 = vrot.slane %v40, %v44
  %v47 = vmul.f32 %v38, %v45
  %v48 = vmul.f32 %v39, %v45
  %v49 = vld [vmem:[%s2] sm:$0xff]
  %v50 = vld [vmem:[%s2 + $0x8] sm:$0xff]
  %v51 = vld [vmem:[%s2 + $0x10] sm:$0xff]
  %v52 = vld [vmem:[%s2 + $0x18] sm:$0xff]
  %v53 = vld [vmem:[%s2 + $0x20] sm:$0xff]
  %v54 = vld [vmem:[%s2 + $0x28] sm:$0xff]
  %v55 = vld [vmem:[%s2 + $0x30] sm:$0xff]
  %v56 = vld [vmem:[%s2 + $0x38] sm:$0xff]
  %v58 = vsel %vm24, %v47, 0
  %v61 = vsel %vm24, %v48, 0
  %v64 = vsel %vm24, %v49, 0
  %v67 = vsel %vm24, %v50, 0
  %v70 = vsel %vm24, %v51, 0
  %v73 = vsel %vm24, %v52, 0
  %v76 = vsel %vm24, %v53, 0
  %v79 = vsel %vm24, %v54, 0
  %v82 = vsel %vm24, %v55, 0
  %v85 = vsel %vm24, %v56, 0
  %87 = vmatprep.subr.mxu0 0.0
  %88 = vmatpush1.xpose.msra.mxu0 %v64
  %89 = vmatprep.subr.mxu0 0.0
  %90 = vmatpush1.xpose.msra.mxu0 %v67
  %91 = vmatprep.subr.mxu0 0.0
  %92 = vmatpush1.xpose.msra.mxu0 %v70
  %93 = vmatprep.subr.mxu0 0.0
  %94 = vmatpush1.xpose.msra.mxu0 %v73
  %95 = vmatprep.subr.mxu0 0.0
  %96 = vmatpush1.xpose.msra.mxu0 %v76
  %97 = vmatprep.subr.mxu0 0.0
  %98 = vmatpush1.xpose.msra.mxu0 %v79
  %99 = vmatprep.subr.mxu0 0.0
  %100 = vmatpush1.xpose.msra.mxu0 %v82
  %101 = vmatprep.subr.mxu0 0.0
  %102 = vmatpush1.xpose.msra.mxu0 %v85
  %103 = vmatprep.subr.mxu0 0.0
  %104 = vmatpush1.xpose.msra.mxu0 0.0
  %105 = vmatprep.subr.mxu0 0.0
  %106 = vmatpush1.xpose.msra.mxu0 0.0
  %107 = vmatprep.subr.mxu0 0.0
  %108 = vmatpush1.xpose.msra.mxu0 0.0
  %109 = vmatprep.subr.mxu0 0.0
  %110 = vmatpush1.xpose.msra.mxu0 0.0
  %111 = vmatprep.subr.mxu0 0.0
  %112 = vmatpush1.xpose.msra.mxu0 0.0
  %113 = vmatprep.subr.mxu0 0.0
  %114 = vmatpush1.xpose.msra.mxu0 0.0
  %115 = vmatprep.subr.mxu0 0.0
  %116 = vmatpush1.xpose.msra.mxu0 0.0
  %117 = vmatprep.subr.mxu0 0.0
  %118 = vmatpush1.xpose.msra.mxu0 0.0
  %119 = vmatprep.subr.mxu0 0.0
  %120 = vmatpush1.xpose.msra.mxu0 0.0
  %121 = vmatprep.subr.mxu0 0.0
  %122 = vmatpush1.xpose.msra.mxu0 0.0
  %123 = vmatprep.subr.mxu0 0.0
  %124 = vmatpush1.xpose.msra.mxu0 0.0
  %125 = vmatprep.subr.mxu0 0.0
  %126 = vmatpush1.xpose.msra.mxu0 0.0
  %127 = vmatprep.subr.mxu0 0.0
  %128 = vmatpush1.xpose.msra.mxu0 0.0
  %129 = vmatprep.subr.mxu0 0.0
  %130 = vmatpush1.xpose.msra.mxu0 0.0
  %131 = vmatprep.subr.mxu0 0.0
  %132 = vmatpush1.xpose.msra.mxu0 0.0
  %133 = vmatprep.subr.mxu0 0.0
  %134 = vmatpush1.xpose.msra.mxu0 0.0
  %135 = vmatprep.subr.mxu0 0.0
  %136 = vmatpush1.xpose.msra.mxu0 0.0
  %137 = vmatprep.subr.mxu0 0.0
  %138 = vmatpush1.xpose.msra.mxu0 0.0
  %139 = vmatprep.subr.mxu0 0.0
  %140 = vmatpush1.xpose.msra.mxu0 0.0
  %141 = vmatprep.subr.mxu0 0.0
  %142 = vmatpush1.xpose.msra.mxu0 0.0
  %143 = vmatprep.subr.mxu0 0.0
  %144 = vmatpush1.xpose.msra.mxu0 0.0
  %145 = vmatprep.subr.mxu0 0.0
  %146 = vmatpush1.xpose.msra.mxu0 0.0
  %147 = vmatprep.subr.mxu0 0.0
  %148 = vmatpush1.xpose.msra.mxu0 0.0
  %149 = vmatprep.subr.mxu0 0.0
  %150 = vmatpush1.xpose.msra.mxu0 0.0
  %151 = vmatprep.mubr.f32.mxu0 0.0
  %152 = vmatmul.mubr.f32.gmra.mrb[0].mxu0 %v58
  %v153 = vpop.f32.mrb[0].mxu0
  %v154 = vadd.f32 0.0, %v153
  %v155 = vpop.f32.mrb[0].mxu0
  %156 = vmatprep.mubr.f32.mxu0 0.0
  %157 = vmatmul.mubr.f32.gmra.mrb[0].mxu0 %v61
  %v158 = vpop.f32.mrb[0].mxu0
  %v159 = vadd.f32 0.0, %v158
  %v160 = vpop.f32.mrb[0].mxu0
  %161 = vdwg.mxu0
  %v162 = vld [vmem:[%s3] sm:$0xff]
  %v163 = vld [vmem:[%s3 + $0x8] sm:$0xff]
  %v164 = vld [vmem:[%s3 + $0x10] sm:$0xff]
  %v165 = vld [vmem:[%s3 + $0x18] sm:$0xff]
  %v166 = vld [vmem:[%s3 + $0x20] sm:$0xff]
  %v167 = vld [vmem:[%s3 + $0x28] sm:$0xff]
  %v168 = vld [vmem:[%s3 + $0x30] sm:$0xff]
  %v169 = vld [vmem:[%s3 + $0x38] sm:$0xff]
  %v171 = vsel %vm24, %v162, 0
  %v174 = vsel %vm24, %v163, 0
  %v177 = vsel %vm24, %v164, 0
  %v180 = vsel %vm24, %v165, 0
  %v183 = vsel %vm24, %v166, 0
  %v186 = vsel %vm24, %v167, 0
  %v189 = vsel %vm24, %v168, 0
  %v192 = vsel %vm24, %v169, 0
  %194 = vmatprep.subr.mxu0 0.0
  %195 = vmatpush1.xpose.msra.mxu0 %v171
  %196 = vmatprep.subr.mxu0 0.0
  %197 = vmatpush1.xpose.msra.mxu0 %v174
  %198 = vmatprep.subr.mxu0 0.0
  %199 = vmatpush1.xpose.msra.mxu0 %v177
  %200 = vmatprep.subr.mxu0 0.0
  %201 = vmatpush1.xpose.msra.mxu0 %v180
  %202 = vmatprep.subr.mxu0 0.0
  %203 = vmatpush1.xpose.msra.mxu0 %v183
  %204 = vmatprep.subr.mxu0 0.0
  %205 = vmatpush1.xpose.msra.mxu0 %v186
  %206 = vmatprep.subr.mxu0 0.0
  %207 = vmatpush1.xpose.msra.mxu0 %v189
  %208 = vmatprep.subr.mxu0 0.0
  %209 = vmatpush1.xpose.msra.mxu0 %v192
  %210 = vmatprep.subr.mxu0 0.0
  %211 = vmatpush1.xpose.msra.mxu0 0.0
  %212 = vmatprep.subr.mxu0 0.0
  %213 = vmatpush1.xpose.msra.mxu0 0.0
  %214 = vmatprep.subr.mxu0 0.0
  %215 = vmatpush1.xpose.msra.mxu0 0.0
  %216 = vmatprep.subr.mxu0 0.0
  %217 = vmatpush1.xpose.msra.mxu0 0.0
  %218 = vmatprep.subr.mxu0 0.0
  %219 = vmatpush1.xpose.msra.mxu0 0.0
  %220 = vmatprep.subr.mxu0 0.0
  %221 = vmatpush1.xpose.msra.mxu0 0.0
  %222 = vmatprep.subr.mxu0 0.0
  %223 = vmatpush1.xpose.msra.mxu0 0.0
  %224 = vmatprep.subr.mxu0 0.0
  %225 = vmatpush1.xpose.msra.mxu0 0.0
  %226 = vmatprep.subr.mxu0 0.0
  %227 = vmatpush1.xpose.msra.mxu0 0.0
  %228 = vmatprep.subr.mxu0 0.0
  %229 = vmatpush1.xpose.msra.mxu0 0.0
  %230 = vmatprep.subr.mxu0 0.0
  %231 = vmatpush1.xpose.msra.mxu0 0.0
  %232 = vmatprep.subr.mxu0 0.0
  %233 = vmatpush1.xpose.msra.mxu0 0.0
  %234 = vmatprep.subr.mxu0 0.0
  %235 = vmatpush1.xpose.msra.mxu0 0.0
  %236 = vmatprep.subr.mxu0 0.0
  %237 = vmatpush1.xpose.msra.mxu0 0.0
  %238 = vmatprep.subr.mxu0 0.0
  %239 = vmatpush1.xpose.msra.mxu0 0.0
  %240 = vmatprep.subr.mxu0 0.0
  %241 = vmatpush1.xpose.msra.mxu0 0.0
  %242 = vmatprep.subr.mxu0 0.0
  %243 = vmatpush1.xpose.msra.mxu0 0.0
  %244 = vmatprep.subr.mxu0 0.0
  %245 = vmatpush1.xpose.msra.mxu0 0.0
  %246 = vmatprep.subr.mxu0 0.0
  %247 = vmatpush1.xpose.msra.mxu0 0.0
  %248 = vmatprep.subr.mxu0 0.0
  %249 = vmatpush1.xpose.msra.mxu0 0.0
  %250 = vmatprep.subr.mxu0 0.0
  %251 = vmatpush1.xpose.msra.mxu0 0.0
  %252 = vmatprep.subr.mxu0 0.0
  %253 = vmatpush1.xpose.msra.mxu0 0.0
  %254 = vmatprep.subr.mxu0 0.0
  %255 = vmatpush1.xpose.msra.mxu0 0.0
  %256 = vmatprep.subr.mxu0 0.0
  %257 = vmatpush1.xpose.msra.mxu0 0.0
  %258 = vmatprep.mubr.f32.mxu0 0.0
  %259 = vmatmul.mubr.f32.gmra.mrb[0].mxu0 %v58
  %v260 = vpop.f32.mrb[0].mxu0
  %v261 = vadd.f32 0.0, %v260
  %v262 = vpop.f32.mrb[0].mxu0
  %263 = vmatprep.mubr.f32.mxu0 0.0
  %264 = vmatmul.mubr.f32.gmra.mrb[0].mxu0 %v61
  %v265 = vpop.f32.mrb[0].mxu0
  %v266 = vadd.f32 0.0, %v265
  %v267 = vpop.f32.mrb[0].mxu0
  %268 = vdwg.mxu0
  %v269 = vxor.u32 %v154, 2147483648
  %v270 = vxor.u32 %v159, 2147483648
  %v271 = vmul.f32 %v269, 1.442695
  %v272 = vpow.pop %v271
  %v273 = vmul.f32 %v270, 1.442695
  %v274 = vpow.pop %v273
  %v275 = vadd.f32 %v272, 1.0
  %v276 = vadd.f32 %v274, 1.0
  %v277 = vrcp.pop %v275
  %v278 = vmul.f32 1.0, %v277
  %v279 = vrcp.pop %v276
  %v280 = vmul.f32 1.0, %v279
  %v281 = vmul.f32 %v154, %v278
  %v282 = vmul.f32 %v159, %v280
  %v283 = vmul.f32 %v281, %v261
  %v284 = vmul.f32 %v282, %v266
  %v285 = vld [vmem:[%s4] sm:$0xff]
  %v286 = vld [vmem:[%s4 + $0x8] sm:$0xff]
  %v287 = vld [vmem:[%s4 + $0x10] sm:$0xff]
  %v288 = vld [vmem:[%s4 + $0x18] sm:$0xff]
  %vm289 = vcmask 523264
  %v291 = vsel %vm289, %v283, 0
  %v294 = vsel %vm289, %v284, 0
  %v297 = vsel %vm289, %v285, 0
  %v300 = vsel %vm289, %v286, 0
  %v303 = vsel %vm289, %v287, 0
  %v306 = vsel %vm289, %v288, 0
  %308 = vmatprep.subr.mxu0 0.0
  %309 = vmatpush1.xpose.msra.mxu0 %v297
  %310 = vmatprep.subr.mxu0 0.0
  %311 = vmatpush1.xpose.msra.mxu0 %v300
  %312 = vmatprep.subr.mxu0 0.0
  %313 = vmatpush1.xpose.msra.mxu0 %v303
  %314 = vmatprep.subr.mxu0 0.0
  %315 = vmatpush1.xpose.msra.mxu0 %v306
  %316 = vmatprep.subr.mxu0 0.0
  %317 = vmatpush1.xpose.msra.mxu0 0.0
  %318 = vmatprep.subr.mxu0 0.0
  %319 = vmatpush1.xpose.msra.mxu0 0.0
  %320 = vmatprep.subr.mxu0 0.0
  %321 = vmatpush1.xpose.msra.mxu0 0.0
  %322 = vmatprep.subr.mxu0 0.0
  %323 = vmatpush1.xpose.msra.mxu0 0.0
  %324 = vmatprep.subr.mxu0 0.0
  %325 = vmatpush1.xpose.msra.mxu0 0.0
  %326 = vmatprep.subr.mxu0 0.0
  %327 = vmatpush1.xpose.msra.mxu0 0.0
  %328 = vmatprep.subr.mxu0 0.0
  %329 = vmatpush1.xpose.msra.mxu0 0.0
  %330 = vmatprep.subr.mxu0 0.0
  %331 = vmatpush1.xpose.msra.mxu0 0.0
  %332 = vmatprep.subr.mxu0 0.0
  %333 = vmatpush1.xpose.msra.mxu0 0.0
  %334 = vmatprep.subr.mxu0 0.0
  %335 = vmatpush1.xpose.msra.mxu0 0.0
  %336 = vmatprep.subr.mxu0 0.0
  %337 = vmatpush1.xpose.msra.mxu0 0.0
  %338 = vmatprep.subr.mxu0 0.0
  %339 = vmatpush1.xpose.msra.mxu0 0.0
  %340 = vmatprep.subr.mxu0 0.0
  %341 = vmatpush1.xpose.msra.mxu0 0.0
  %342 = vmatprep.subr.mxu0 0.0
  %343 = vmatpush1.xpose.msra.mxu0 0.0
  %344 = vmatprep.subr.mxu0 0.0
  %345 = vmatpush1.xpose.msra.mxu0 0.0
  %346 = vmatprep.subr.mxu0 0.0
  %347 = vmatpush1.xpose.msra.mxu0 0.0
  %348 = vmatprep.subr.mxu0 0.0
  %349 = vmatpush1.xpose.msra.mxu0 0.0
  %350 = vmatprep.subr.mxu0 0.0
  %351 = vmatpush1.xpose.msra.mxu0 0.0
  %352 = vmatprep.subr.mxu0 0.0
  %353 = vmatpush1.xpose.msra.mxu0 0.0
  %354 = vmatprep.subr.mxu0 0.0
  %355 = vmatpush1.xpose.msra.mxu0 0.0
  %356 = vmatprep.subr.mxu0 0.0
  %357 = vmatpush1.xpose.msra.mxu0 0.0
  %358 = vmatprep.subr.mxu0 0.0
  %359 = vmatpush1.xpose.msra.mxu0 0.0
  %360 = vmatprep.subr.mxu0 0.0
  %361 = vmatpush1.xpose.msra.mxu0 0.0
  %362 = vmatprep.subr.mxu0 0.0
  %363 = vmatpush1.xpose.msra.mxu0 0.0
  %364 = vmatprep.subr.mxu0 0.0
  %365 = vmatpush1.xpose.msra.mxu0 0.0
  %366 = vmatprep.subr.mxu0 0.0
  %367 = vmatpush1.xpose.msra.mxu0 0.0
  %368 = vmatprep.subr.mxu0 0.0
  %369 = vmatpush1.xpose.msra.mxu0 0.0
  %370 = vmatprep.subr.mxu0 0.0
  %371 = vmatpush1.xpose.msra.mxu0 0.0
  %372 = vmatprep.mubr.f32.mxu0 0.0
  %373 = vmatmul.mubr.f32.gmra.mrb[0].mxu0 %v291
  %v374 = vpop.f32.mrb[0].mxu0
  %v375 = vadd.f32 0.0, %v374
  %v376 = vpop.f32.mrb[0].mxu0
  %377 = vmatprep.mubr.f32.mxu0 0.0
  %378 = vmatmul.mubr.f32.gmra.mrb[0].mxu0 %v294
  %v379 = vpop.f32.mrb[0].mxu0
  %v380 = vadd.f32 0.0, %v379
  %v381 = vpop.f32.mrb[0].mxu0
  %382 = vdwg.mxu0
  %v383 = vadd.f32 %v20, %v375
  %v384 = vadd.f32 %v21, %v380
  %385 = vst.msk [vmem:[%s5] sm:$0xff] %vm24, %v383
  %386 = vst.msk [vmem:[%s5 + $0x8] sm:$0xff] %vm24, %v384
  // Predicated region
  $region22: #{truncated_llama_forward.21} parent=0 // pred_check
    _
  $region23: #{truncated_llama_forward.21} parent=0 // pred_check_branch
    %388 = sbr.rel (0) target = $region25
  $region24: #{truncated_llama_forward.21} parent=0 // pred_region
    _
  $region25: #{truncated_llama_forward.21} parent=0 // pred_fallthru
    _
  // Predicated region
  $region26: #{truncated_llama_forward.21} parent=0 // pred_check
    _
  $region27: #{truncated_llama_forward.21} parent=0 // pred_check_branch
    %390 = sbr.rel (0) target = $region29
  $region28: #{truncated_llama_forward.21} parent=0 // pred_region
    _
  $region29: #{truncated_llama_forward.21} parent=0 // pred_fallthru
    _

// kernel: truncated_llama_forward.19
$region0: #{truncated_llama_forward.19}
  #allocation0 [shape = 'u32[]', space=smem, size = 0x4, offset = 0x4, fixed_abs, tag = 'smem constant byte address 0x4 - core index']
  #allocation1 [shape = 'u32[144,128]{1,0:T(1,128)}', space=vmem, size = 0x12000, scoped, tag = 'internal scratch']
  %s0 = inlined_call_operand.vmem [shape: f32[2,8,96], index: 0, kind: input, shape index: {}]
  %s1 = inlined_call_operand.vmem [shape: f32[8,8], index: 1, kind: input, shape index: {}]
  %s2 = inlined_call_operand.vmem [shape: f32[8,8], index: 2, kind: input, shape index: {}]
  %s3 = inlined_call_operand.vmem [shape: f32[8,8], index: 3, kind: input, shape index: {}]
  %s4 = inlined_call_operand.vmem [shape: f32[2,8,32], index: 4, kind: output, shape index: {}]
  %s5 = sld [smem:[#allocation0]]
  $region26: #{truncated_llama_forward.19} parent=0
    _
  %s7 = ssub.s32 1, %s5
  %s8 = scalar_select 0, %s7, %s5
  // Predicated region
  $region2: #{truncated_llama_forward.19} parent=0 // pred_check
    _
  $region3: #{truncated_llama_forward.19} parent=0 // pred_check_branch
    %10 = sbr.rel (0) target = $region5
  $region4: #{truncated_llama_forward.19} parent=0 // pred_region
    _
  $region5: #{truncated_llama_forward.19} parent=0 // pred_fallthru
    _
  // Predicated region
  $region6: #{truncated_llama_forward.19} parent=0 // pred_check
    _
  $region7: #{truncated_llama_forward.19} parent=0 // pred_check_branch
    %12 = sbr.rel (0) target = $region9
  $region8: #{truncated_llama_forward.19} parent=0 // pred_region
    _
  $region9: #{truncated_llama_forward.19} parent=0 // pred_fallthru
    _
  // Predicated region
  $region10: #{truncated_llama_forward.19} parent=0 // pred_check
    _
  $region11: #{truncated_llama_forward.19} parent=0 // pred_check_branch
    %14 = sbr.rel (0) target = $region13
  $region12: #{truncated_llama_forward.19} parent=0 // pred_region
    _
  $region13: #{truncated_llama_forward.19} parent=0 // pred_fallthru
    _
  // Predicated region
  $region14: #{truncated_llama_forward.19} parent=0 // pred_check
    _
  $region15: #{truncated_llama_forward.19} parent=0 // pred_check_branch
    %16 = sbr.rel (0) target = $region17
  $region16: #{truncated_llama_forward.19} parent=0 // pred_region
    _
  $region17: #{truncated_llama_forward.19} parent=0 // pred_fallthru
    _
  %v17 = vld [vmem:[%s1] sm:$0xff]
  %v18 = vld [vmem:[%s2] sm:$0xff]
  %v19 = vld [vmem:[%s3] sm:$0xff]
  %v20 = vlaneseq
  %v21 = vshrl.u32 %v20, 7
  %v22 = vlaneseq
  %v23 = vand.u32 %v22, 127
  %vm24 = vcmp.le.s32.totalorder %v23, %v21
  %v25 = vld [vmem:[%s0] sm:$0xff]
  %v26 = vld [vmem:[%s0 + $0x8] sm:$0xff]
  %v27 = vmul.f32 %v25, %v17
  %v28 = vmul.f32 %v26, %v17
  %vm29 = vcmask 64512
  %v31 = vsel %vm29, %v25, 0
  %v34 = vsel %vm29, %v26, 0
  %36 = vmatprep.subr.mxu0 0.0
  %37 = vmatpush1.msra.mxu0 %v19
  %38 = vmatprep.subr.mxu0 0.0
  %39 = vmatpush1.msra.mxu0 0.0
  %40 = vmatprep.subr.mxu0 0.0
  %41 = vmatpush1.msra.mxu0 0.0
  %42 = vmatprep.subr.mxu0 0.0
  %43 = vmatpush1.msra.mxu0 0.0
  %44 = vmatprep.subr.mxu0 0.0
  %45 = vmatpush1.msra.mxu0 0.0
  %46 = vmatprep.subr.mxu0 0.0
  %47 = vmatpush1.msra.mxu0 0.0
  %48 = vmatprep.subr.mxu0 0.0
  %49 = vmatpush1.msra.mxu0 0.0
  %50 = vmatprep.subr.mxu0 0.0
  %51 = vmatpush1.msra.mxu0 0.0
  %52 = vmatprep.subr.mxu0 0.0
  %53 = vmatpush1.msra.mxu0 0.0
  %54 = vmatprep.subr.mxu0 0.0
  %55 = vmatpush1.msra.mxu0 0.0
  %56 = vmatprep.subr.mxu0 0.0
  %57 = vmatpush1.msra.mxu0 0.0
  %58 = vmatprep.subr.mxu0 0.0
  %59 = vmatpush1.msra.mxu0 0.0
  %60 = vmatprep.subr.mxu0 0.0
  %61 = vmatpush1.msra.mxu0 0.0
  %62 = vmatprep.subr.mxu0 0.0
  %63 = vmatpush1.msra.mxu0 0.0
  %64 = vmatprep.subr.mxu0 0.0
  %65 = vmatpush1.msra.mxu0 0.0
  %66 = vmatprep.subr.mxu0 0.0
  %67 = vmatpush1.msra.mxu0 0.0
  %68 = vmatprep.subr.mxu0 0.0
  %69 = vmatpush1.msra.mxu0 0.0
  %70 = vmatprep.subr.mxu0 0.0
  %71 = vmatpush1.msra.mxu0 0.0
  %72 = vmatprep.subr.mxu0 0.0
  %73 = vmatpush1.msra.mxu0 0.0
  %74 = vmatprep.subr.mxu0 0.0
  %75 = vmatpush1.msra.mxu0 0.0
  %76 = vmatprep.subr.mxu0 0.0
  %77 = vmatpush1.msra.mxu0 0.0
  %78 = vmatprep.subr.mxu0 0.0
  %79 = vmatpush1.msra.mxu0 0.0
  %80 = vmatprep.subr.mxu0 0.0
  %81 = vmatpush1.msra.mxu0 0.0
  %82 = vmatprep.subr.mxu0 0.0
  %83 = vmatpush1.msra.mxu0 0.0
  %84 = vmatprep.subr.mxu0 0.0
  %85 = vmatpush1.msra.mxu0 0.0
  %86 = vmatprep.subr.mxu0 0.0
  %87 = vmatpush1.msra.mxu0 0.0
  %88 = vmatprep.subr.mxu0 0.0
  %89 = vmatpush1.msra.mxu0 0.0
  %90 = vmatprep.subr.mxu0 0.0
  %91 = vmatpush1.msra.mxu0 0.0
  %92 = vmatprep.subr.mxu0 0.0
  %93 = vmatpush1.msra.mxu0 0.0
  %94 = vmatprep.subr.mxu0 0.0
  %95 = vmatpush1.msra.mxu0 0.0
  %96 = vmatprep.subr.mxu0 0.0
  %97 = vmatpush1.msra.mxu0 0.0
  %98 = vmatprep.subr.mxu0 0.0
  %99 = vmatpush1.msra.mxu0 0.0
  %100 = vmatprep.mubr.f32.mxu0 0.0
  %101 = vmatmul.mubr.f32.gmra.mrb[0].mxu0 %v31
  %v102 = vpop.f32.mrb[0].mxu0
  %v103 = vadd.f32 0.0, %v102
  %v104 = vpop.f32.mrb[0].mxu0
  %105 = vmatprep.mubr.f32.mxu0 0.0
  %106 = vmatmul.mubr.f32.gmra.mrb[0].mxu0 %v34
  %v107 = vpop.f32.mrb[0].mxu0
  %v108 = vadd.f32 0.0, %v107
  %v109 = vpop.f32.mrb[0].mxu0
  %110 = vdwg.mxu0
  %v111 = vmul.f32 %v103, %v18
  %v112 = vmul.f32 %v108, %v18
  %v113 = vadd.f32 %v27, %v111
  %v114 = vadd.f32 %v28, %v112
  %116 = vrot.lane.b32.xlu0 %v17, 32
  %v117 = vpop.permute.xlu0 %116
  %v119 = vmul.f32 %v25, %v117
  %v120 = vmul.f32 %v26, %v117
  %121 = vrot.lane.b32.xlu0 %v25, 96
  %v122 = vpop.permute.xlu0 %121
  %123 = vrot.lane.b32.xlu0 %v26, 96
  %v124 = vpop.permute.xlu0 %123
  %v125 = vsel %vm29, %v122, 0
  %v127 = vsel %vm29, %v124, 0
  %129 = vmatprep.subr.mxu0 0.0
  %130 = vmatpush1.msra.mxu0 %v19
  %131 = vmatprep.subr.mxu0 0.0
  %132 = vmatpush1.msra.mxu0 0.0
  %133 = vmatprep.subr.mxu0 0.0
  %134 = vmatpush1.msra.mxu0 0.0
  %135 = vmatprep.subr.mxu0 0.0
  %136 = vmatpush1.msra.mxu0 0.0
  %137 = vmatprep.subr.mxu0 0.0
  %138 = vmatpush1.msra.mxu0 0.0
  %139 = vmatprep.subr.mxu0 0.0
  %140 = vmatpush1.msra.mxu0 0.0
  %141 = vmatprep.subr.mxu0 0.0
  %142 = vmatpush1.msra.mxu0 0.0
  %143 = vmatprep.subr.mxu0 0.0
  %144 = vmatpush1.msra.mxu0 0.0
  %145 = vmatprep.subr.mxu0 0.0
  %146 = vmatpush1.msra.mxu0 0.0
  %147 = vmatprep.subr.mxu0 0.0
  %148 = vmatpush1.msra.mxu0 0.0
  %149 = vmatprep.subr.mxu0 0.0
  %150 = vmatpush1.msra.mxu0 0.0
  %151 = vmatprep.subr.mxu0 0.0
  %152 = vmatpush1.msra.mxu0 0.0
  %153 = vmatprep.subr.mxu0 0.0
  %154 = vmatpush1.msra.mxu0 0.0
  %155 = vmatprep.subr.mxu0 0.0
  %156 = vmatpush1.msra.mxu0 0.0
  %157 = vmatprep.subr.mxu0 0.0
  %158 = vmatpush1.msra.mxu0 0.0
  %159 = vmatprep.subr.mxu0 0.0
  %160 = vmatpush1.msra.mxu0 0.0
  %161 = vmatprep.subr.mxu0 0.0
  %162 = vmatpush1.msra.mxu0 0.0
  %163 = vmatprep.subr.mxu0 0.0
  %164 = vmatpush1.msra.mxu0 0.0
  %165 = vmatprep.subr.mxu0 0.0
  %166 = vmatpush1.msra.mxu0 0.0
  %167 = vmatprep.subr.mxu0 0.0
  %168 = vmatpush1.msra.mxu0 0.0
  %169 = vmatprep.subr.mxu0 0.0
  %170 = vmatpush1.msra.mxu0 0.0
  %171 = vmatprep.subr.mxu0 0.0
  %172 = vmatpush1.msra.mxu0 0.0
  %173 = vmatprep.subr.mxu0 0.0
  %174 = vmatpush1.msra.mxu0 0.0
  %175 = vmatprep.subr.mxu0 0.0
  %176 = vmatpush1.msra.mxu0 0.0
  %177 = vmatprep.subr.mxu0 0.0
  %178 = vmatpush1.msra.mxu0 0.0
  %179 = vmatprep.subr.mxu0 0.0
  %180 = vmatpush1.msra.mxu0 0.0
  %181 = vmatprep.subr.mxu0 0.0
  %182 = vmatpush1.msra.mxu0 0.0
  %183 = vmatprep.subr.mxu0 0.0
  %184 = vmatpush1.msra.mxu0 0.0
  %185 = vmatprep.subr.mxu0 0.0
  %186 = vmatpush1.msra.mxu0 0.0
  %187 = vmatprep.subr.mxu0 0.0
  %188 = vmatpush1.msra.mxu0 0.0
  %189 = vmatprep.subr.mxu0 0.0
  %190 = vmatpush1.msra.mxu0 0.0
  %191 = vmatprep.subr.mxu0 0.0
  %192 = vmatpush1.msra.mxu0 0.0
  %193 = vmatprep.mubr.f32.mxu0 0.0
  %194 = vmatmul.mubr.f32.gmra.mrb[0].mxu0 %v125
  %v195 = vpop.f32.mrb[0].mxu0
  %v196 = vadd.f32 0.0, %v195
  %v197 = vpop.f32.mrb[0].mxu0
  %198 = vmatprep.mubr.f32.mxu0 0.0
  %199 = vmatmul.mubr.f32.gmra.mrb[0].mxu0 %v127
  %v200 = vpop.f32.mrb[0].mxu0
  %v201 = vadd.f32 0.0, %v200
  %v202 = vpop.f32.mrb[0].mxu0
  %203 = vdwg.mxu0
  %v204 = vmul.f32 %v196, %v18
  %v205 = vmul.f32 %v201, %v18
  %208 = vrot.lane.b32.xlu0 %v204, 32
  %v209 = vpop.permute.xlu0 %208
  %210 = vrot.lane.b32.xlu0 %v205, 32
  %v211 = vpop.permute.xlu0 %210
  %v214 = vadd.f32 %v119, %v209
  %v215 = vadd.f32 %v120, %v211
  %217 = vrot.lane.b32.xlu0 %v214, 96
  %v218 = vpop.permute.xlu0 %217
  %v220 = vsel %vm29, %v113, 0
  %v222 = vsel %vm29, %v218, 0
  %224 = vmatprep.subr.mxu0 0.0
  %225 = vmatpush1.xpose.msra.mxu0 %v222
  %226 = vmatprep.subr.mxu0 0.0
  %227 = vmatpush1.xpose.msra.mxu0 0.0
  %228 = vmatprep.subr.mxu0 0.0
  %229 = vmatpush1.xpose.msra.mxu0 0.0
  %230 = vmatprep.subr.mxu0 0.0
  %231 = vmatpush1.xpose.msra.mxu0 0.0
  %232 = vmatprep.subr.mxu0 0.0
  %233 = vmatpush1.xpose.msra.mxu0 0.0
  %234 = vmatprep.subr.mxu0 0.0
  %235 = vmatpush1.xpose.msra.mxu0 0.0
  %236 = vmatprep.subr.mxu0 0.0
  %237 = vmatpush1.xpose.msra.mxu0 0.0
  %238 = vmatprep.subr.mxu0 0.0
  %239 = vmatpush1.xpose.msra.mxu0 0.0
  %240 = vmatprep.subr.mxu0 0.0
  %241 = vmatpush1.xpose.msra.mxu0 0.0
  %242 = vmatprep.subr.mxu0 0.0
  %243 = vmatpush1.xpose.msra.mxu0 0.0
  %244 = vmatprep.subr.mxu0 0.0
  %245 = vmatpush1.xpose.msra.mxu0 0.0
  %246 = vmatprep.subr.mxu0 0.0
  %247 = vmatpush1.xpose.msra.mxu0 0.0
  %248 = vmatprep.subr.mxu0 0.0
  %249 = vmatpush1.xpose.msra.mxu0 0.0
  %250 = vmatprep.subr.mxu0 0.0
  %251 = vmatpush1.xpose.msra.mxu0 0.0
  %252 = vmatprep.subr.mxu0 0.0
  %253 = vmatpush1.xpose.msra.mxu0 0.0
  %254 = vmatprep.subr.mxu0 0.0
  %255 = vmatpush1.xpose.msra.mxu0 0.0
  %256 = vmatprep.subr.mxu0 0.0
  %257 = vmatpush1.xpose.msra.mxu0 0.0
  %258 = vmatprep.subr.mxu0 0.0
  %259 = vmatpush1.xpose.msra.mxu0 0.0
  %260 = vmatprep.subr.mxu0 0.0
  %261 = vmatpush1.xpose.msra.mxu0 0.0
  %262 = vmatprep.subr.mxu0 0.0
  %263 = vmatpush1.xpose.msra.mxu0 0.0
  %264 = vmatprep.subr.mxu0 0.0
  %265 = vmatpush1.xpose.msra.mxu0 0.0
  %266 = vmatprep.subr.mxu0 0.0
  %267 = vmatpush1.xpose.msra.mxu0 0.0
  %268 = vmatprep.subr.mxu0 0.0
  %269 = vmatpush1.xpose.msra.mxu0 0.0
  %270 = vmatprep.subr.mxu0 0.0
  %271 = vmatpush1.xpose.msra.mxu0 0.0
  %272 = vmatprep.subr.mxu0 0.0
  %273 = vmatpush1.xpose.msra.mxu0 0.0
  %274 = vmatprep.subr.mxu0 0.0
  %275 = vmatpush1.xpose.msra.mxu0 0.0
  %276 = vmatprep.subr.mxu0 0.0
  %277 = vmatpush1.xpose.msra.mxu0 0.0
  %278 = vmatprep.subr.mxu0 0.0
  %279 = vmatpush1.xpose.msra.mxu0 0.0
  %280 = vmatprep.subr.mxu0 0.0
  %281 = vmatpush1.xpose.msra.mxu0 0.0
  %282 = vmatprep.subr.mxu0 0.0
  %283 = vmatpush1.xpose.msra.mxu0 0.0
  %284 = vmatprep.subr.mxu0 0.0
  %285 = vmatpush1.xpose.msra.mxu0 0.0
  %286 = vmatprep.subr.mxu0 0.0
  %287 = vmatpush1.xpose.msra.mxu0 0.0
  %288 = vmatprep.mubr.f32.mxu0 0.0
  %289 = vmatmul.mubr.f32.gmra.mrb[0].mxu0 %v220
  %v290 = vpop.f32.mrb[0].mxu0
  %v291 = vadd.f32 0.0, %v290
  %v292 = vpop.f32.mrb[0].mxu0
  %293 = vdwg.mxu0
  %295 = vrot.lane.b32.xlu0 %v215, 96
  %v296 = vpop.permute.xlu0 %295
  %v298 = vsel %vm29, %v114, 0
  %v300 = vsel %vm29, %v296, 0
  %302 = vmatprep.subr.mxu0 0.0
  %303 = vmatpush1.xpose.msra.mxu0 %v300
  %304 = vmatprep.subr.mxu0 0.0
  %305 = vmatpush1.xpose.msra.mxu0 0.0
  %306 = vmatprep.subr.mxu0 0.0
  %307 = vmatpush1.xpose.msra.mxu0 0.0
  %308 = vmatprep.subr.mxu0 0.0
  %309 = vmatpush1.xpose.msra.mxu0 0.0
  %310 = vmatprep.subr.mxu0 0.0
  %311 = vmatpush1.xpose.msra.mxu0 0.0
  %312 = vmatprep.subr.mxu0 0.0
  %313 = vmatpush1.xpose.msra.mxu0 0.0
  %314 = vmatprep.subr.mxu0 0.0
  %315 = vmatpush1.xpose.msra.mxu0 0.0
  %316 = vmatprep.subr.mxu0 0.0
  %317 = vmatpush1.xpose.msra.mxu0 0.0
  %318 = vmatprep.subr.mxu0 0.0
  %319 = vmatpush1.xpose.msra.mxu0 0.0
  %320 = vmatprep.subr.mxu0 0.0
  %321 = vmatpush1.xpose.msra.mxu0 0.0
  %322 = vmatprep.subr.mxu0 0.0
  %323 = vmatpush1.xpose.msra.mxu0 0.0
  %324 = vmatprep.subr.mxu0 0.0
  %325 = vmatpush1.xpose.msra.mxu0 0.0
  %326 = vmatprep.subr.mxu0 0.0
  %327 = vmatpush1.xpose.msra.mxu0 0.0
  %328 = vmatprep.subr.mxu0 0.0
  %329 = vmatpush1.xpose.msra.mxu0 0.0
  %330 = vmatprep.subr.mxu0 0.0
  %331 = vmatpush1.xpose.msra.mxu0 0.0
  %332 = vmatprep.subr.mxu0 0.0
  %333 = vmatpush1.xpose.msra.mxu0 0.0
  %334 = vmatprep.subr.mxu0 0.0
  %335 = vmatpush1.xpose.msra.mxu0 0.0
  %336 = vmatprep.subr.mxu0 0.0
  %337 = vmatpush1.xpose.msra.mxu0 0.0
  %338 = vmatprep.subr.mxu0 0.0
  %339 = vmatpush1.xpose.msra.mxu0 0.0
  %340 = vmatprep.subr.mxu0 0.0
  %341 = vmatpush1.xpose.msra.mxu0 0.0
  %342 = vmatprep.subr.mxu0 0.0
  %343 = vmatpush1.xpose.msra.mxu0 0.0
  %344 = vmatprep.subr.mxu0 0.0
  %345 = vmatpush1.xpose.msra.mxu0 0.0
  %346 = vmatprep.subr.mxu0 0.0
  %347 = vmatpush1.xpose.msra.mxu0 0.0
  %348 = vmatprep.subr.mxu0 0.0
  %349 = vmatpush1.xpose.msra.mxu0 0.0
  %350 = vmatprep.subr.mxu0 0.0
  %351 = vmatpush1.xpose.msra.mxu0 0.0
  %352 = vmatprep.subr.mxu0 0.0
  %353 = vmatpush1.xpose.msra.mxu0 0.0
  %354 = vmatprep.subr.mxu0 0.0
  %355 = vmatpush1.xpose.msra.mxu0 0.0
  %356 = vmatprep.subr.mxu0 0.0
  %357 = vmatpush1.xpose.msra.mxu0 0.0
  %358 = vmatprep.subr.mxu0 0.0
  %359 = vmatpush1.xpose.msra.mxu0 0.0
  %360 = vmatprep.subr.mxu0 0.0
  %361 = vmatpush1.xpose.msra.mxu0 0.0
  %362 = vmatprep.subr.mxu0 0.0
  %363 = vmatpush1.xpose.msra.mxu0 0.0
  %364 = vmatprep.subr.mxu0 0.0
  %365 = vmatpush1.xpose.msra.mxu0 0.0
  %366 = vmatprep.mubr.f32.mxu0 0.0
  %367 = vmatmul.mubr.f32.gmra.mrb[0].mxu0 %v298
  %v368 = vpop.f32.mrb[0].mxu0
  %v369 = vadd.f32 0.0, %v368
  %v370 = vpop.f32.mrb[0].mxu0
  %371 = vdwg.mxu0
  %v372 = vmul.f32 %v291, 0.35355338
  %v373 = vmul.f32 %v369, 0.35355338
  %v374 = vsel %vm24, 1, 0
  %vm375 = vcmp.eq.s32.totalorder %v374, 1
  %v376 = vsel %vm375, %v372, -3.4028235e+38
  %v377 = vsel %vm375, %v373, -3.4028235e+38
  %v378 = vsel %vm29, %v376, -inf
  %379 = vmax.xlane.f32.xlu0 %v378
  %v380 = vpop.xlane.xlu0 %379
  %v381 = vsel %vm29, %v377, -inf
  %382 = vmax.xlane.f32.xlu0 %v381
  %v383 = vpop.xlane.xlu0 %382
  %v384 = vsub.f32 %v376, %v380
  %v385 = vsub.f32 %v377, %v383
  %v386 = vmul.f32 %v384, 1.442695
  %v387 = vpow.pop %v386
  %v388 = vmul.f32 %v385, 1.442695
  %v389 = vpow.pop %v388
  %v390 = vsel %vm29, %v387, 0.0
  %391 = vadd.xlane.f32.xlu0 %v390
  %v392 = vpop.xlane.xlu0 %391
  %v393 = vsel %vm29, %v389, 0.0
  %394 = vadd.xlane.f32.xlu0 %v393
  %v395 = vpop.xlane.xlu0 %394
  %v396 = vrcp.pop %v392
  %v397 = vrcp.pop %v395
  %v398 = vmul.f32 %v387, %v396
  %v399 = vmul.f32 %v389, %v397
  %400 = vrot.lane.b32.xlu0 %v25, 64
  %v401 = vpop.permute.xlu0 %400
  %v404 = vsel %vm29, %v398, 0
  %406 = vmatprep.subr.mxu0 0.0
  %407 = vmatpush1.msra.mxu0 %v401
  %408 = vmatprep.subr.mxu0 0.0
  %409 = vmatpush1.msra.mxu0 0.0
  %410 = vmatprep.subr.mxu0 0.0
  %411 = vmatpush1.msra.mxu0 0.0
  %412 = vmatprep.subr.mxu0 0.0
  %413 = vmatpush1.msra.mxu0 0.0
  %414 = vmatprep.subr.mxu0 0.0
  %415 = vmatpush1.msra.mxu0 0.0
  %416 = vmatprep.subr.mxu0 0.0
  %417 = vmatpush1.msra.mxu0 0.0
  %418 = vmatprep.subr.mxu0 0.0
  %419 = vmatpush1.msra.mxu0 0.0
  %420 = vmatprep.subr.mxu0 0.0
  %421 = vmatpush1.msra.mxu0 0.0
  %422 = vmatprep.subr.mxu0 0.0
  %423 = vmatpush1.msra.mxu0 0.0
  %424 = vmatprep.subr.mxu0 0.0
  %425 = vmatpush1.msra.mxu0 0.0
  %426 = vmatprep.subr.mxu0 0.0
  %427 = vmatpush1.msra.mxu0 0.0
  %428 = vmatprep.subr.mxu0 0.0
  %429 = vmatpush1.msra.mxu0 0.0
  %430 = vmatprep.subr.mxu0 0.0
  %431 = vmatpush1.msra.mxu0 0.0
  %432 = vmatprep.subr.mxu0 0.0
  %433 = vmatpush1.msra.mxu0 0.0
  %434 = vmatprep.subr.mxu0 0.0
  %435 = vmatpush1.msra.mxu0 0.0
  %436 = vmatprep.subr.mxu0 0.0
  %437 = vmatpush1.msra.mxu0 0.0
  %438 = vmatprep.subr.mxu0 0.0
  %439 = vmatpush1.msra.mxu0 0.0
  %440 = vmatprep.subr.mxu0 0.0
  %441 = vmatpush1.msra.mxu0 0.0
  %442 = vmatprep.subr.mxu0 0.0
  %443 = vmatpush1.msra.mxu0 0.0
  %444 = vmatprep.subr.mxu0 0.0
  %445 = vmatpush1.msra.mxu0 0.0
  %446 = vmatprep.subr.mxu0 0.0
  %447 = vmatpush1.msra.mxu0 0.0
  %448 = vmatprep.subr.mxu0 0.0
  %449 = vmatpush1.msra.mxu0 0.0
  %450 = vmatprep.subr.mxu0 0.0
  %451 = vmatpush1.msra.mxu0 0.0
  %452 = vmatprep.subr.mxu0 0.0
  %453 = vmatpush1.msra.mxu0 0.0
  %454 = vmatprep.subr.mxu0 0.0
  %455 = vmatpush1.msra.mxu0 0.0
  %456 = vmatprep.subr.mxu0 0.0
  %457 = vmatpush1.msra.mxu0 0.0
  %458 = vmatprep.subr.mxu0 0.0
  %459 = vmatpush1.msra.mxu0 0.0
  %460 = vmatprep.subr.mxu0 0.0
  %461 = vmatpush1.msra.mxu0 0.0
  %462 = vmatprep.subr.mxu0 0.0
  %463 = vmatpush1.msra.mxu0 0.0
  %464 = vmatprep.subr.mxu0 0.0
  %465 = vmatpush1.msra.mxu0 0.0
  %466 = vmatprep.subr.mxu0 0.0
  %467 = vmatpush1.msra.mxu0 0.0
  %468 = vmatprep.subr.mxu0 0.0
  %469 = vmatpush1.msra.mxu0 0.0
  %470 = vmatprep.mubr.f32.mxu0 0.0
  %471 = vmatmul.mubr.f32.gmra.mrb[0].mxu0 %v404
  %v472 = vpop.f32.mrb[0].mxu0
  %v473 = vadd.f32 0.0, %v472
  %v474 = vpop.f32.mrb[0].mxu0
  %475 = vdwg.mxu0
  %476 = vrot.lane.b32.xlu0 %v26, 64
  %v477 = vpop.permute.xlu0 %476
  %v480 = vsel %vm29, %v399, 0
  %482 = vmatprep.subr.mxu0 0.0
  %483 = vmatpush1.msra.mxu0 %v477
  %484 = vmatprep.subr.mxu0 0.0
  %485 = vmatpush1.msra.mxu0 0.0
  %486 = vmatprep.subr.mxu0 0.0
  %487 = vmatpush1.msra.mxu0 0.0
  %488 = vmatprep.subr.mxu0 0.0
  %489 = vmatpush1.msra.mxu0 0.0
  %490 = vmatprep.subr.mxu0 0.0
  %491 = vmatpush1.msra.mxu0 0.0
  %492 = vmatprep.subr.mxu0 0.0
  %493 = vmatpush1.msra.mxu0 0.0
  %494 = vmatprep.subr.mxu0 0.0
  %495 = vmatpush1.msra.mxu0 0.0
  %496 = vmatprep.subr.mxu0 0.0
  %497 = vmatpush1.msra.mxu0 0.0
  %498 = vmatprep.subr.mxu0 0.0
  %499 = vmatpush1.msra.mxu0 0.0
  %500 = vmatprep.subr.mxu0 0.0
  %501 = vmatpush1.msra.mxu0 0.0
  %502 = vmatprep.subr.mxu0 0.0
  %503 = vmatpush1.msra.mxu0 0.0
  %504 = vmatprep.subr.mxu0 0.0
  %505 = vmatpush1.msra.mxu0 0.0
  %506 = vmatprep.subr.mxu0 0.0
  %507 = vmatpush1.msra.mxu0 0.0
  %508 = vmatprep.subr.mxu0 0.0
  %509 = vmatpush1.msra.mxu0 0.0
  %510 = vmatprep.subr.mxu0 0.0
  %511 = vmatpush1.msra.mxu0 0.0
  %512 = vmatprep.subr.mxu0 0.0
  %513 = vmatpush1.msra.mxu0 0.0
  %514 = vmatprep.subr.mxu0 0.0
  %515 = vmatpush1.msra.mxu0 0.0
  %516 = vmatprep.subr.mxu0 0.0
  %517 = vmatpush1.msra.mxu0 0.0
  %518 = vmatprep.subr.mxu0 0.0
  %519 = vmatpush1.msra.mxu0 0.0
  %520 = vmatprep.subr.mxu0 0.0
  %521 = vmatpush1.msra.mxu0 0.0
  %522 = vmatprep.subr.mxu0 0.0
  %523 = vmatpush1.msra.mxu0 0.0
  %524 = vmatprep.subr.mxu0 0.0
  %525 = vmatpush1.msra.mxu0 0.0
  %526 = vmatprep.subr.mxu0 0.0
  %527 = vmatpush1.msra.mxu0 0.0
  %528 = vmatprep.subr.mxu0 0.0
  %529 = vmatpush1.msra.mxu0 0.0
  %530 = vmatprep.subr.mxu0 0.0
  %531 = vmatpush1.msra.mxu0 0.0
  %532 = vmatprep.subr.mxu0 0.0
  %533 = vmatpush1.msra.mxu0 0.0
  %534 = vmatprep.subr.mxu0 0.0
  %535 = vmatpush1.msra.mxu0 0.0
  %536 = vmatprep.subr.mxu0 0.0
  %537 = vmatpush1.msra.mxu0 0.0
  %538 = vmatprep.subr.mxu0 0.0
  %539 = vmatpush1.msra.mxu0 0.0
  %540 = vmatprep.subr.mxu0 0.0
  %541 = vmatpush1.msra.mxu0 0.0
  %542 = vmatprep.subr.mxu0 0.0
  %543 = vmatpush1.msra.mxu0 0.0
  %544 = vmatprep.subr.mxu0 0.0
  %545 = vmatpush1.msra.mxu0 0.0
  %546 = vmatprep.mubr.f32.mxu0 0.0
  %547 = vmatmul.mubr.f32.gmra.mrb[0].mxu0 %v480
  %v548 = vpop.f32.mrb[0].mxu0
  %v549 = vadd.f32 0.0, %v548
  %v550 = vpop.f32.mrb[0].mxu0
  %551 = vdwg.mxu0
  %552 = vst.msk [vmem:[%s4] sm:$0xff] %vm29, %v473
  %553 = vst.msk [vmem:[%s4 + $0x8] sm:$0xff] %vm29, %v549
  %v554 = vld [vmem:[%s0] sm:$0xff]
  %v555 = vld [vmem:[%s0 + $0x8] sm:$0xff]
  %556 = vrot.lane.b32.xlu0 %v17, 8
  %v557 = vpop.permute.xlu0 %556
  %v559 = vmul.f32 %v554, %v557
  %v560 = vmul.f32 %v555, %v557
  %563 = vrot.lane.b32.xlu0 %v554, 120
  %v564 = vpop.permute.xlu0 %563
  %565 = vrot.lane.b32.xlu0 %v555, 120
  %v566 = vpop.permute.xlu0 %565
  %v567 = vsel %vm29, %v564, 0
  %v569 = vsel %vm29, %v566, 0
  %571 = vmatprep.subr.mxu0 0.0
  %572 = vmatpush1.msra.mxu0 %v19
  %573 = vmatprep.subr.mxu0 0.0
  %574 = vmatpush1.msra.mxu0 0.0
  %575 = vmatprep.subr.mxu0 0.0
  %576 = vmatpush1.msra.mxu0 0.0
  %577 = vmatprep.subr.mxu0 0.0
  %578 = vmatpush1.msra.mxu0 0.0
  %579 = vmatprep.subr.mxu0 0.0
  %580 = vmatpush1.msra.mxu0 0.0
  %581 = vmatprep.subr.mxu0 0.0
  %582 = vmatpush1.msra.mxu0 0.0
  %583 = vmatprep.subr.mxu0 0.0
  %584 = vmatpush1.msra.mxu0 0.0
  %585 = vmatprep.subr.mxu0 0.0
  %586 = vmatpush1.msra.mxu0 0.0
  %587 = vmatprep.subr.mxu0 0.0
  %588 = vmatpush1.msra.mxu0 0.0
  %589 = vmatprep.subr.mxu0 0.0
  %590 = vmatpush1.msra.mxu0 0.0
  %591 = vmatprep.subr.mxu0 0.0
  %592 = vmatpush1.msra.mxu0 0.0
  %593 = vmatprep.subr.mxu0 0.0
  %594 = vmatpush1.msra.mxu0 0.0
  %595 = vmatprep.subr.mxu0 0.0
  %596 = vmatpush1.msra.mxu0 0.0
  %597 = vmatprep.subr.mxu0 0.0
  %598 = vmatpush1.msra.mxu0 0.0
  %599 = vmatprep.subr.mxu0 0.0
  %600 = vmatpush1.msra.mxu0 0.0
  %601 = vmatprep.subr.mxu0 0.0
  %602 = vmatpush1.msra.mxu0 0.0
  %603 = vmatprep.subr.mxu0 0.0
  %604 = vmatpush1.msra.mxu0 0.0
  %605 = vmatprep.subr.mxu0 0.0
  %606 = vmatpush1.msra.mxu0 0.0
  %607 = vmatprep.subr.mxu0 0.0
  %608 = vmatpush1.msra.mxu0 0.0
  %609 = vmatprep.subr.mxu0 0.0
  %610 = vmatpush1.msra.mxu0 0.0
  %611 = vmatprep.subr.mxu0 0.0
  %612 = vmatpush1.msra.mxu0 0.0
  %613 = vmatprep.subr.mxu0 0.0
  %614 = vmatpush1.msra.mxu0 0.0
  %615 = vmatprep.subr.mxu0 0.0
  %616 = vmatpush1.msra.mxu0 0.0
  %617 = vmatprep.subr.mxu0 0.0
  %618 = vmatpush1.msra.mxu0 0.0
  %619 = vmatprep.subr.mxu0 0.0
  %620 = vmatpush1.msra.mxu0 0.0
  %621 = vmatprep.subr.mxu0 0.0
  %622 = vmatpush1.msra.mxu0 0.0
  %623 = vmatprep.subr.mxu0 0.0
  %624 = vmatpush1.msra.mxu0 0.0
  %625 = vmatprep.subr.mxu0 0.0
  %626 = vmatpush1.msra.mxu0 0.0
  %627 = vmatprep.subr.mxu0 0.0
  %628 = vmatpush1.msra.mxu0 0.0
  %629 = vmatprep.subr.mxu0 0.0
  %630 = vmatpush1.msra.mxu0 0.0
  %631 = vmatprep.subr.mxu0 0.0
  %632 = vmatpush1.msra.mxu0 0.0
  %633 = vmatprep.subr.mxu0 0.0
  %634 = vmatpush1.msra.mxu0 0.0
  %635 = vmatprep.mubr.f32.mxu0 0.0
  %636 = vmatmul.mubr.f32.gmra.mrb[0].mxu0 %v567
  %v637 = vpop.f32.mrb[0].mxu0
  %v638 = vadd.f32 0.0, %v637
  %v639 = vpop.f32.mrb[0].mxu0
  %640 = vmatprep.mubr.f32.mxu0 0.0
  %641 = vmatmul.mubr.f32.gmra.mrb[0].mxu0 %v569
  %v642 = vpop.f32.mrb[0].mxu0
  %v643 = vadd.f32 0.0, %v642
  %v644 = vpop.f32.mrb[0].mxu0
  %645 = vdwg.mxu0
  %v646 = vmul.f32 %v638, %v18
  %v647 = vmul.f32 %v643, %v18
  %650 = vrot.lane.b32.xlu0 %v646, 8
  %v651 = vpop.permute.xlu0 %650
  %652 = vrot.lane.b32.xlu0 %v647, 8
  %v653 = vpop.permute.xlu0 %652
  %v656 = vadd.f32 %v559, %v651
  %v657 = vadd.f32 %v560, %v653
  %658 = vrot.lane.b32.xlu0 %v17, 40
  %v659 = vpop.permute.xlu0 %658
  %v661 = vmul.f32 %v554, %v659
  %v662 = vmul.f32 %v555, %v659
  %663 = vrot.lane.b32.xlu0 %v554, 88
  %v664 = vpop.permute.xlu0 %663
  %665 = vrot.lane.b32.xlu0 %v555, 88
  %v666 = vpop.permute.xlu0 %665
  %v667 = vsel %vm29, %v664, 0
  %v669 = vsel %vm29, %v666, 0
  %671 = vmatprep.subr.mxu0 0.0
  %672 = vmatpush1.msra.mxu0 %v19
  %673 = vmatprep.subr.mxu0 0.0
  %674 = vmatpush1.msra.mxu0 0.0
  %675 = vmatprep.subr.mxu0 0.0
  %676 = vmatpush1.msra.mxu0 0.0
  %677 = vmatprep.subr.mxu0 0.0
  %678 = vmatpush1.msra.mxu0 0.0
  %679 = vmatprep.subr.mxu0 0.0
  %680 = vmatpush1.msra.mxu0 0.0
  %681 = vmatprep.subr.mxu0 0.0
  %682 = vmatpush1.msra.mxu0 0.0
  %683 = vmatprep.subr.mxu0 0.0
  %684 = vmatpush1.msra.mxu0 0.0
  %685 = vmatprep.subr.mxu0 0.0
  %686 = vmatpush1.msra.mxu0 0.0
  %687 = vmatprep.subr.mxu0 0.0
  %688 = vmatpush1.msra.mxu0 0.0
  %689 = vmatprep.subr.mxu0 0.0
  %690 = vmatpush1.msra.mxu0 0.0
  %691 = vmatprep.subr.mxu0 0.0
  %692 = vmatpush1.msra.mxu0 0.0
  %693 = vmatprep.subr.mxu0 0.0
  %694 = vmatpush1.msra.mxu0 0.0
  %695 = vmatprep.subr.mxu0 0.0
  %696 = vmatpush1.msra.mxu0 0.0
  %697 = vmatprep.subr.mxu0 0.0
  %698 = vmatpush1.msra.mxu0 0.0
  %699 = vmatprep.subr.mxu0 0.0
  %700 = vmatpush1.msra.mxu0 0.0
  %701 = vmatprep.subr.mxu0 0.0
  %702 = vmatpush1.msra.mxu0 0.0
  %703 = vmatprep.subr.mxu0 0.0
  %704 = vmatpush1.msra.mxu0 0.0
  %705 = vmatprep.subr.mxu0 0.0
  %706 = vmatpush1.msra.mxu0 0.0
  %707 = vmatprep.subr.mxu0 0.0
  %708 = vmatpush1.msra.mxu0 0.0
  %709 = vmatprep.subr.mxu0 0.0
  %710 = vmatpush1.msra.mxu0 0.0
  %711 = vmatprep.subr.mxu0 0.0
  %712 = vmatpush1.msra.mxu0 0.0
  %713 = vmatprep.subr.mxu0 0.0
  %714 = vmatpush1.msra.mxu0 0.0
  %715 = vmatprep.subr.mxu0 0.0
  %716 = vmatpush1.msra.mxu0 0.0
  %717 = vmatprep.subr.mxu0 0.0
  %718 = vmatpush1.msra.mxu0 0.0
  %719 = vmatprep.subr.mxu0 0.0
  %720 = vmatpush1.msra.mxu0 0.0
  %721 = vmatprep.subr.mxu0 0.0
  %722 = vmatpush1.msra.mxu0 0.0
  %723 = vmatprep.subr.mxu0 0.0
  %724 = vmatpush1.msra.mxu0 0.0
  %725 = vmatprep.subr.mxu0 0.0
  %726 = vmatpush1.msra.mxu0 0.0
  %727 = vmatprep.subr.mxu0 0.0
  %728 = vmatpush1.msra.mxu0 0.0
  %729 = vmatprep.subr.mxu0 0.0
  %730 = vmatpush1.msra.mxu0 0.0
  %731 = vmatprep.subr.mxu0 0.0
  %732 = vmatpush1.msra.mxu0 0.0
  %733 = vmatprep.subr.mxu0 0.0
  %734 = vmatpush1.msra.mxu0 0.0
  %735 = vmatprep.mubr.f32.mxu0 0.0
  %736 = vmatmul.mubr.f32.gmra.mrb[0].mxu0 %v667
  %v737 = vpop.f32.mrb[0].mxu0
  %v738 = vadd.f32 0.0, %v737
  %v739 = vpop.f32.mrb[0].mxu0
  %740 = vmatprep.mubr.f32.mxu0 0.0
  %741 = vmatmul.mubr.f32.gmra.mrb[0].mxu0 %v669
  %v742 = vpop.f32.mrb[0].mxu0
  %v743 = vadd.f32 0.0, %v742
  %v744 = vpop.f32.mrb[0].mxu0
  %745 = vdwg.mxu0
  %v746 = vmul.f32 %v738, %v18
  %v747 = vmul.f32 %v743, %v18
  %750 = vrot.lane.b32.xlu0 %v746, 40
  %v751 = vpop.permute.xlu0 %750
  %752 = vrot.lane.b32.xlu0 %v747, 40
  %v753 = vpop.permute.xlu0 %752
  %v756 = vadd.f32 %v661, %v751
  %v757 = vadd.f32 %v662, %v753
  %759 = vrot.lane.b32.xlu0 %v656, 120
  %v760 = vpop.permute.xlu0 %759
  %762 = vrot.lane.b32.xlu0 %v756, 88
  %v763 = vpop.permute.xlu0 %762
  %v764 = vsel %vm29, %v760, 0
  %v766 = vsel %vm29, %v763, 0
  %768 = vmatprep.subr.mxu0 0.0
  %769 = vmatpush1.xpose.msra.mxu0 %v766
  %770 = vmatprep.subr.mxu0 0.0
  %771 = vmatpush1.xpose.msra.mxu0 0.0
  %772 = vmatprep.subr.mxu0 0.0
  %773 = vmatpush1.xpose.msra.mxu0 0.0
  %774 = vmatprep.subr.mxu0 0.0
  %775 = vmatpush1.xpose.msra.mxu0 0.0
  %776 = vmatprep.subr.mxu0 0.0
  %777 = vmatpush1.xpose.msra.mxu0 0.0
  %778 = vmatprep.subr.mxu0 0.0
  %779 = vmatpush1.xpose.msra.mxu0 0.0
  %780 = vmatprep.subr.mxu0 0.0
  %781 = vmatpush1.xpose.msra.mxu0 0.0
  %782 = vmatprep.subr.mxu0 0.0
  %783 = vmatpush1.xpose.msra.mxu0 0.0
  %784 = vmatprep.subr.mxu0 0.0
  %785 = vmatpush1.xpose.msra.mxu0 0.0
  %786 = vmatprep.subr.mxu0 0.0
  %787 = vmatpush1.xpose.msra.mxu0 0.0
  %788 = vmatprep.subr.mxu0 0.0
  %789 = vmatpush1.xpose.msra.mxu0 0.0
  %790 = vmatprep.subr.mxu0 0.0
  %791 = vmatpush1.xpose.msra.mxu0 0.0
  %792 = vmatprep.subr.mxu0 0.0
  %793 = vmatpush1.xpose.msra.mxu0 0.0
  %794 = vmatprep.subr.mxu0 0.0
  %795 = vmatpush1.xpose.msra.mxu0 0.0
  %796 = vmatprep.subr.mxu0 0.0
  %797 = vmatpush1.xpose.msra.mxu0 0.0
  %798 = vmatprep.subr.mxu0 0.0
  %799 = vmatpush1.xpose.msra.mxu0 0.0
  %800 = vmatprep.subr.mxu0 0.0
  %801 = vmatpush1.xpose.msra.mxu0 0.0
  %802 = vmatprep.subr.mxu0 0.0
  %803 = vmatpush1.xpose.msra.mxu0 0.0
  %804 = vmatprep.subr.mxu0 0.0
  %805 = vmatpush1.xpose.msra.mxu0 0.0
  %806 = vmatprep.subr.mxu0 0.0
  %807 = vmatpush1.xpose.msra.mxu0 0.0
  %808 = vmatprep.subr.mxu0 0.0
  %809 = vmatpush1.xpose.msra.mxu0 0.0
  %810 = vmatprep.subr.mxu0 0.0
  %811 = vmatpush1.xpose.msra.mxu0 0.0
  %812 = vmatprep.subr.mxu0 0.0
  %813 = vmatpush1.xpose.msra.mxu0 0.0
  %814 = vmatprep.subr.mxu0 0.0
  %815 = vmatpush1.xpose.msra.mxu0 0.0
  %816 = vmatprep.subr.mxu0 0.0
  %817 = vmatpush1.xpose.msra.mxu0 0.0
  %818 = vmatprep.subr.mxu0 0.0
  %819 = vmatpush1.xpose.msra.mxu0 0.0
  %820 = vmatprep.subr.mxu0 0.0
  %821 = vmatpush1.xpose.msra.mxu0 0.0
  %822 = vmatprep.subr.mxu0 0.0
  %823 = vmatpush1.xpose.msra.mxu0 0.0
  %824 = vmatprep.subr.mxu0 0.0
  %825 = vmatpush1.xpose.msra.mxu0 0.0
  %826 = vmatprep.subr.mxu0 0.0
  %827 = vmatpush1.xpose.msra.mxu0 0.0
  %828 = vmatprep.subr.mxu0 0.0
  %829 = vmatpush1.xpose.msra.mxu0 0.0
  %830 = vmatprep.subr.mxu0 0.0
  %831 = vmatpush1.xpose.msra.mxu0 0.0
  %832 = vmatprep.mubr.f32.mxu0 0.0
  %833 = vmatmul.mubr.f32.gmra.mrb[0].mxu0 %v764
  %v834 = vpop.f32.mrb[0].mxu0
  %v835 = vadd.f32 0.0, %v834
  %v836 = vpop.f32.mrb[0].mxu0
  %837 = vdwg.mxu0
  %839 = vrot.lane.b32.xlu0 %v657, 120
  %v840 = vpop.permute.xlu0 %839
  %842 = vrot.lane.b32.xlu0 %v757, 88
  %v843 = vpop.permute.xlu0 %842
  %v844 = vsel %vm29, %v840, 0
  %v846 = vsel %vm29, %v843, 0
  %848 = vmatprep.subr.mxu0 0.0
  %849 = vmatpush1.xpose.msra.mxu0 %v846
  %850 = vmatprep.subr.mxu0 0.0
  %851 = vmatpush1.xpose.msra.mxu0 0.0
  %852 = vmatprep.subr.mxu0 0.0
  %853 = vmatpush1.xpose.msra.mxu0 0.0
  %854 = vmatprep.subr.mxu0 0.0
  %855 = vmatpush1.xpose.msra.mxu0 0.0
  %856 = vmatprep.subr.mxu0 0.0
  %857 = vmatpush1.xpose.msra.mxu0 0.0
  %858 = vmatprep.subr.mxu0 0.0
  %859 = vmatpush1.xpose.msra.mxu0 0.0
  %860 = vmatprep.subr.mxu0 0.0
  %861 = vmatpush1.xpose.msra.mxu0 0.0
  %862 = vmatprep.subr.mxu0 0.0
  %863 = vmatpush1.xpose.msra.mxu0 0.0
  %864 = vmatprep.subr.mxu0 0.0
  %865 = vmatpush1.xpose.msra.mxu0 0.0
  %866 = vmatprep.subr.mxu0 0.0
  %867 = vmatpush1.xpose.msra.mxu0 0.0
  %868 = vmatprep.subr.mxu0 0.0
  %869 = vmatpush1.xpose.msra.mxu0 0.0
  %870 = vmatprep.subr.mxu0 0.0
  %871 = vmatpush1.xpose.msra.mxu0 0.0
  %872 = vmatprep.subr.mxu0 0.0
  %873 = vmatpush1.xpose.msra.mxu0 0.0
  %874 = vmatprep.subr.mxu0 0.0
  %875 = vmatpush1.xpose.msra.mxu0 0.0
  %876 = vmatprep.subr.mxu0 0.0
  %877 = vmatpush1.xpose.msra.mxu0 0.0
  %878 = vmatprep.subr.mxu0 0.0
  %879 = vmatpush1.xpose.msra.mxu0 0.0
  %880 = vmatprep.subr.mxu0 0.0
  %881 = vmatpush1.xpose.msra.mxu0 0.0
  %882 = vmatprep.subr.mxu0 0.0
  %883 = vmatpush1.xpose.msra.mxu0 0.0
  %884 = vmatprep.subr.mxu0 0.0
  %885 = vmatpush1.xpose.msra.mxu0 0.0
  %886 = vmatprep.subr.mxu0 0.0
  %887 = vmatpush1.xpose.msra.mxu0 0.0
  %888 = vmatprep.subr.mxu0 0.0
  %889 = vmatpush1.xpose.msra.mxu0 0.0
  %890 = vmatprep.subr.mxu0 0.0
  %891 = vmatpush1.xpose.msra.mxu0 0.0
  %892 = vmatprep.subr.mxu0 0.0
  %893 = vmatpush1.xpose.msra.mxu0 0.0
  %894 = vmatprep.subr.mxu0 0.0
  %895 = vmatpush1.xpose.msra.mxu0 0.0
  %896 = vmatprep.subr.mxu0 0.0
  %897 = vmatpush1.xpose.msra.mxu0 0.0
  %898 = vmatprep.subr.mxu0 0.0
  %899 = vmatpush1.xpose.msra.mxu0 0.0
  %900 = vmatprep.subr.mxu0 0.0
  %901 = vmatpush1.xpose.msra.mxu0 0.0
  %902 = vmatprep.subr.mxu0 0.0
  %903 = vmatpush1.xpose.msra.mxu0 0.0
  %904 = vmatprep.subr.mxu0 0.0
  %905 = vmatpush1.xpose.msra.mxu0 0.0
  %906 = vmatprep.subr.mxu0 0.0
  %907 = vmatpush1.xpose.msra.mxu0 0.0
  %908 = vmatprep.subr.mxu0 0.0
  %909 = vmatpush1.xpose.msra.mxu0 0.0
  %910 = vmatprep.subr.mxu0 0.0
  %911 = vmatpush1.xpose.msra.mxu0 0.0
  %912 = vmatprep.mubr.f32.mxu0 0.0
  %913 = vmatmul.mubr.f32.gmra.mrb[0].mxu0 %v844
  %v914 = vpop.f32.mrb[0].mxu0
  %v915 = vadd.f32 0.0, %v914
  %v916 = vpop.f32.mrb[0].mxu0
  %917 = vdwg.mxu0
  %v918 = vmul.f32 %v835, 0.35355338
  %v919 = vmul.f32 %v915, 0.35355338
  %v920 = vsel %vm375, %v918, -3.4028235e+38
  %v921 = vsel %vm375, %v919, -3.4028235e+38
  %v922 = vsel %vm29, %v920, -inf
  %923 = vmax.xlane.f32.xlu0 %v922
  %v924 = vpop.xlane.xlu0 %923
  %v925 = vsel %vm29, %v921, -inf
  %926 = vmax.xlane.f32.xlu0 %v925
  %v927 = vpop.xlane.xlu0 %926
  %v928 = vsub.f32 %v920, %v924
  %v929 = vsub.f32 %v921, %v927
  %v930 = vmul.f32 %v928, 1.442695
  %v931 = vpow.pop %v930
  %v932 = vmul.f32 %v929, 1.442695
  %v933 = vpow.pop %v932
  %v934 = vsel %vm29, %v931, 0.0
  %935 = vadd.xlane.f32.xlu0 %v934
  %v936 = vpop.xlane.xlu0 %935
  %v937 = vsel %vm29, %v933, 0.0
  %938 = vadd.xlane.f32.xlu0 %v937
  %v939 = vpop.xlane.xlu0 %938
  %v940 = vrcp.pop %v936
  %v941 = vrcp.pop %v939
  %v942 = vmul.f32 %v931, %v940
  %v943 = vmul.f32 %v933, %v941
  %944 = vrot.lane.b32.xlu0 %v554, 56
  %v945 = vpop.permute.xlu0 %944
  %v948 = vsel %vm29, %v942, 0
  %950 = vmatprep.subr.mxu0 0.0
  %951 = vmatpush1.msra.mxu0 %v945
  %952 = vmatprep.subr.mxu0 0.0
  %953 = vmatpush1.msra.mxu0 0.0
  %954 = vmatprep.subr.mxu0 0.0
  %955 = vmatpush1.msra.mxu0 0.0
  %956 = vmatprep.subr.mxu0 0.0
  %957 = vmatpush1.msra.mxu0 0.0
  %958 = vmatprep.subr.mxu0 0.0
  %959 = vmatpush1.msra.mxu0 0.0
  %960 = vmatprep.subr.mxu0 0.0
  %961 = vmatpush1.msra.mxu0 0.0
  %962 = vmatprep.subr.mxu0 0.0
  %963 = vmatpush1.msra.mxu0 0.0
  %964 = vmatprep.subr.mxu0 0.0
  %965 = vmatpush1.msra.mxu0 0.0
  %966 = vmatprep.subr.mxu0 0.0
  %967 = vmatpush1.msra.mxu0 0.0
  %968 = vmatprep.subr.mxu0 0.0
  %969 = vmatpush1.msra.mxu0 0.0
  %970 = vmatprep.subr.mxu0 0.0
  %971 = vmatpush1.msra.mxu0 0.0
  %972 = vmatprep.subr.mxu0 0.0
  %973 = vmatpush1.msra.mxu0 0.0
  %974 = vmatprep.subr.mxu0 0.0
  %975 = vmatpush1.msra.mxu0 0.0
  %976 = vmatprep.subr.mxu0 0.0
  %977 = vmatpush1.msra.mxu0 0.0
  %978 = vmatprep.subr.mxu0 0.0
  %979 = vmatpush1.msra.mxu0 0.0
  %980 = vmatprep.subr.mxu0 0.0
  %981 = vmatpush1.msra.mxu0 0.0
  %982 = vmatprep.subr.mxu0 0.0
  %983 = vmatpush1.msra.mxu0 0.0
  %984 = vmatprep.subr.mxu0 0.0
  %985 = vmatpush1.msra.mxu0 0.0
  %986 = vmatprep.subr.mxu0 0.0
  %987 = vmatpush1.msra.mxu0 0.0
  %988 = vmatprep.subr.mxu0 0.0
  %989 = vmatpush1.msra.mxu0 0.0
  %990 = vmatprep.subr.mxu0 0.0
  %991 = vmatpush1.msra.mxu0 0.0
  %992 = vmatprep.subr.mxu0 0.0
  %993 = vmatpush1.msra.mxu0 0.0
  %994 = vmatprep.subr.mxu0 0.0
  %995 = vmatpush1.msra.mxu0 0.0
  %996 = vmatprep.subr.mxu0 0.0
  %997 = vmatpush1.msra.mxu0 0.0
  %998 = vmatprep.subr.mxu0 0.0
  %999 = vmatpush1.msra.mxu0 0.0
  %1000 = vmatprep.subr.mxu0 0.0
  %1001 = vmatpush1.msra.mxu0 0.0
  %1002 = vmatprep.subr.mxu0 0.0
  %1003 = vmatpush1.msra.mxu0 0.0
  %1004 = vmatprep.subr.mxu0 0.0
  %1005 = vmatpush1.msra.mxu0 0.0
  %1006 = vmatprep.subr.mxu0 0.0
  %1007 = vmatpush1.msra.mxu0 0.0
  %1008 = vmatprep.subr.mxu0 0.0
  %1009 = vmatpush1.msra.mxu0 0.0
  %1010 = vmatprep.subr.mxu0 0.0
  %1011 = vmatpush1.msra.mxu0 0.0
  %1012 = vmatprep.subr.mxu0 0.0
  %1013 = vmatpush1.msra.mxu0 0.0
  %1014 = vmatprep.mubr.f32.mxu0 0.0
  %1015 = vmatmul.mubr.f32.gmra.mrb[0].mxu0 %v948
  %v1016 = vpop.f32.mrb[0].mxu0
  %v1017 = vadd.f32 0.0, %v1016
  %v1018 = vpop.f32.mrb[0].mxu0
  %1019 = vdwg.mxu0
  %1020 = vrot.lane.b32.xlu0 %v555, 56
  %v1021 = vpop.permute.xlu0 %1020
  %v1024 = vsel %vm29, %v943, 0
  %1026 = vmatprep.subr.mxu0 0.0
  %1027 = vmatpush1.msra.mxu0 %v1021
  %1028 = vmatprep.subr.mxu0 0.0
  %1029 = vmatpush1.msra.mxu0 0.0
  %1030 = vmatprep.subr.mxu0 0.0
  %1031 = vmatpush1.msra.mxu0 0.0
  %1032 = vmatprep.subr.mxu0 0.0
  %1033 = vmatpush1.msra.mxu0 0.0
  %1034 = vmatprep.subr.mxu0 0.0
  %1035 = vmatpush1.msra.mxu0 0.0
  %1036 = vmatprep.subr.mxu0 0.0
  %1037 = vmatpush1.msra.mxu0 0.0
  %1038 = vmatprep.subr.mxu0 0.0
  %1039 = vmatpush1.msra.mxu0 0.0
  %1040 = vmatprep.subr.mxu0 0.0
  %1041 = vmatpush1.msra.mxu0 0.0
  %1042 = vmatprep.subr.mxu0 0.0
  %1043 = vmatpush1.msra.mxu0 0.0
  %1044 = vmatprep.subr.mxu0 0.0
  %1045 = vmatpush1.msra.mxu0 0.0
  %1046 = vmatprep.subr.mxu0 0.0
  %1047 = vmatpush1.msra.mxu0 0.0
  %1048 = vmatprep.subr.mxu0 0.0
  %1049 = vmatpush1.msra.mxu0 0.0
  %1050 = vmatprep.subr.mxu0 0.0
  %1051 = vmatpush1.msra.mxu0 0.0
  %1052 = vmatprep.subr.mxu0 0.0
  %1053 = vmatpush1.msra.mxu0 0.0
  %1054 = vmatprep.subr.mxu0 0.0
  %1055 = vmatpush1.msra.mxu0 0.0
  %1056 = vmatprep.subr.mxu0 0.0
  %1057 = vmatpush1.msra.mxu0 0.0
  %1058 = vmatprep.subr.mxu0 0.0
  %1059 = vmatpush1.msra.mxu0 0.0
  %1060 = vmatprep.subr.mxu0 0.0
  %1061 = vmatpush1.msra.mxu0 0.0
  %1062 = vmatprep.subr.mxu0 0.0
  %1063 = vmatpush1.msra.mxu0 0.0
  %1064 = vmatprep.subr.mxu0 0.0
  %1065 = vmatpush1.msra.mxu0 0.0
  %1066 = vmatprep.subr.mxu0 0.0
  %1067 = vmatpush1.msra.mxu0 0.0
  %1068 = vmatprep.subr.mxu0 0.0
  %1069 = vmatpush1.msra.mxu0 0.0
  %1070 = vmatprep.subr.mxu0 0.0
  %1071 = vmatpush1.msra.mxu0 0.0
  %1072 = vmatprep.subr.mxu0 0.0
  %1073 = vmatpush1.msra.mxu0 0.0
  %1074 = vmatprep.subr.mxu0 0.0
  %1075 = vmatpush1.msra.mxu0 0.0
  %1076 = vmatprep.subr.mxu0 0.0
  %1077 = vmatpush1.msra.mxu0 0.0
  %1078 = vmatprep.subr.mxu0 0.0
  %1079 = vmatpush1.msra.mxu0 0.0
  %1080 = vmatprep.subr.mxu0 0.0
  %1081 = vmatpush1.msra.mxu0 0.0
  %1082 = vmatprep.subr.mxu0 0.0
  %1083 = vmatpush1.msra.mxu0 0.0
  %1084 = vmatprep.subr.mxu0 0.0
  %1085 = vmatpush1.msra.mxu0 0.0
  %1086 = vmatprep.subr.mxu0 0.0
  %1087 = vmatpush1.msra.mxu0 0.0
  %1088 = vmatprep.subr.mxu0 0.0
  %1089 = vmatpush1.msra.mxu0 0.0
  %1090 = vmatprep.mubr.f32.mxu0 0.0
  %1091 = vmatmul.mubr.f32.gmra.mrb[0].mxu0 %v1024
  %v1092 = vpop.f32.mrb[0].mxu0
  %v1093 = vadd.f32 0.0, %v1092
  %v1094 = vpop.f32.mrb[0].mxu0
  %1095 = vdwg.mxu0
  %1098 = vrot.lane.b32.xlu0 %v1017, 8
  %v1099 = vpop.permute.xlu0 %1098
  %1100 = vrot.lane.b32.xlu0 %v1093, 8
  %v1101 = vpop.permute.xlu0 %1100
  %vm1104 = vcmask 130112
  %1105 = vst.msk [vmem:[%s4] sm:$0xff] %vm1104, %v1099
  %1106 = vst.msk [vmem:[%s4 + $0x8] sm:$0xff] %vm1104, %v1101
  %v1107 = vld [vmem:[%s0] sm:$0xff]
  %v1108 = vld [vmem:[%s0 + $0x8] sm:$0xff]
  %1109 = vrot.lane.b32.xlu0 %v17, 16
  %v1110 = vpop.permute.xlu0 %1109
  %v1112 = vmul.f32 %v1107, %v1110
  %v1113 = vmul.f32 %v1108, %v1110
  %1116 = vrot.lane.b32.xlu0 %v1107, 112
  %v1117 = vpop.permute.xlu0 %1116
  %1118 = vrot.lane.b32.xlu0 %v1108, 112
  %v1119 = vpop.permute.xlu0 %1118
  %v1120 = vsel %vm29, %v1117, 0
  %v1122 = vsel %vm29, %v1119, 0
  %1124 = vmatprep.subr.mxu0 0.0
  %1125 = vmatpush1.msra.mxu0 %v19
  %1126 = vmatprep.subr.mxu0 0.0
  %1127 = vmatpush1.msra.mxu0 0.0
  %1128 = vmatprep.subr.mxu0 0.0
  %1129 = vmatpush1.msra.mxu0 0.0
  %1130 = vmatprep.subr.mxu0 0.0
  %1131 = vmatpush1.msra.mxu0 0.0
  %1132 = vmatprep.subr.mxu0 0.0
  %1133 = vmatpush1.msra.mxu0 0.0
  %1134 = vmatprep.subr.mxu0 0.0
  %1135 = vmatpush1.msra.mxu0 0.0
  %1136 = vmatprep.subr.mxu0 0.0
  %1137 = vmatpush1.msra.mxu0 0.0
  %1138 = vmatprep.subr.mxu0 0.0
  %1139 = vmatpush1.msra.mxu0 0.0
  %1140 = vmatprep.subr.mxu0 0.0
  %1141 = vmatpush1.msra.mxu0 0.0
  %1142 = vmatprep.subr.mxu0 0.0
  %1143 = vmatpush1.msra.mxu0 0.0
  %1144 = vmatprep.subr.mxu0 0.0
  %1145 = vmatpush1.msra.mxu0 0.0
  %1146 = vmatprep.subr.mxu0 0.0
  %1147 = vmatpush1.msra.mxu0 0.0
  %1148 = vmatprep.subr.mxu0 0.0
  %1149 = vmatpush1.msra.mxu0 0.0
  %1150 = vmatprep.subr.mxu0 0.0
  %1151 = vmatpush1.msra.mxu0 0.0
  %1152 = vmatprep.subr.mxu0 0.0
  %1153 = vmatpush1.msra.mxu0 0.0
  %1154 = vmatprep.subr.mxu0 0.0
  %1155 = vmatpush1.msra.mxu0 0.0
  %1156 = vmatprep.subr.mxu0 0.0
  %1157 = vmatpush1.msra.mxu0 0.0
  %1158 = vmatprep.subr.mxu0 0.0
  %1159 = vmatpush1.msra.mxu0 0.0
  %1160 = vmatprep.subr.mxu0 0.0
  %1161 = vmatpush1.msra.mxu0 0.0
  %1162 = vmatprep.subr.mxu0 0.0
  %1163 = vmatpush1.msra.mxu0 0.0
  %1164 = vmatprep.subr.mxu0 0.0
  %1165 = vmatpush1.msra.mxu0 0.0
  %1166 = vmatprep.subr.mxu0 0.0
  %1167 = vmatpush1.msra.mxu0 0.0
  %1168 = vmatprep.subr.mxu0 0.0
  %1169 = vmatpush1.msra.mxu0 0.0
  %1170 = vmatprep.subr.mxu0 0.0
  %1171 = vmatpush1.msra.mxu0 0.0
  %1172 = vmatprep.subr.mxu0 0.0
  %1173 = vmatpush1.msra.mxu0 0.0
  %1174 = vmatprep.subr.mxu0 0.0
  %1175 = vmatpush1.msra.mxu0 0.0
  %1176 = vmatprep.subr.mxu0 0.0
  %1177 = vmatpush1.msra.mxu0 0.0
  %1178 = vmatprep.subr.mxu0 0.0
  %1179 = vmatpush1.msra.mxu0 0.0
  %1180 = vmatprep.subr.mxu0 0.0
  %1181 = vmatpush1.msra.mxu0 0.0
  %1182 = vmatprep.subr.mxu0 0.0
  %1183 = vmatpush1.msra.mxu0 0.0
  %1184 = vmatprep.subr.mxu0 0.0
  %1185 = vmatpush1.msra.mxu0 0.0
  %1186 = vmatprep.subr.mxu0 0.0
  %1187 = vmatpush1.msra.mxu0 0.0
  %1188 = vmatprep.mubr.f32.mxu0 0.0
  %1189 = vmatmul.mubr.f32.gmra.mrb[0].mxu0 %v1120
  %v1190 = vpop.f32.mrb[0].mxu0
  %v1191 = vadd.f32 0.0, %v1190
  %v1192 = vpop.f32.mrb[0].mxu0
  %1193 = vmatprep.mubr.f32.mxu0 0.0
  %1194 = vmatmul.mubr.f32.gmra.mrb[0].mxu0 %v1122
  %v1195 = vpop.f32.mrb[0].mxu0
  %v1196 = vadd.f32 0.0, %v1195
  %v1197 = vpop.f32.mrb[0].mxu0
  %1198 = vdwg.mxu0
  %v1199 = vmul.f32 %v1191, %v18
  %v1200 = vmul.f32 %v1196, %v18
  %1203 = vrot.lane.b32.xlu0 %v1199, 16
  %v1204 = vpop.permute.xlu0 %1203
  %1205 = vrot.lane.b32.xlu0 %v1200, 16
  %v1206 = vpop.permute.xlu0 %1205
  %v1209 = vadd.f32 %v1112, %v1204
  %v1210 = vadd.f32 %v1113, %v1206
  %1211 = vrot.lane.b32.xlu0 %v17, 48
  %v1212 = vpop.permute.xlu0 %1211
  %v1214 = vmul.f32 %v1107, %v1212
  %v1215 = vmul.f32 %v1108, %v1212
  %1216 = vrot.lane.b32.xlu0 %v1107, 80
  %v1217 = vpop.permute.xlu0 %1216
  %1218 = vrot.lane.b32.xlu0 %v1108, 80
  %v1219 = vpop.permute.xlu0 %1218
  %v1220 = vsel %vm29, %v1217, 0
  %v1222 = vsel %vm29, %v1219, 0
  %1224 = vmatprep.subr.mxu0 0.0
  %1225 = vmatpush1.msra.mxu0 %v19
  %1226 = vmatprep.subr.mxu0 0.0
  %1227 = vmatpush1.msra.mxu0 0.0
  %1228 = vmatprep.subr.mxu0 0.0
  %1229 = vmatpush1.msra.mxu0 0.0
  %1230 = vmatprep.subr.mxu0 0.0
  %1231 = vmatpush1.msra.mxu0 0.0
  %1232 = vmatprep.subr.mxu0 0.0
  %1233 = vmatpush1.msra.mxu0 0.0
  %1234 = vmatprep.subr.mxu0 0.0
  %1235 = vmatpush1.msra.mxu0 0.0
  %1236 = vmatprep.subr.mxu0 0.0
  %1237 = vmatpush1.msra.mxu0 0.0
  %1238 = vmatprep.subr.mxu0 0.0
  %1239 = vmatpush1.msra.mxu0 0.0
  %1240 = vmatprep.subr.mxu0 0.0
  %1241 = vmatpush1.msra.mxu0 0.0
  %1242 = vmatprep.subr.mxu0 0.0
  %1243 = vmatpush1.msra.mxu0 0.0
  %1244 = vmatprep.subr.mxu0 0.0
  %1245 = vmatpush1.msra.mxu0 0.0
  %1246 = vmatprep.subr.mxu0 0.0
  %1247 = vmatpush1.msra.mxu0 0.0
  %1248 = vmatprep.subr.mxu0 0.0
  %1249 = vmatpush1.msra.mxu0 0.0
  %1250 = vmatprep.subr.mxu0 0.0
  %1251 = vmatpush1.msra.mxu0 0.0
  %1252 = vmatprep.subr.mxu0 0.0
  %1253 = vmatpush1.msra.mxu0 0.0
  %1254 = vmatprep.subr.mxu0 0.0
  %1255 = vmatpush1.msra.mxu0 0.0
  %1256 = vmatprep.subr.mxu0 0.0
  %1257 = vmatpush1.msra.mxu0 0.0
  %1258 = vmatprep.subr.mxu0 0.0
  %1259 = vmatpush1.msra.mxu0 0.0
  %1260 = vmatprep.subr.mxu0 0.0
  %1261 = vmatpush1.msra.mxu0 0.0
  %1262 = vmatprep.subr.mxu0 0.0
  %1263 = vmatpush1.msra.mxu0 0.0
  %1264 = vmatprep.subr.mxu0 0.0
  %1265 = vmatpush1.msra.mxu0 0.0
  %1266 = vmatprep.subr.mxu0 0.0
  %1267 = vmatpush1.msra.mxu0 0.0
  %1268 = vmatprep.subr.mxu0 0.0
  %1269 = vmatpush1.msra.mxu0 0.0
  %1270 = vmatprep.subr.mxu0 0.0
  %1271 = vmatpush1.msra.mxu0 0.0
  %1272 = vmatprep.subr.mxu0 0.0
  %1273 = vmatpush1.msra.mxu0 0.0
  %1274 = vmatprep.subr.mxu0 0.0
  %1275 = vmatpush1.msra.mxu0 0.0
  %1276 = vmatprep.subr.mxu0 0.0
  %1277 = vmatpush1.msra.mxu0 0.0
  %1278 = vmatprep.subr.mxu0 0.0
  %1279 = vmatpush1.msra.mxu0 0.0
  %1280 = vmatprep.subr.mxu0 0.0
  %1281 = vmatpush1.msra.mxu0 0.0
  %1282 = vmatprep.subr.mxu0 0.0
  %1283 = vmatpush1.msra.mxu0 0.0
  %1284 = vmatprep.subr.mxu0 0.0
  %1285 = vmatpush1.msra.mxu0 0.0
  %1286 = vmatprep.subr.mxu0 0.0
  %1287 = vmatpush1.msra.mxu0 0.0
  %1288 = vmatprep.mubr.f32.mxu0 0.0
  %1289 = vmatmul.mubr.f32.gmra.mrb[0].mxu0 %v1220
  %v1290 = vpop.f32.mrb[0].mxu0
  %v1291 = vadd.f32 0.0, %v1290
  %v1292 = vpop.f32.mrb[0].mxu0
  %1293 = vmatprep.mubr.f32.mxu0 0.0
  %1294 = vmatmul.mubr.f32.gmra.mrb[0].mxu0 %v1222
  %v1295 = vpop.f32.mrb[0].mxu0
  %v1296 = vadd.f32 0.0, %v1295
  %v1297 = vpop.f32.mrb[0].mxu0
  %1298 = vdwg.mxu0
  %v1299 = vmul.f32 %v1291, %v18
  %v1300 = vmul.f32 %v1296, %v18
  %1303 = vrot.lane.b32.xlu0 %v1299, 48
  %v1304 = vpop.permute.xlu0 %1303
  %1305 = vrot.lane.b32.xlu0 %v1300, 48
  %v1306 = vpop.permute.xlu0 %1305
  %v1309 = vadd.f32 %v1214, %v1304
  %v1310 = vadd.f32 %v1215, %v1306
  %1312 = vrot.lane.b32.xlu0 %v1209, 112
  %v1313 = vpop.permute.xlu0 %1312
  %1315 = vrot.lane.b32.xlu0 %v1309, 80
  %v1316 = vpop.permute.xlu0 %1315
  %v1317 = vsel %vm29, %v1313, 0
  %v1319 = vsel %vm29, %v1316, 0
  %1321 = vmatprep.subr.mxu0 0.0
  %1322 = vmatpush1.xpose.msra.mxu0 %v1319
  %1323 = vmatprep.subr.mxu0 0.0
  %1324 = vmatpush1.xpose.msra.mxu0 0.0
  %1325 = vmatprep.subr.mxu0 0.0
  %1326 = vmatpush1.xpose.msra.mxu0 0.0
  %1327 = vmatprep.subr.mxu0 0.0
  %1328 = vmatpush1.xpose.msra.mxu0 0.0
  %1329 = vmatprep.subr.mxu0 0.0
  %1330 = vmatpush1.xpose.msra.mxu0 0.0
  %1331 = vmatprep.subr.mxu0 0.0
  %1332 = vmatpush1.xpose.msra.mxu0 0.0
  %1333 = vmatprep.subr.mxu0 0.0
  %1334 = vmatpush1.xpose.msra.mxu0 0.0
  %1335 = vmatprep.subr.mxu0 0.0
  %1336 = vmatpush1.xpose.msra.mxu0 0.0
  %1337 = vmatprep.subr.mxu0 0.0
  %1338 = vmatpush1.xpose.msra.mxu0 0.0
  %1339 = vmatprep.subr.mxu0 0.0
  %1340 = vmatpush1.xpose.msra.mxu0 0.0
  %1341 = vmatprep.subr.mxu0 0.0
  %1342 = vmatpush1.xpose.msra.mxu0 0.0
  %1343 = vmatprep.subr.mxu0 0.0
  %1344 = vmatpush1.xpose.msra.mxu0 0.0
  %1345 = vmatprep.subr.mxu0 0.0
  %1346 = vmatpush1.xpose.msra.mxu0 0.0
  %1347 = vmatprep.subr.mxu0 0.0
  %1348 = vmatpush1.xpose.msra.mxu0 0.0
  %1349 = vmatprep.subr.mxu0 0.0
  %1350 = vmatpush1.xpose.msra.mxu0 0.0
  %1351 = vmatprep.subr.mxu0 0.0
  %1352 = vmatpush1.xpose.msra.mxu0 0.0
  %1353 = vmatprep.subr.mxu0 0.0
  %1354 = vmatpush1.xpose.msra.mxu0 0.0
  %1355 = vmatprep.subr.mxu0 0.0
  %1356 = vmatpush1.xpose.msra.mxu0 0.0
  %1357 = vmatprep.subr.mxu0 0.0
  %1358 = vmatpush1.xpose.msra.mxu0 0.0
  %1359 = vmatprep.subr.mxu0 0.0
  %1360 = vmatpush1.xpose.msra.mxu0 0.0
  %1361 = vmatprep.subr.mxu0 0.0
  %1362 = vmatpush1.xpose.msra.mxu0 0.0
  %1363 = vmatprep.subr.mxu0 0.0
  %1364 = vmatpush1.xpose.msra.mxu0 0.0
  %1365 = vmatprep.subr.mxu0 0.0
  %1366 = vmatpush1.xpose.msra.mxu0 0.0
  %1367 = vmatprep.subr.mxu0 0.0
  %1368 = vmatpush1.xpose.msra.mxu0 0.0
  %1369 = vmatprep.subr.mxu0 0.0
  %1370 = vmatpush1.xpose.msra.mxu0 0.0
  %1371 = vmatprep.subr.mxu0 0.0
  %1372 = vmatpush1.xpose.msra.mxu0 0.0
  %1373 = vmatprep.subr.mxu0 0.0
  %1374 = vmatpush1.xpose.msra.mxu0 0.0
  %1375 = vmatprep.subr.mxu0 0.0
  %1376 = vmatpush1.xpose.msra.mxu0 0.0
  %1377 = vmatprep.subr.mxu0 0.0
  %1378 = vmatpush1.xpose.msra.mxu0 0.0
  %1379 = vmatprep.subr.mxu0 0.0
  %1380 = vmatpush1.xpose.msra.mxu0 0.0
  %1381 = vmatprep.subr.mxu0 0.0
  %1382 = vmatpush1.xpose.msra.mxu0 0.0
  %1383 = vmatprep.subr.mxu0 0.0
  %1384 = vmatpush1.xpose.msra.mxu0 0.0
  %1385 = vmatprep.mubr.f32.mxu0 0.0
  %1386 = vmatmul.mubr.f32.gmra.mrb[0].mxu0 %v1317
  %v1387 = vpop.f32.mrb[0].mxu0
  %v1388 = vadd.f32 0.0, %v1387
  %v1389 = vpop.f32.mrb[0].mxu0
  %1390 = vdwg.mxu0
  %1392 = vrot.lane.b32.xlu0 %v1210, 112
  %v1393 = vpop.permute.xlu0 %1392
  %1395 = vrot.lane.b32.xlu0 %v1310, 80
  %v1396 = vpop.permute.xlu0 %1395
  %v1397 = vsel %vm29, %v1393, 0
  %v1399 = vsel %vm29, %v1396, 0
  %1401 = vmatprep.subr.mxu0 0.0
  %1402 = vmatpush1.xpose.msra.mxu0 %v1399
  %1403 = vmatprep.subr.mxu0 0.0
  %1404 = vmatpush1.xpose.msra.mxu0 0.0
  %1405 = vmatprep.subr.mxu0 0.0
  %1406 = vmatpush1.xpose.msra.mxu0 0.0
  %1407 = vmatprep.subr.mxu0 0.0
  %1408 = vmatpush1.xpose.msra.mxu0 0.0
  %1409 = vmatprep.subr.mxu0 0.0
  %1410 = vmatpush1.xpose.msra.mxu0 0.0
  %1411 = vmatprep.subr.mxu0 0.0
  %1412 = vmatpush1.xpose.msra.mxu0 0.0
  %1413 = vmatprep.subr.mxu0 0.0
  %1414 = vmatpush1.xpose.msra.mxu0 0.0
  %1415 = vmatprep.subr.mxu0 0.0
  %1416 = vmatpush1.xpose.msra.mxu0 0.0
  %1417 = vmatprep.subr.mxu0 0.0
  %1418 = vmatpush1.xpose.msra.mxu0 0.0
  %1419 = vmatprep.subr.mxu0 0.0
  %1420 = vmatpush1.xpose.msra.mxu0 0.0
  %1421 = vmatprep.subr.mxu0 0.0
  %1422 = vmatpush1.xpose.msra.mxu0 0.0
  %1423 = vmatprep.subr.mxu0 0.0
  %1424 = vmatpush1.xpose.msra.mxu0 0.0
  %1425 = vmatprep.subr.mxu0 0.0
  %1426 = vmatpush1.xpose.msra.mxu0 0.0
  %1427 = vmatprep.subr.mxu0 0.0
  %1428 = vmatpush1.xpose.msra.mxu0 0.0
  %1429 = vmatprep.subr.mxu0 0.0
  %1430 = vmatpush1.xpose.msra.mxu0 0.0
  %1431 = vmatprep.subr.mxu0 0.0
  %1432 = vmatpush1.xpose.msra.mxu0 0.0
  %1433 = vmatprep.subr.mxu0 0.0
  %1434 = vmatpush1.xpose.msra.mxu0 0.0
  %1435 = vmatprep.subr.mxu0 0.0
  %1436 = vmatpush1.xpose.msra.mxu0 0.0
  %1437 = vmatprep.subr.mxu0 0.0
  %1438 = vmatpush1.xpose.msra.mxu0 0.0
  %1439 = vmatprep.subr.mxu0 0.0
  %1440 = vmatpush1.xpose.msra.mxu0 0.0
  %1441 = vmatprep.subr.mxu0 0.0
  %1442 = vmatpush1.xpose.msra.mxu0 0.0
  %1443 = vmatprep.subr.mxu0 0.0
  %1444 = vmatpush1.xpose.msra.mxu0 0.0
  %1445 = vmatprep.subr.mxu0 0.0
  %1446 = vmatpush1.xpose.msra.mxu0 0.0
  %1447 = vmatprep.subr.mxu0 0.0
  %1448 = vmatpush1.xpose.msra.mxu0 0.0
  %1449 = vmatprep.subr.mxu0 0.0
  %1450 = vmatpush1.xpose.msra.mxu0 0.0
  %1451 = vmatprep.subr.mxu0 0.0
  %1452 = vmatpush1.xpose.msra.mxu0 0.0
  %1453 = vmatprep.subr.mxu0 0.0
  %1454 = vmatpush1.xpose.msra.mxu0 0.0
  %1455 = vmatprep.subr.mxu0 0.0
  %1456 = vmatpush1.xpose.msra.mxu0 0.0
  %1457 = vmatprep.subr.mxu0 0.0
  %1458 = vmatpush1.xpose.msra.mxu0 0.0
  %1459 = vmatprep.subr.mxu0 0.0
  %1460 = vmatpush1.xpose.msra.mxu0 0.0
  %1461 = vmatprep.subr.mxu0 0.0
  %1462 = vmatpush1.xpose.msra.mxu0 0.0
  %1463 = vmatprep.subr.mxu0 0.0
  %1464 = vmatpush1.xpose.msra.mxu0 0.0
  %1465 = vmatprep.mubr.f32.mxu0 0.0
  %1466 = vmatmul.mubr.f32.gmra.mrb[0].mxu0 %v1397
  %v1467 = vpop.f32.mrb[0].mxu0
  %v1468 = vadd.f32 0.0, %v1467
  %v1469 = vpop.f32.mrb[0].mxu0
  %1470 = vdwg.mxu0
  %v1471 = vmul.f32 %v1388, 0.35355338
  %v1472 = vmul.f32 %v1468, 0.35355338
  %v1473 = vsel %vm375, %v1471, -3.4028235e+38
  %v1474 = vsel %vm375, %v1472, -3.4028235e+38
  %v1475 = vsel %vm29, %v1473, -inf
  %1476 = vmax.xlane.f32.xlu0 %v1475
  %v1477 = vpop.xlane.xlu0 %1476
  %v1478 = vsel %vm29, %v1474, -inf
  %1479 = vmax.xlane.f32.xlu0 %v1478
  %v1480 = vpop.xlane.xlu0 %1479
  %v1481 = vsub.f32 %v1473, %v1477
  %v1482 = vsub.f32 %v1474, %v1480
  %v1483 = vmul.f32 %v1481, 1.442695
  %v1484 = vpow.pop %v1483
  %v1485 = vmul.f32 %v1482, 1.442695
  %v1486 = vpow.pop %v1485
  %v1487 = vsel %vm29, %v1484, 0.0
  %1488 = vadd.xlane.f32.xlu0 %v1487
  %v1489 = vpop.xlane.xlu0 %1488
  %v1490 = vsel %vm29, %v1486, 0.0
  %1491 = vadd.xlane.f32.xlu0 %v1490
  %v1492 = vpop.xlane.xlu0 %1491
  %v1493 = vrcp.pop %v1489
  %v1494 = vrcp.pop %v1492
  %v1495 = vmul.f32 %v1484, %v1493
  %v1496 = vmul.f32 %v1486, %v1494
  %1497 = vrot.lane.b32.xlu0 %v1107, 48
  %v1498 = vpop.permute.xlu0 %1497
  %v1501 = vsel %vm29, %v1495, 0
  %1503 = vmatprep.subr.mxu0 0.0
  %1504 = vmatpush1.msra.mxu0 %v1498
  %1505 = vmatprep.subr.mxu0 0.0
  %1506 = vmatpush1.msra.mxu0 0.0
  %1507 = vmatprep.subr.mxu0 0.0
  %1508 = vmatpush1.msra.mxu0 0.0
  %1509 = vmatprep.subr.mxu0 0.0
  %1510 = vmatpush1.msra.mxu0 0.0
  %1511 = vmatprep.subr.mxu0 0.0
  %1512 = vmatpush1.msra.mxu0 0.0
  %1513 = vmatprep.subr.mxu0 0.0
  %1514 = vmatpush1.msra.mxu0 0.0
  %1515 = vmatprep.subr.mxu0 0.0
  %1516 = vmatpush1.msra.mxu0 0.0
  %1517 = vmatprep.subr.mxu0 0.0
  %1518 = vmatpush1.msra.mxu0 0.0
  %1519 = vmatprep.subr.mxu0 0.0
  %1520 = vmatpush1.msra.mxu0 0.0
  %1521 = vmatprep.subr.mxu0 0.0
  %1522 = vmatpush1.msra.mxu0 0.0
  %1523 = vmatprep.subr.mxu0 0.0
  %1524 = vmatpush1.msra.mxu0 0.0
  %1525 = vmatprep.subr.mxu0 0.0
  %1526 = vmatpush1.msra.mxu0 0.0
  %1527 = vmatprep.subr.mxu0 0.0
  %1528 = vmatpush1.msra.mxu0 0.0
  %1529 = vmatprep.subr.mxu0 0.0
  %1530 = vmatpush1.msra.mxu0 0.0
  %1531 = vmatprep.subr.mxu0 0.0
  %1532 = vmatpush1.msra.mxu0 0.0
  %1533 = vmatprep.subr.mxu0 0.0
  %1534 = vmatpush1.msra.mxu0 0.0
  %1535 = vmatprep.subr.mxu0 0.0
  %1536 = vmatpush1.msra.mxu0 0.0
  %1537 = vmatprep.subr.mxu0 0.0
  %1538 = vmatpush1.msra.mxu0 0.0
  %1539 = vmatprep.subr.mxu0 0.0
  %1540 = vmatpush1.msra.mxu0 0.0
  %1541 = vmatprep.subr.mxu0 0.0
  %1542 = vmatpush1.msra.mxu0 0.0
  %1543 = vmatprep.subr.mxu0 0.0
  %1544 = vmatpush1.msra.mxu0 0.0
  %1545 = vmatprep.subr.mxu0 0.0
  %1546 = vmatpush1.msra.mxu0 0.0
  %1547 = vmatprep.subr.mxu0 0.0
  %1548 = vmatpush1.msra.mxu0 0.0
  %1549 = vmatprep.subr.mxu0 0.0
  %1550 = vmatpush1.msra.mxu0 0.0
  %1551 = vmatprep.subr.mxu0 0.0
  %1552 = vmatpush1.msra.mxu0 0.0
  %1553 = vmatprep.subr.mxu0 0.0
  %1554 = vmatpush1.msra.mxu0 0.0
  %1555 = vmatprep.subr.mxu0 0.0
  %1556 = vmatpush1.msra.mxu0 0.0
  %1557 = vmatprep.subr.mxu0 0.0
  %1558 = vmatpush1.msra.mxu0 0.0
  %1559 = vmatprep.subr.mxu0 0.0
  %1560 = vmatpush1.msra.mxu0 0.0
  %1561 = vmatprep.subr.mxu0 0.0
  %1562 = vmatpush1.msra.mxu0 0.0
  %1563 = vmatprep.subr.mxu0 0.0
  %1564 = vmatpush1.msra.mxu0 0.0
  %1565 = vmatprep.subr.mxu0 0.0
  %1566 = vmatpush1.msra.mxu0 0.0
  %1567 = vmatprep.mubr.f32.mxu0 0.0
  %1568 = vmatmul.mubr.f32.gmra.mrb[0].mxu0 %v1501
  %v1569 = vpop.f32.mrb[0].mxu0
  %v1570 = vadd.f32 0.0, %v1569
  %v1571 = vpop.f32.mrb[0].mxu0
  %1572 = vdwg.mxu0
  %1573 = vrot.lane.b32.xlu0 %v1108, 48
  %v1574 = vpop.permute.xlu0 %1573
  %v1577 = vsel %vm29, %v1496, 0
  %1579 = vmatprep.subr.mxu0 0.0
  %1580 = vmatpush1.msra.mxu0 %v1574
  %1581 = vmatprep.subr.mxu0 0.0
  %1582 = vmatpush1.msra.mxu0 0.0
  %1583 = vmatprep.subr.mxu0 0.0
  %1584 = vmatpush1.msra.mxu0 0.0
  %1585 = vmatprep.subr.mxu0 0.0
  %1586 = vmatpush1.msra.mxu0 0.0
  %1587 = vmatprep.subr.mxu0 0.0
  %1588 = vmatpush1.msra.mxu0 0.0
  %1589 = vmatprep.subr.mxu0 0.0
  %1590 = vmatpush1.msra.mxu0 0.0
  %1591 = vmatprep.subr.mxu0 0.0
  %1592 = vmatpush1.msra.mxu0 0.0
  %1593 = vmatprep.subr.mxu0 0.0
  %1594 = vmatpush1.msra.mxu0 0.0
  %1595 = vmatprep.subr.mxu0 0.0
  %1596 = vmatpush1.msra.mxu0 0.0
  %1597 = vmatprep.subr.mxu0 0.0
  %1598 = vmatpush1.msra.mxu0 0.0
  %1599 = vmatprep.subr.mxu0 0.0
  %1600 = vmatpush1.msra.mxu0 0.0
  %1601 = vmatprep.subr.mxu0 0.0
  %1602 = vmatpush1.msra.mxu0 0.0
  %1603 = vmatprep.subr.mxu0 0.0
  %1604 = vmatpush1.msra.mxu0 0.0
  %1605 = vmatprep.subr.mxu0 0.0
  %1606 = vmatpush1.msra.mxu0 0.0
  %1607 = vmatprep.subr.mxu0 0.0
  %1608 = vmatpush1.msra.mxu0 0.0
  %1609 = vmatprep.subr.mxu0 0.0
  %1610 = vmatpush1.msra.mxu0 0.0
  %1611 = vmatprep.subr.mxu0 0.0
  %1612 = vmatpush1.msra.mxu0 0.0
  %1613 = vmatprep.subr.mxu0 0.0
  %1614 = vmatpush1.msra.mxu0 0.0
  %1615 = vmatprep.subr.mxu0 0.0
  %1616 = vmatpush1.msra.mxu0 0.0
  %1617 = vmatprep.subr.mxu0 0.0
  %1618 = vmatpush1.msra.mxu0 0.0
  %1619 = vmatprep.subr.mxu0 0.0
  %1620 = vmatpush1.msra.mxu0 0.0
  %1621 = vmatprep.subr.mxu0 0.0
  %1622 = vmatpush1.msra.mxu0 0.0
  %1623 = vmatprep.subr.mxu0 0.0
  %1624 = vmatpush1.msra.mxu0 0.0
  %1625 = vmatprep.subr.mxu0 0.0
  %1626 = vmatpush1.msra.mxu0 0.0
  %1627 = vmatprep.subr.mxu0 0.0
  %1628 = vmatpush1.msra.mxu0 0.0
  %1629 = vmatprep.subr.mxu0 0.0
  %1630 = vmatpush1.msra.mxu0 0.0
  %1631 = vmatprep.subr.mxu0 0.0
  %1632 = vmatpush1.msra.mxu0 0.0
  %1633 = vmatprep.subr.mxu0 0.0
  %1634 = vmatpush1.msra.mxu0 0.0
  %1635 = vmatprep.subr.mxu0 0.0
  %1636 = vmatpush1.msra.mxu0 0.0
  %1637 = vmatprep.subr.mxu0 0.0
  %1638 = vmatpush1.msra.mxu0 0.0
  %1639 = vmatprep.subr.mxu0 0.0
  %1640 = vmatpush1.msra.mxu0 0.0
  %1641 = vmatprep.subr.mxu0 0.0
  %1642 = vmatpush1.msra.mxu0 0.0
  %1643 = vmatprep.mubr.f32.mxu0 0.0
  %1644 = vmatmul.mubr.f32.gmra.mrb[0].mxu0 %v1577
  %v1645 = vpop.f32.mrb[0].mxu0
  %v1646 = vadd.f32 0.0, %v1645
  %v1647 = vpop.f32.mrb[0].mxu0
  %1648 = vdwg.mxu0
  %1651 = vrot.lane.b32.xlu0 %v1570, 16
  %v1652 = vpop.permute.xlu0 %1651
  %1653 = vrot.lane.b32.xlu0 %v1646, 16
  %v1654 = vpop.permute.xlu0 %1653
  %vm1657 = vcmask 195712
  %1658 = vst.msk [vmem:[%s4] sm:$0xff] %vm1657, %v1652
  %1659 = vst.msk [vmem:[%s4 + $0x8] sm:$0xff] %vm1657, %v1654
  %v1660 = vld [vmem:[%s0] sm:$0xff]
  %v1661 = vld [vmem:[%s0 + $0x8] sm:$0xff]
  %1662 = vrot.lane.b32.xlu0 %v17, 24
  %v1663 = vpop.permute.xlu0 %1662
  %v1665 = vmul.f32 %v1660, %v1663
  %v1666 = vmul.f32 %v1661, %v1663
  %1669 = vrot.lane.b32.xlu0 %v1660, 104
  %v1670 = vpop.permute.xlu0 %1669
  %1671 = vrot.lane.b32.xlu0 %v1661, 104
  %v1672 = vpop.permute.xlu0 %1671
  %v1673 = vsel %vm29, %v1670, 0
  %v1675 = vsel %vm29, %v1672, 0
  %1677 = vmatprep.subr.mxu0 0.0
  %1678 = vmatpush1.msra.mxu0 %v19
  %1679 = vmatprep.subr.mxu0 0.0
  %1680 = vmatpush1.msra.mxu0 0.0
  %1681 = vmatprep.subr.mxu0 0.0
  %1682 = vmatpush1.msra.mxu0 0.0
  %1683 = vmatprep.subr.mxu0 0.0
  %1684 = vmatpush1.msra.mxu0 0.0
  %1685 = vmatprep.subr.mxu0 0.0
  %1686 = vmatpush1.msra.mxu0 0.0
  %1687 = vmatprep.subr.mxu0 0.0
  %1688 = vmatpush1.msra.mxu0 0.0
  %1689 = vmatprep.subr.mxu0 0.0
  %1690 = vmatpush1.msra.mxu0 0.0
  %1691 = vmatprep.subr.mxu0 0.0
  %1692 = vmatpush1.msra.mxu0 0.0
  %1693 = vmatprep.subr.mxu0 0.0
  %1694 = vmatpush1.msra.mxu0 0.0
  %1695 = vmatprep.subr.mxu0 0.0
  %1696 = vmatpush1.msra.mxu0 0.0
  %1697 = vmatprep.subr.mxu0 0.0
  %1698 = vmatpush1.msra.mxu0 0.0
  %1699 = vmatprep.subr.mxu0 0.0
  %1700 = vmatpush1.msra.mxu0 0.0
  %1701 = vmatprep.subr.mxu0 0.0
  %1702 = vmatpush1.msra.mxu0 0.0
  %1703 = vmatprep.subr.mxu0 0.0
  %1704 = vmatpush1.msra.mxu0 0.0
  %1705 = vmatprep.subr.mxu0 0.0
  %1706 = vmatpush1.msra.mxu0 0.0
  %1707 = vmatprep.subr.mxu0 0.0
  %1708 = vmatpush1.msra.mxu0 0.0
  %1709 = vmatprep.subr.mxu0 0.0
  %1710 = vmatpush1.msra.mxu0 0.0
  %1711 = vmatprep.subr.mxu0 0.0
  %1712 = vmatpush1.msra.mxu0 0.0
  %1713 = vmatprep.subr.mxu0 0.0
  %1714 = vmatpush1.msra.mxu0 0.0
  %1715 = vmatprep.subr.mxu0 0.0
  %1716 = vmatpush1.msra.mxu0 0.0
  %1717 = vmatprep.subr.mxu0 0.0
  %1718 = vmatpush1.msra.mxu0 0.0
  %1719 = vmatprep.subr.mxu0 0.0
  %1720 = vmatpush1.msra.mxu0 0.0
  %1721 = vmatprep.subr.mxu0 0.0
  %1722 = vmatpush1.msra.mxu0 0.0
  %1723 = vmatprep.subr.mxu0 0.0
  %1724 = vmatpush1.msra.mxu0 0.0
  %1725 = vmatprep.subr.mxu0 0.0
  %1726 = vmatpush1.msra.mxu0 0.0
  %1727 = vmatprep.subr.mxu0 0.0
  %1728 = vmatpush1.msra.mxu0 0.0
  %1729 = vmatprep.subr.mxu0 0.0
  %1730 = vmatpush1.msra.mxu0 0.0
  %1731 = vmatprep.subr.mxu0 0.0
  %1732 = vmatpush1.msra.mxu0 0.0
  %1733 = vmatprep.subr.mxu0 0.0
  %1734 = vmatpush1.msra.mxu0 0.0
  %1735 = vmatprep.subr.mxu0 0.0
  %1736 = vmatpush1.msra.mxu0 0.0
  %1737 = vmatprep.subr.mxu0 0.0
  %1738 = vmatpush1.msra.mxu0 0.0
  %1739 = vmatprep.subr.mxu0 0.0
  %1740 = vmatpush1.msra.mxu0 0.0
  %1741 = vmatprep.mubr.f32.mxu0 0.0
  %1742 = vmatmul.mubr.f32.gmra.mrb[0].mxu0 %v1673
  %v1743 = vpop.f32.mrb[0].mxu0
  %v1744 = vadd.f32 0.0, %v1743
  %v1745 = vpop.f32.mrb[0].mxu0
  %1746 = vmatprep.mubr.f32.mxu0 0.0
  %1747 = vmatmul.mubr.f32.gmra.mrb[0].mxu0 %v1675
  %v1748 = vpop.f32.mrb[0].mxu0
  %v1749 = vadd.f32 0.0, %v1748
  %v1750 = vpop.f32.mrb[0].mxu0
  %1751 = vdwg.mxu0
  %v1752 = vmul.f32 %v1744, %v18
  %v1753 = vmul.f32 %v1749, %v18
  %1756 = vrot.lane.b32.xlu0 %v1752, 24
  %v1757 = vpop.permute.xlu0 %1756
  %1758 = vrot.lane.b32.xlu0 %v1753, 24
  %v1759 = vpop.permute.xlu0 %1758
  %v1762 = vadd.f32 %v1665, %v1757
  %v1763 = vadd.f32 %v1666, %v1759
  %1764 = vrot.lane.b32.xlu0 %v17, 56
  %v1765 = vpop.permute.xlu0 %1764
  %v1767 = vmul.f32 %v1660, %v1765
  %v1768 = vmul.f32 %v1661, %v1765
  %1769 = vrot.lane.b32.xlu0 %v1660, 72
  %v1770 = vpop.permute.xlu0 %1769
  %1771 = vrot.lane.b32.xlu0 %v1661, 72
  %v1772 = vpop.permute.xlu0 %1771
  %v1773 = vsel %vm29, %v1770, 0
  %v1775 = vsel %vm29, %v1772, 0
  %1777 = vmatprep.subr.mxu0 0.0
  %1778 = vmatpush1.msra.mxu0 %v19
  %1779 = vmatprep.subr.mxu0 0.0
  %1780 = vmatpush1.msra.mxu0 0.0
  %1781 = vmatprep.subr.mxu0 0.0
  %1782 = vmatpush1.msra.mxu0 0.0
  %1783 = vmatprep.subr.mxu0 0.0
  %1784 = vmatpush1.msra.mxu0 0.0
  %1785 = vmatprep.subr.mxu0 0.0
  %1786 = vmatpush1.msra.mxu0 0.0
  %1787 = vmatprep.subr.mxu0 0.0
  %1788 = vmatpush1.msra.mxu0 0.0
  %1789 = vmatprep.subr.mxu0 0.0
  %1790 = vmatpush1.msra.mxu0 0.0
  %1791 = vmatprep.subr.mxu0 0.0
  %1792 = vmatpush1.msra.mxu0 0.0
  %1793 = vmatprep.subr.mxu0 0.0
  %1794 = vmatpush1.msra.mxu0 0.0
  %1795 = vmatprep.subr.mxu0 0.0
  %1796 = vmatpush1.msra.mxu0 0.0
  %1797 = vmatprep.subr.mxu0 0.0
  %1798 = vmatpush1.msra.mxu0 0.0
  %1799 = vmatprep.subr.mxu0 0.0
  %1800 = vmatpush1.msra.mxu0 0.0
  %1801 = vmatprep.subr.mxu0 0.0
  %1802 = vmatpush1.msra.mxu0 0.0
  %1803 = vmatprep.subr.mxu0 0.0
  %1804 = vmatpush1.msra.mxu0 0.0
  %1805 = vmatprep.subr.mxu0 0.0
  %1806 = vmatpush1.msra.mxu0 0.0
  %1807 = vmatprep.subr.mxu0 0.0
  %1808 = vmatpush1.msra.mxu0 0.0
  %1809 = vmatprep.subr.mxu0 0.0
  %1810 = vmatpush1.msra.mxu0 0.0
  %1811 = vmatprep.subr.mxu0 0.0
  %1812 = vmatpush1.msra.mxu0 0.0
  %1813 = vmatprep.subr.mxu0 0.0
  %1814 = vmatpush1.msra.mxu0 0.0
  %1815 = vmatprep.subr.mxu0 0.0
  %1816 = vmatpush1.msra.mxu0 0.0
  %1817 = vmatprep.subr.mxu0 0.0
  %1818 = vmatpush1.msra.mxu0 0.0
  %1819 = vmatprep.subr.mxu0 0.0
  %1820 = vmatpush1.msra.mxu0 0.0
  %1821 = vmatprep.subr.mxu0 0.0
  %1822 = vmatpush1.msra.mxu0 0.0
  %1823 = vmatprep.subr.mxu0 0.0
  %1824 = vmatpush1.msra.mxu0 0.0
  %1825 = vmatprep.subr.mxu0 0.0
  %1826 = vmatpush1.msra.mxu0 0.0
  %1827 = vmatprep.subr.mxu0 0.0
  %1828 = vmatpush1.msra.mxu0 0.0
  %1829 = vmatprep.subr.mxu0 0.0
  %1830 = vmatpush1.msra.mxu0 0.0
  %1831 = vmatprep.subr.mxu0 0.0
  %1832 = vmatpush1.msra.mxu0 0.0
  %1833 = vmatprep.subr.mxu0 0.0
  %1834 = vmatpush1.msra.mxu0 0.0
  %1835 = vmatprep.subr.mxu0 0.0
  %1836 = vmatpush1.msra.mxu0 0.0
  %1837 = vmatprep.subr.mxu0 0.0
  %1838 = vmatpush1.msra.mxu0 0.0
  %1839 = vmatprep.subr.mxu0 0.0
  %1840 = vmatpush1.msra.mxu0 0.0
  %1841 = vmatprep.mubr.f32.mxu0 0.0
  %1842 = vmatmul.mubr.f32.gmra.mrb[0].mxu0 %v1773
  %v1843 = vpop.f32.mrb[0].mxu0
  %v1844 = vadd.f32 0.0, %v1843
  %v1845 = vpop.f32.mrb[0].mxu0
  %1846 = vmatprep.mubr.f32.mxu0 0.0
  %1847 = vmatmul.mubr.f32.gmra.mrb[0].mxu0 %v1775
  %v1848 = vpop.f32.mrb[0].mxu0
  %v1849 = vadd.f32 0.0, %v1848
  %v1850 = vpop.f32.mrb[0].mxu0
  %1851 = vdwg.mxu0
  %v1852 = vmul.f32 %v1844, %v18
  %v1853 = vmul.f32 %v1849, %v18
  %1856 = vrot.lane.b32.xlu0 %v1852, 56
  %v1857 = vpop.permute.xlu0 %1856
  %1858 = vrot.lane.b32.xlu0 %v1853, 56
  %v1859 = vpop.permute.xlu0 %1858
  %v1862 = vadd.f32 %v1767, %v1857
  %v1863 = vadd.f32 %v1768, %v1859
  %1865 = vrot.lane.b32.xlu0 %v1762, 104
  %v1866 = vpop.permute.xlu0 %1865
  %1868 = vrot.lane.b32.xlu0 %v1862, 72
  %v1869 = vpop.permute.xlu0 %1868
  %v1870 = vsel %vm29, %v1866, 0
  %v1872 = vsel %vm29, %v1869, 0
  %1874 = vmatprep.subr.mxu0 0.0
  %1875 = vmatpush1.xpose.msra.mxu0 %v1872
  %1876 = vmatprep.subr.mxu0 0.0
  %1877 = vmatpush1.xpose.msra.mxu0 0.0
  %1878 = vmatprep.subr.mxu0 0.0
  %1879 = vmatpush1.xpose.msra.mxu0 0.0
  %1880 = vmatprep.subr.mxu0 0.0
  %1881 = vmatpush1.xpose.msra.mxu0 0.0
  %1882 = vmatprep.subr.mxu0 0.0
  %1883 = vmatpush1.xpose.msra.mxu0 0.0
  %1884 = vmatprep.subr.mxu0 0.0
  %1885 = vmatpush1.xpose.msra.mxu0 0.0
  %1886 = vmatprep.subr.mxu0 0.0
  %1887 = vmatpush1.xpose.msra.mxu0 0.0
  %1888 = vmatprep.subr.mxu0 0.0
  %1889 = vmatpush1.xpose.msra.mxu0 0.0
  %1890 = vmatprep.subr.mxu0 0.0
  %1891 = vmatpush1.xpose.msra.mxu0 0.0
  %1892 = vmatprep.subr.mxu0 0.0
  %1893 = vmatpush1.xpose.msra.mxu0 0.0
  %1894 = vmatprep.subr.mxu0 0.0
  %1895 = vmatpush1.xpose.msra.mxu0 0.0
  %1896 = vmatprep.subr.mxu0 0.0
  %1897 = vmatpush1.xpose.msra.mxu0 0.0
  %1898 = vmatprep.subr.mxu0 0.0
  %1899 = vmatpush1.xpose.msra.mxu0 0.0
  %1900 = vmatprep.subr.mxu0 0.0
  %1901 = vmatpush1.xpose.msra.mxu0 0.0
  %1902 = vmatprep.subr.mxu0 0.0
  %1903 = vmatpush1.xpose.msra.mxu0 0.0
  %1904 = vmatprep.subr.mxu0 0.0
  %1905 = vmatpush1.xpose.msra.mxu0 0.0
  %1906 = vmatprep.subr.mxu0 0.0
  %1907 = vmatpush1.xpose.msra.mxu0 0.0
  %1908 = vmatprep.subr.mxu0 0.0
  %1909 = vmatpush1.xpose.msra.mxu0 0.0
  %1910 = vmatprep.subr.mxu0 0.0
  %1911 = vmatpush1.xpose.msra.mxu0 0.0
  %1912 = vmatprep.subr.mxu0 0.0
  %1913 = vmatpush1.xpose.msra.mxu0 0.0
  %1914 = vmatprep.subr.mxu0 0.0
  %1915 = vmatpush1.xpose.msra.mxu0 0.0
  %1916 = vmatprep.subr.mxu0 0.0
  %1917 = vmatpush1.xpose.msra.mxu0 0.0
  %1918 = vmatprep.subr.mxu0 0.0
  %1919 = vmatpush1.xpose.msra.mxu0 0.0
  %1920 = vmatprep.subr.mxu0 0.0
  %1921 = vmatpush1.xpose.msra.mxu0 0.0
  %1922 = vmatprep.subr.mxu0 0.0
  %1923 = vmatpush1.xpose.msra.mxu0 0.0
  %1924 = vmatprep.subr.mxu0 0.0
  %1925 = vmatpush1.xpose.msra.mxu0 0.0
  %1926 = vmatprep.subr.mxu0 0.0
  %1927 = vmatpush1.xpose.msra.mxu0 0.0
  %1928 = vmatprep.subr.mxu0 0.0
  %1929 = vmatpush1.xpose.msra.mxu0 0.0
  %1930 = vmatprep.subr.mxu0 0.0
  %1931 = vmatpush1.xpose.msra.mxu0 0.0
  %1932 = vmatprep.subr.mxu0 0.0
  %1933 = vmatpush1.xpose.msra.mxu0 0.0
  %1934 = vmatprep.subr.mxu0 0.0
  %1935 = vmatpush1.xpose.msra.mxu0 0.0
  %1936 = vmatprep.subr.mxu0 0.0
  %1937 = vmatpush1.xpose.msra.mxu0 0.0
  %1938 = vmatprep.mubr.f32.mxu0 0.0
  %1939 = vmatmul.mubr.f32.gmra.mrb[0].mxu0 %v1870
  %v1940 = vpop.f32.mrb[0].mxu0
  %v1941 = vadd.f32 0.0, %v1940
  %v1942 = vpop.f32.mrb[0].mxu0
  %1943 = vdwg.mxu0
  %1945 = vrot.lane.b32.xlu0 %v1763, 104
  %v1946 = vpop.permute.xlu0 %1945
  %1948 = vrot.lane.b32.xlu0 %v1863, 72
  %v1949 = vpop.permute.xlu0 %1948
  %v1950 = vsel %vm29, %v1946, 0
  %v1952 = vsel %vm29, %v1949, 0
  %1954 = vmatprep.subr.mxu0 0.0
  %1955 = vmatpush1.xpose.msra.mxu0 %v1952
  %1956 = vmatprep.subr.mxu0 0.0
  %1957 = vmatpush1.xpose.msra.mxu0 0.0
  %1958 = vmatprep.subr.mxu0 0.0
  %1959 = vmatpush1.xpose.msra.mxu0 0.0
  %1960 = vmatprep.subr.mxu0 0.0
  %1961 = vmatpush1.xpose.msra.mxu0 0.0
  %1962 = vmatprep.subr.mxu0 0.0
  %1963 = vmatpush1.xpose.msra.mxu0 0.0
  %1964 = vmatprep.subr.mxu0 0.0
  %1965 = vmatpush1.xpose.msra.mxu0 0.0
  %1966 = vmatprep.subr.mxu0 0.0
  %1967 = vmatpush1.xpose.msra.mxu0 0.0
  %1968 = vmatprep.subr.mxu0 0.0
  %1969 = vmatpush1.xpose.msra.mxu0 0.0
  %1970 = vmatprep.subr.mxu0 0.0
  %1971 = vmatpush1.xpose.msra.mxu0 0.0
  %1972 = vmatprep.subr.mxu0 0.0
  %1973 = vmatpush1.xpose.msra.mxu0 0.0
  %1974 = vmatprep.subr.mxu0 0.0
  %1975 = vmatpush1.xpose.msra.mxu0 0.0
  %1976 = vmatprep.subr.mxu0 0.0
  %1977 = vmatpush1.xpose.msra.mxu0 0.0
  %1978 = vmatprep.subr.mxu0 0.0
  %1979 = vmatpush1.xpose.msra.mxu0 0.0
  %1980 = vmatprep.subr.mxu0 0.0
  %1981 = vmatpush1.xpose.msra.mxu0 0.0
  %1982 = vmatprep.subr.mxu0 0.0
  %1983 = vmatpush1.xpose.msra.mxu0 0.0
  %1984 = vmatprep.subr.mxu0 0.0
  %1985 = vmatpush1.xpose.msra.mxu0 0.0
  %1986 = vmatprep.subr.mxu0 0.0
  %1987 = vmatpush1.xpose.msra.mxu0 0.0
  %1988 = vmatprep.subr.mxu0 0.0
  %1989 = vmatpush1.xpose.msra.mxu0 0.0
  %1990 = vmatprep.subr.mxu0 0.0
  %1991 = vmatpush1.xpose.msra.mxu0 0.0
  %1992 = vmatprep.subr.mxu0 0.0
  %1993 = vmatpush1.xpose.msra.mxu0 0.0
  %1994 = vmatprep.subr.mxu0 0.0
  %1995 = vmatpush1.xpose.msra.mxu0 0.0
  %1996 = vmatprep.subr.mxu0 0.0
  %1997 = vmatpush1.xpose.msra.mxu0 0.0
  %1998 = vmatprep.subr.mxu0 0.0
  %1999 = vmatpush1.xpose.msra.mxu0 0.0
  %2000 = vmatprep.subr.mxu0 0.0
  %2001 = vmatpush1.xpose.msra.mxu0 0.0
  %2002 = vmatprep.subr.mxu0 0.0
  %2003 = vmatpush1.xpose.msra.mxu0 0.0
  %2004 = vmatprep.subr.mxu0 0.0
  %2005 = vmatpush1.xpose.msra.mxu0 0.0
  %2006 = vmatprep.subr.mxu0 0.0
  %2007 = vmatpush1.xpose.msra.mxu0 0.0
  %2008 = vmatprep.subr.mxu0 0.0
  %2009 = vmatpush1.xpose.msra.mxu0 0.0
  %2010 = vmatprep.subr.mxu0 0.0
  %2011 = vmatpush1.xpose.msra.mxu0 0.0
  %2012 = vmatprep.subr.mxu0 0.0
  %2013 = vmatpush1.xpose.msra.mxu0 0.0
  %2014 = vmatprep.subr.mxu0 0.0
  %2015 = vmatpush1.xpose.msra.mxu0 0.0
  %2016 = vmatprep.subr.mxu0 0.0
  %2017 = vmatpush1.xpose.msra.mxu0 0.0
  %2018 = vmatprep.mubr.f32.mxu0 0.0
  %2019 = vmatmul.mubr.f32.gmra.mrb[0].mxu0 %v1950
  %v2020 = vpop.f32.mrb[0].mxu0
  %v2021 = vadd.f32 0.0, %v2020
  %v2022 = vpop.f32.mrb[0].mxu0
  %2023 = vdwg.mxu0
  %v2024 = vmul.f32 %v1941, 0.35355338
  %v2025 = vmul.f32 %v2021, 0.35355338
  %v2026 = vsel %vm375, %v2024, -3.4028235e+38
  %v2027 = vsel %vm375, %v2025, -3.4028235e+38
  %v2028 = vsel %vm29, %v2026, -inf
  %2029 = vmax.xlane.f32.xlu0 %v2028
  %v2030 = vpop.xlane.xlu0 %2029
  %v2031 = vsel %vm29, %v2027, -inf
  %2032 = vmax.xlane.f32.xlu0 %v2031
  %v2033 = vpop.xlane.xlu0 %2032
  %v2034 = vsub.f32 %v2026, %v2030
  %v2035 = vsub.f32 %v2027, %v2033
  %v2036 = vmul.f32 %v2034, 1.442695
  %v2037 = vpow.pop %v2036
  %v2038 = vmul.f32 %v2035, 1.442695
  %v2039 = vpow.pop %v2038
  %v2040 = vsel %vm29, %v2037, 0.0
  %2041 = vadd.xlane.f32.xlu0 %v2040
  %v2042 = vpop.xlane.xlu0 %2041
  %v2043 = vsel %vm29, %v2039, 0.0
  %2044 = vadd.xlane.f32.xlu0 %v2043
  %v2045 = vpop.xlane.xlu0 %2044
  %v2046 = vrcp.pop %v2042
  %v2047 = vrcp.pop %v2045
  %v2048 = vmul.f32 %v2037, %v2046
  %v2049 = vmul.f32 %v2039, %v2047
  %2050 = vrot.lane.b32.xlu0 %v1660, 40
  %v2051 = vpop.permute.xlu0 %2050
  %v2054 = vsel %vm29, %v2048, 0
  %2056 = vmatprep.subr.mxu0 0.0
  %2057 = vmatpush1.msra.mxu0 %v2051
  %2058 = vmatprep.subr.mxu0 0.0
  %2059 = vmatpush1.msra.mxu0 0.0
  %2060 = vmatprep.subr.mxu0 0.0
  %2061 = vmatpush1.msra.mxu0 0.0
  %2062 = vmatprep.subr.mxu0 0.0
  %2063 = vmatpush1.msra.mxu0 0.0
  %2064 = vmatprep.subr.mxu0 0.0
  %2065 = vmatpush1.msra.mxu0 0.0
  %2066 = vmatprep.subr.mxu0 0.0
  %2067 = vmatpush1.msra.mxu0 0.0
  %2068 = vmatprep.subr.mxu0 0.0
  %2069 = vmatpush1.msra.mxu0 0.0
  %2070 = vmatprep.subr.mxu0 0.0
  %2071 = vmatpush1.msra.mxu0 0.0
  %2072 = vmatprep.subr.mxu0 0.0
  %2073 = vmatpush1.msra.mxu0 0.0
  %2074 = vmatprep.subr.mxu0 0.0
  %2075 = vmatpush1.msra.mxu0 0.0
  %2076 = vmatprep.subr.mxu0 0.0
  %2077 = vmatpush1.msra.mxu0 0.0
  %2078 = vmatprep.subr.mxu0 0.0
  %2079 = vmatpush1.msra.mxu0 0.0
  %2080 = vmatprep.subr.mxu0 0.0
  %2081 = vmatpush1.msra.mxu0 0.0
  %2082 = vmatprep.subr.mxu0 0.0
  %2083 = vmatpush1.msra.mxu0 0.0
  %2084 = vmatprep.subr.mxu0 0.0
  %2085 = vmatpush1.msra.mxu0 0.0
  %2086 = vmatprep.subr.mxu0 0.0
  %2087 = vmatpush1.msra.mxu0 0.0
  %2088 = vmatprep.subr.mxu0 0.0
  %2089 = vmatpush1.msra.mxu0 0.0
  %2090 = vmatprep.subr.mxu0 0.0
  %2091 = vmatpush1.msra.mxu0 0.0
  %2092 = vmatprep.subr.mxu0 0.0
  %2093 = vmatpush1.msra.mxu0 0.0
  %2094 = vmatprep.subr.mxu0 0.0
  %2095 = vmatpush1.msra.mxu0 0.0
  %2096 = vmatprep.subr.mxu0 0.0
  %2097 = vmatpush1.msra.mxu0 0.0
  %2098 = vmatprep.subr.mxu0 0.0
  %2099 = vmatpush1.msra.mxu0 0.0
  %2100 = vmatprep.subr.mxu0 0.0
  %2101 = vmatpush1.msra.mxu0 0.0
  %2102 = vmatprep.subr.mxu0 0.0
  %2103 = vmatpush1.msra.mxu0 0.0
  %2104 = vmatprep.subr.mxu0 0.0
  %2105 = vmatpush1.msra.mxu0 0.0
  %2106 = vmatprep.subr.mxu0 0.0
  %2107 = vmatpush1.msra.mxu0 0.0
  %2108 = vmatprep.subr.mxu0 0.0
  %2109 = vmatpush1.msra.mxu0 0.0
  %2110 = vmatprep.subr.mxu0 0.0
  %2111 = vmatpush1.msra.mxu0 0.0
  %2112 = vmatprep.subr.mxu0 0.0
  %2113 = vmatpush1.msra.mxu0 0.0
  %2114 = vmatprep.subr.mxu0 0.0
  %2115 = vmatpush1.msra.mxu0 0.0
  %2116 = vmatprep.subr.mxu0 0.0
  %2117 = vmatpush1.msra.mxu0 0.0
  %2118 = vmatprep.subr.mxu0 0.0
  %2119 = vmatpush1.msra.mxu0 0.0
  %2120 = vmatprep.mubr.f32.mxu0 0.0
  %2121 = vmatmul.mubr.f32.gmra.mrb[0].mxu0 %v2054
  %v2122 = vpop.f32.mrb[0].mxu0
  %v2123 = vadd.f32 0.0, %v2122
  %v2124 = vpop.f32.mrb[0].mxu0
  %2125 = vdwg.mxu0
  %2126 = vrot.lane.b32.xlu0 %v1661, 40
  %v2127 = vpop.permute.xlu0 %2126
  %v2130 = vsel %vm29, %v2049, 0
  %2132 = vmatprep.subr.mxu0 0.0
  %2133 = vmatpush1.msra.mxu0 %v2127
  %2134 = vmatprep.subr.mxu0 0.0
  %2135 = vmatpush1.msra.mxu0 0.0
  %2136 = vmatprep.subr.mxu0 0.0
  %2137 = vmatpush1.msra.mxu0 0.0
  %2138 = vmatprep.subr.mxu0 0.0
  %2139 = vmatpush1.msra.mxu0 0.0
  %2140 = vmatprep.subr.mxu0 0.0
  %2141 = vmatpush1.msra.mxu0 0.0
  %2142 = vmatprep.subr.mxu0 0.0
  %2143 = vmatpush1.msra.mxu0 0.0
  %2144 = vmatprep.subr.mxu0 0.0
  %2145 = vmatpush1.msra.mxu0 0.0
  %2146 = vmatprep.subr.mxu0 0.0
  %2147 = vmatpush1.msra.mxu0 0.0
  %2148 = vmatprep.subr.mxu0 0.0
  %2149 = vmatpush1.msra.mxu0 0.0
  %2150 = vmatprep.subr.mxu0 0.0
  %2151 = vmatpush1.msra.mxu0 0.0
  %2152 = vmatprep.subr.mxu0 0.0
  %2153 = vmatpush1.msra.mxu0 0.0
  %2154 = vmatprep.subr.mxu0 0.0
  %2155 = vmatpush1.msra.mxu0 0.0
  %2156 = vmatprep.subr.mxu0 0.0
  %2157 = vmatpush1.msra.mxu0 0.0
  %2158 = vmatprep.subr.mxu0 0.0
  %2159 = vmatpush1.msra.mxu0 0.0
  %2160 = vmatprep.subr.mxu0 0.0
  %2161 = vmatpush1.msra.mxu0 0.0
  %2162 = vmatprep.subr.mxu0 0.0
  %2163 = vmatpush1.msra.mxu0 0.0
  %2164 = vmatprep.subr.mxu0 0.0
  %2165 = vmatpush1.msra.mxu0 0.0
  %2166 = vmatprep.subr.mxu0 0.0
  %2167 = vmatpush1.msra.mxu0 0.0
  %2168 = vmatprep.subr.mxu0 0.0
  %2169 = vmatpush1.msra.mxu0 0.0
  %2170 = vmatprep.subr.mxu0 0.0
  %2171 = vmatpush1.msra.mxu0 0.0
  %2172 = vmatprep.subr.mxu0 0.0
  %2173 = vmatpush1.msra.mxu0 0.0
  %2174 = vmatprep.subr.mxu0 0.0
  %2175 = vmatpush1.msra.mxu0 0.0
  %2176 = vmatprep.subr.mxu0 0.0
  %2177 = vmatpush1.msra.mxu0 0.0
  %2178 = vmatprep.subr.mxu0 0.0
  %2179 = vmatpush1.msra.mxu0 0.0
  %2180 = vmatprep.subr.mxu0 0.0
  %2181 = vmatpush1.msra.mxu0 0.0
  %2182 = vmatprep.subr.mxu0 0.0
  %2183 = vmatpush1.msra.mxu0 0.0
  %2184 = vmatprep.subr.mxu0 0.0
  %2185 = vmatpush1.msra.mxu0 0.0
  %2186 = vmatprep.subr.mxu0 0.0
  %2187 = vmatpush1.msra.mxu0 0.0
  %2188 = vmatprep.subr.mxu0 0.0
  %2189 = vmatpush1.msra.mxu0 0.0
  %2190 = vmatprep.subr.mxu0 0.0
  %2191 = vmatpush1.msra.mxu0 0.0
  %2192 = vmatprep.subr.mxu0 0.0
  %2193 = vmatpush1.msra.mxu0 0.0
  %2194 = vmatprep.subr.mxu0 0.0
  %2195 = vmatpush1.msra.mxu0 0.0
  %2196 = vmatprep.mubr.f32.mxu0 0.0
  %2197 = vmatmul.mubr.f32.gmra.mrb[0].mxu0 %v2130
  %v2198 = vpop.f32.mrb[0].mxu0
  %v2199 = vadd.f32 0.0, %v2198
  %v2200 = vpop.f32.mrb[0].mxu0
  %2201 = vdwg.mxu0
  %2204 = vrot.lane.b32.xlu0 %v2123, 24
  %v2205 = vpop.permute.xlu0 %2204
  %2206 = vrot.lane.b32.xlu0 %v2199, 24
  %v2207 = vpop.permute.xlu0 %2206
  %vm2210 = vcmask 261312
  %2211 = vst.msk [vmem:[%s4] sm:$0xff] %vm2210, %v2205
  %2212 = vst.msk [vmem:[%s4 + $0x8] sm:$0xff] %vm2210, %v2207
  // Predicated region
  $region18: #{truncated_llama_forward.19} parent=0 // pred_check
    _
  $region19: #{truncated_llama_forward.19} parent=0 // pred_check_branch
    %2214 = sbr.rel (0) target = $region21
  $region20: #{truncated_llama_forward.19} parent=0 // pred_region
    _
  $region21: #{truncated_llama_forward.19} parent=0 // pred_fallthru
    _
  // Predicated region
  $region22: #{truncated_llama_forward.19} parent=0 // pred_check
    _
  $region23: #{truncated_llama_forward.19} parent=0 // pred_check_branch
    %2216 = sbr.rel (0) target = $region25
  $region24: #{truncated_llama_forward.19} parent=0 // pred_region
    _
  $region25: #{truncated_llama_forward.19} parent=0 // pred_fallthru
    _

// kernel: truncated_llama_forward.35
$region0: #{truncated_llama_forward.35}
  #allocation0 [shape = 'u32[]', space=smem, size = 0x4, offset = 0x4, fixed_abs, tag = 'smem constant byte address 0x4 - core index']
  #allocation1 [shape = 'u32[144,128]{1,0:T(1,128)}', space=vmem, size = 0x12000, scoped, tag = 'internal scratch']
  %s0 = inlined_call_operand.vmem [shape: f32[16,32], index: 0, kind: input, shape index: {}]
  %s1 = inlined_call_operand.vmem [shape: f32[1,32], index: 1, kind: input, shape index: {}]
  %s2 = inlined_call_operand.vmem [shape: f32[64,32], index: 2, kind: input, shape index: {}]
  %s3 = inlined_call_operand.vmem [shape: f32[16,64], index: 3, kind: output, shape index: {}]
  %s4 = sld [smem:[#allocation0]]
  $region22: #{truncated_llama_forward.35} parent=0
    _
  %s6 = ssub.s32 1, %s4
  %s7 = scalar_select 0, %s6, %s4
  // Predicated region
  $region2: #{truncated_llama_forward.35} parent=0 // pred_check
    _
  $region3: #{truncated_llama_forward.35} parent=0 // pred_check_branch
    %9 = sbr.rel (0) target = $region5
  $region4: #{truncated_llama_forward.35} parent=0 // pred_region
    _
  $region5: #{truncated_llama_forward.35} parent=0 // pred_fallthru
    _
  // Predicated region
  $region6: #{truncated_llama_forward.35} parent=0 // pred_check
    _
  $region7: #{truncated_llama_forward.35} parent=0 // pred_check_branch
    %11 = sbr.rel (0) target = $region9
  $region8: #{truncated_llama_forward.35} parent=0 // pred_region
    _
  $region9: #{truncated_llama_forward.35} parent=0 // pred_fallthru
    _
  // Predicated region
  $region10: #{truncated_llama_forward.35} parent=0 // pred_check
    _
  $region11: #{truncated_llama_forward.35} parent=0 // pred_check_branch
    %13 = sbr.rel (0) target = $region13
  $region12: #{truncated_llama_forward.35} parent=0 // pred_region
    _
  $region13: #{truncated_llama_forward.35} parent=0 // pred_fallthru
    _
  %v14 = vld [vmem:[%s0] sm:$0xff]
  %v15 = vld [vmem:[%s0 + $0x8] sm:$0xff]
  %v16 = vmul.f32 %v14, %v14
  %v17 = vmul.f32 %v15, %v15
  %vm18 = vcmask 261120
  %v19 = vsel %vm18, %v16, 0.0
  %20 = vadd.xlane.f32.xlu0 %v19
  %v21 = vpop.xlane.xlu0 %20
  %v22 = vsel %vm18, %v17, 0.0
  %23 = vadd.xlane.f32.xlu0 %v22
  %v24 = vpop.xlane.xlu0 %23
  %v25 = vrcp.pop 32.0
  %v26 = vmul.f32 %v21, %v25
  %v27 = vmul.f32 %v24, %v25
  %v28 = vadd.f32 %v26, 1e-06
  %v29 = vadd.f32 %v27, 1e-06
  %v30 = vrsqrt.pop %v28
  %v31 = vrsqrt.pop %v29
  %v32 = vmul.f32 %v14, %v30
  %v33 = vmul.f32 %v15, %v31
  %v34 = vld [vmem:[%s1] sm:$0x1]
  %v36 = vlaneseq
  %v37 = vshrl.u32 %v36, 7
  %v38 = vsub.s32 0, %v37
  %v39 = vrot.slane %v34, %v38
  %v41 = vmul.f32 %v32, %v39
  %v42 = vmul.f32 %v33, %v39
  %v43 = vld [vmem:[%s2] sm:$0xff]
  %v44 = vld [vmem:[%s2 + $0x8] sm:$0xff]
  %v45 = vld [vmem:[%s2 + $0x10] sm:$0xff]
  %v46 = vld [vmem:[%s2 + $0x18] sm:$0xff]
  %v47 = vld [vmem:[%s2 + $0x20] sm:$0xff]
  %v48 = vld [vmem:[%s2 + $0x28] sm:$0xff]
  %v49 = vld [vmem:[%s2 + $0x30] sm:$0xff]
  %v50 = vld [vmem:[%s2 + $0x38] sm:$0xff]
  %v52 = vsel %vm18, %v41, 0
  %v55 = vsel %vm18, %v42, 0
  %v58 = vsel %vm18, %v43, 0
  %v61 = vsel %vm18, %v44, 0
  %v64 = vsel %vm18, %v45, 0
  %v67 = vsel %vm18, %v46, 0
  %v70 = vsel %vm18, %v47, 0
  %v73 = vsel %vm18, %v48, 0
  %v76 = vsel %vm18, %v49, 0
  %v79 = vsel %vm18, %v50, 0
  %81 = vmatprep.subr.mxu0 0.0
  %82 = vmatpush1.xpose.msra.mxu0 %v58
  %83 = vmatprep.subr.mxu0 0.0
  %84 = vmatpush1.xpose.msra.mxu0 %v61
  %85 = vmatprep.subr.mxu0 0.0
  %86 = vmatpush1.xpose.msra.mxu0 %v64
  %87 = vmatprep.subr.mxu0 0.0
  %88 = vmatpush1.xpose.msra.mxu0 %v67
  %89 = vmatprep.subr.mxu0 0.0
  %90 = vmatpush1.xpose.msra.mxu0 %v70
  %91 = vmatprep.subr.mxu0 0.0
  %92 = vmatpush1.xpose.msra.mxu0 %v73
  %93 = vmatprep.subr.mxu0 0.0
  %94 = vmatpush1.xpose.msra.mxu0 %v76
  %95 = vmatprep.subr.mxu0 0.0
  %96 = vmatpush1.xpose.msra.mxu0 %v79
  %97 = vmatprep.subr.mxu0 0.0
  %98 = vmatpush1.xpose.msra.mxu0 0.0
  %99 = vmatprep.subr.mxu0 0.0
  %100 = vmatpush1.xpose.msra.mxu0 0.0
  %101 = vmatprep.subr.mxu0 0.0
  %102 = vmatpush1.xpose.msra.mxu0 0.0
  %103 = vmatprep.subr.mxu0 0.0
  %104 = vmatpush1.xpose.msra.mxu0 0.0
  %105 = vmatprep.subr.mxu0 0.0
  %106 = vmatpush1.xpose.msra.mxu0 0.0
  %107 = vmatprep.subr.mxu0 0.0
  %108 = vmatpush1.xpose.msra.mxu0 0.0
  %109 = vmatprep.subr.mxu0 0.0
  %110 = vmatpush1.xpose.msra.mxu0 0.0
  %111 = vmatprep.subr.mxu0 0.0
  %112 = vmatpush1.xpose.msra.mxu0 0.0
  %113 = vmatprep.subr.mxu0 0.0
  %114 = vmatpush1.xpose.msra.mxu0 0.0
  %115 = vmatprep.subr.mxu0 0.0
  %116 = vmatpush1.xpose.msra.mxu0 0.0
  %117 = vmatprep.subr.mxu0 0.0
  %118 = vmatpush1.xpose.msra.mxu0 0.0
  %119 = vmatprep.subr.mxu0 0.0
  %120 = vmatpush1.xpose.msra.mxu0 0.0
  %121 = vmatprep.subr.mxu0 0.0
  %122 = vmatpush1.xpose.msra.mxu0 0.0
  %123 = vmatprep.subr.mxu0 0.0
  %124 = vmatpush1.xpose.msra.mxu0 0.0
  %125 = vmatprep.subr.mxu0 0.0
  %126 = vmatpush1.xpose.msra.mxu0 0.0
  %127 = vmatprep.subr.mxu0 0.0
  %128 = vmatpush1.xpose.msra.mxu0 0.0
  %129 = vmatprep.subr.mxu0 0.0
  %130 = vmatpush1.xpose.msra.mxu0 0.0
  %131 = vmatprep.subr.mxu0 0.0
  %132 = vmatpush1.xpose.msra.mxu0 0.0
  %133 = vmatprep.subr.mxu0 0.0
  %134 = vmatpush1.xpose.msra.mxu0 0.0
  %135 = vmatprep.subr.mxu0 0.0
  %136 = vmatpush1.xpose.msra.mxu0 0.0
  %137 = vmatprep.subr.mxu0 0.0
  %138 = vmatpush1.xpose.msra.mxu0 0.0
  %139 = vmatprep.subr.mxu0 0.0
  %140 = vmatpush1.xpose.msra.mxu0 0.0
  %141 = vmatprep.subr.mxu0 0.0
  %142 = vmatpush1.xpose.msra.mxu0 0.0
  %143 = vmatprep.subr.mxu0 0.0
  %144 = vmatpush1.xpose.msra.mxu0 0.0
  %145 = vmatprep.mubr.f32.mxu0 0.0
  %146 = vmatmul.mubr.f32.gmra.mrb[0].mxu0 %v52
  %v147 = vpop.f32.mrb[0].mxu0
  %v148 = vadd.f32 0.0, %v147
  %v149 = vpop.f32.mrb[0].mxu0
  %150 = vmatprep.mubr.f32.mxu0 0.0
  %151 = vmatmul.mubr.f32.gmra.mrb[0].mxu0 %v55
  %v152 = vpop.f32.mrb[0].mxu0
  %v153 = vadd.f32 0.0, %v152
  %v154 = vpop.f32.mrb[0].mxu0
  %155 = vdwg.mxu0
  %vm156 = vcmask 523264
  %157 = vst.msk [vmem:[%s3] sm:$0xff] %vm156, %v148
  %158 = vst.msk [vmem:[%s3 + $0x8] sm:$0xff] %vm156, %v153
  // Predicated region
  $region14: #{truncated_llama_forward.35} parent=0 // pred_check
    _
  $region15: #{truncated_llama_forward.35} parent=0 // pred_check_branch
    %160 = sbr.rel (0) target = $region17
  $region16: #{truncated_llama_forward.35} parent=0 // pred_region
    _
  $region17: #{truncated_llama_forward.35} parent=0 // pred_fallthru
    _
  // Predicated region
  $region18: #{truncated_llama_forward.35} parent=0 // pred_check
    _
  $region19: #{truncated_llama_forward.35} parent=0 // pred_check_branch
    %162 = sbr.rel (0) target = $region21
  $region20: #{truncated_llama_forward.35} parent=0 // pred_region
    _
  $region21: #{truncated_llama_forward.35} parent=0 // pred_fallthru
    _

</llo_original>
